<compile_context>
chip_gen: v7x
topology: tpu7x:2x2x1
jax: 0.10.0
libtpu: 0.0.40
codegen_flags: <defaults>
</compile_context>

<pallas_src>
import math
import functools
import jax
import jax.numpy as jnp
from jax.experimental import pallas as pl
from jax.experimental.pallas import tpu as pltpu

# ---- small synthetic BERT config -------------------------------------------
VOCAB   = 100
MAX_POS = 32
H       = 32            # hidden size
NH      = 4             # attention heads
HD      = H // NH       # head dim
FFN     = 64            # intermediate size
NLAYERS = 2
NUM_CLASSES = 2
EPS = 1e-12

MATMUL_DTYPE = jnp.float32   # set to jnp.bfloat16 on v6e/v7x for larger H


# ---- in-kernel helpers -------------------------------------------------------
def _layernorm(x, gamma, beta):
    mu = jnp.mean(x, axis=-1, keepdims=True)
    var = jnp.mean((x - mu) ** 2, axis=-1, keepdims=True)
    return (x - mu) * jax.lax.rsqrt(var + EPS) * gamma + beta


def _mm(a, b):
    return jnp.dot(a.astype(MATMUL_DTYPE), b.astype(MATMUL_DTYPE),
                   preferred_element_type=jnp.float32)


# ---- single fused Pallas kernel: embeddings-LN + NLAYERS encoder + classifier
def fused_forward_kernel(x_ref, bias_ref, eg_ref, eb_ref,
                         wqkv_ref, bqkv_ref, wo_ref, bo_ref,
                         g1_ref, be1_ref, w1_ref, b1_ref,
                         w2_ref, b2_ref, g2_ref, be2_ref,
                         clsw_ref, clsb_ref, out_ref, *, batch, seq):
    x = _layernorm(x_ref[...], eg_ref[...], eb_ref[...])   # [T, H], T = B*S
    bias = bias_ref[...]                                    # [T, T] additive mask
    scale = 1.0 / math.sqrt(HD)

    for l in range(NLAYERS):                                # static unroll
        # -- packed QKV projection: one [T,H] x [H,3H] matmul -----------------
        qkv = _mm(x, wqkv_ref[l]) + bqkv_ref[l]             # [T, 3H]
        q = qkv[:, :H] * scale                              # scale q once
        k = qkv[:, H:2 * H]
        v = qkv[:, 2 * H:]

        # -- head-major stacks [NH, T, HD] (static lane slices, leading concat)
        qh = jnp.stack([q[:, h * HD:(h + 1) * HD] for h in range(NH)], axis=0)
        kh = jnp.stack([k[:, h * HD:(h + 1) * HD] for h in range(NH)], axis=0)
        vh = jnp.stack([v[:, h * HD:(h + 1) * HD] for h in range(NH)], axis=0)

        # -- attention batched over heads -------------------------------------
        s = jnp.einsum('hqd,hkd->hqk',
                       qh.astype(MATMUL_DTYPE), kh.astype(MATMUL_DTYPE),
                       preferred_element_type=jnp.float32)   # [NH, T, T]
        s = s + bias[None]
        s = s - jnp.max(s, axis=-1, keepdims=True)
        p = jnp.exp(s)
        p = p * pl.reciprocal(jnp.sum(p, axis=-1, keepdims=True), approx=True)
        ctx_h = jnp.einsum('hqk,hkd->hqd',
                           p.astype(MATMUL_DTYPE), vh.astype(MATMUL_DTYPE),
                           preferred_element_type=jnp.float32)  # [NH, T, HD]

        # -- concat heads along lanes, ONE output-projection matmul -----------
        ctx = jnp.concatenate([ctx_h[h] for h in range(NH)], axis=-1)  # [T, H]
        attn = _mm(ctx, wo_ref[l]) + bo_ref[l]

        h1 = _layernorm(x + attn, g1_ref[l], be1_ref[l])

        # -- FFN ---------------------------------------------------------------
        ff = _mm(h1, w1_ref[l]) + b1_ref[l]
        # TODO(synk): HF BERT uses exact (erf) GELU; tanh approximation kept
        # (erf lowering in-kernel is not guaranteed; tanh maps to the EUP).
        ff = jax.nn.gelu(ff, approximate=True)
        ff = _mm(ff, w2_ref[l]) + b2_ref[l]

        x = _layernorm(h1 + ff, g2_ref[l], be2_ref[l])

    # -- classifier on the CLS token of every batch element (rows 0, S, 2S, ..)
    cls = jnp.concatenate([x[b * seq:b * seq + 1, :] for b in range(batch)],
                          axis=0)                            # [B, H]
    out_ref[...] = _mm(cls, clsw_ref[...]) + clsb_ref[...]   # [B, NUM_CLASSES]


# ---- deterministic parameter init (synthetic, BERT-like shapes) --------------
def init_params(key):
    std = 0.02
    keys = iter(jax.random.split(key, 64))

    def n(shape):
        return jax.random.normal(next(keys), shape, jnp.float32) * std

    emb = {
        'word': n((VOCAB, H)),
        'pos':  n((MAX_POS, H)),
        'type': n((2, H)),
        'ln_g': jnp.ones((H,), jnp.float32),
        'ln_b': jnp.zeros((H,), jnp.float32),
    }
    layers = []
    for _ in range(NLAYERS):
        layers.append({
            'wq': n((H, H)), 'bq': jnp.zeros((1, H), jnp.float32),
            'wk': n((H, H)), 'bk': jnp.zeros((1, H), jnp.float32),
            'wv': n((H, H)), 'bv': jnp.zeros((1, H), jnp.float32),
            'wo': n((H, H)), 'bo': jnp.zeros((1, H), jnp.float32),
            'ln1_g': jnp.ones((1, H), jnp.float32),
            'ln1_b': jnp.zeros((1, H), jnp.float32),
            'w1': n((H, FFN)), 'b1': jnp.zeros((1, FFN), jnp.float32),
            'w2': n((FFN, H)), 'b2': jnp.zeros((1, H), jnp.float32),
            'ln2_g': jnp.ones((1, H), jnp.float32),
            'ln2_b': jnp.zeros((1, H), jnp.float32),
        })
    cls_w = n((H, NUM_CLASSES))
    cls_b = jnp.zeros((1, NUM_CLASSES), jnp.float32)
    return {'emb': emb, 'layers': layers, 'cls_w': cls_w, 'cls_b': cls_b}


# ---- full forward (== LinkClassifier.forward) --------------------------------
def link_classifier_forward(input_ids, attention_mask, params):
    B, S = input_ids.shape
    T = B * S
    emb = params['emb']

    # plain-JAX glue: embedding gather (not hot path) + [T,T] additive bias
    x = (emb['word'][input_ids]
         + emb['pos'][:S][None, :, :]
         + emb['type'][0][None, None, :]).astype(jnp.float32)
    x2d = x.reshape(T, H)

    key_mask = attention_mask.astype(jnp.float32).reshape(T)           # [T]
    tok_batch = jnp.arange(T, dtype=jnp.int32) // S
    same_batch = (tok_batch[:, None] == tok_batch[None, :]).astype(jnp.float32)
    keep = same_batch * key_mask[None, :]
    attn_bias = (1.0 - keep) * -10000.0                                 # [T, T]

    # one-off weight packing / stacking (glue)
    L = params['layers']
    wqkv = jnp.stack([jnp.concatenate([lp['wq'], lp['wk'], lp['wv']], axis=1)
                      for lp in L])                                     # [NL, H, 3H]
    bqkv = jnp.stack([jnp.concatenate([lp['bq'], lp['bk'], lp['bv']], axis=1)
                      for lp in L])                                     # [NL, 1, 3H]

    def stack(name):
        return jnp.stack([lp[name] for lp in L])

    operands = (x2d, attn_bias,
                emb['ln_g'].reshape(1, H), emb['ln_b'].reshape(1, H),
                wqkv, bqkv, stack('wo'), stack('bo'),
                stack('ln1_g'), stack('ln1_b'),
                stack('w1'), stack('b1'), stack('w2'), stack('b2'),
                stack('ln2_g'), stack('ln2_b'),
                params['cls_w'], params['cls_b'])

    vmem = pl.BlockSpec(memory_space=pltpu.MemorySpace.VMEM)
    return pl.pallas_call(
        functools.partial(fused_forward_kernel, batch=B, seq=S),
        out_shape=jax.ShapeDtypeStruct((B, NUM_CLASSES), jnp.float32),
        in_specs=[vmem] * len(operands),
        out_specs=vmem,
    )(*operands)


if __name__ == "__main__":
    key = jax.random.PRNGKey(0)
    pkey, ikey = jax.random.split(key)
    params = init_params(pkey)

    B, S = 2, 8
    input_ids = jax.random.randint(ikey, (B, S), 0, VOCAB, dtype=jnp.int32)
    attention_mask = jnp.array([[1, 1, 1, 1, 1, 1, 1, 1],
                                [1, 1, 1, 1, 1, 1, 0, 0]], dtype=jnp.int32)

    logits = link_classifier_forward(input_ids, attention_mask, params)
    jax.block_until_ready(logits)
    assert logits.shape == (B, NUM_CLASSES)
    print("KERNEL_OK")
</pallas_src>

<mosaic_0001>
module attributes {stable_mosaic.version = 11 : i64} {
  func.func @fused_forward_kernel(%arg0: memref<16x32xf32, #tpu.memory_space<vmem>>, %arg1: memref<16x16xf32, #tpu.memory_space<vmem>>, %arg2: memref<1x32xf32, #tpu.memory_space<vmem>>, %arg3: memref<1x32xf32, #tpu.memory_space<vmem>>, %arg4: memref<2x32x96xf32, #tpu.memory_space<vmem>>, %arg5: memref<2x1x96xf32, #tpu.memory_space<vmem>>, %arg6: memref<2x32x32xf32, #tpu.memory_space<vmem>>, %arg7: memref<2x1x32xf32, #tpu.memory_space<vmem>>, %arg8: memref<2x1x32xf32, #tpu.memory_space<vmem>>, %arg9: memref<2x1x32xf32, #tpu.memory_space<vmem>>, %arg10: memref<2x32x64xf32, #tpu.memory_space<vmem>>, %arg11: memref<2x1x64xf32, #tpu.memory_space<vmem>>, %arg12: memref<2x64x32xf32, #tpu.memory_space<vmem>>, %arg13: memref<2x1x32xf32, #tpu.memory_space<vmem>>, %arg14: memref<2x1x32xf32, #tpu.memory_space<vmem>>, %arg15: memref<2x1x32xf32, #tpu.memory_space<vmem>>, %arg16: memref<32x2xf32, #tpu.memory_space<vmem>>, %arg17: memref<1x2xf32, #tpu.memory_space<vmem>>, %arg18: memref<2x2xf32, #tpu.memory_space<vmem>>) attributes {dimension_semantics = [], scalar_prefetch = 0 : i64, scratch_operands = 0 : i64, tpu.core_type = #tpu.core_type<tc>} {
    %c0 = arith.constant 0 : index
    %c0_0 = arith.constant 0 : index
    %0 = vector.load %arg0[%c0, %c0_0] : memref<16x32xf32, #tpu.memory_space<vmem>>, vector<16x32xf32>
    %c0_1 = arith.constant 0 : index
    %c0_2 = arith.constant 0 : index
    %1 = vector.load %arg2[%c0_1, %c0_2] : memref<1x32xf32, #tpu.memory_space<vmem>>, vector<1x32xf32>
    %c0_3 = arith.constant 0 : index
    %c0_4 = arith.constant 0 : index
    %2 = vector.load %arg3[%c0_3, %c0_4] : memref<1x32xf32, #tpu.memory_space<vmem>>, vector<1x32xf32>
    %cst = arith.constant dense<0.000000e+00> : vector<16xf32>
    %3 = vector.multi_reduction <add>, %0, %cst [1] : vector<16x32xf32> to vector<16xf32>
    %4 = vector.shape_cast %3 : vector<16xf32> to vector<16x1xf32>
    %cst_5 = arith.constant 3.200000e+01 : f32
    %5 = vector.broadcast %cst_5 : f32 to vector<16x1xf32>
    %6 = arith.divf %4, %5 : vector<16x1xf32>
    %7 = vector.broadcast %6 : vector<16x1xf32> to vector<16x32xf32>
    %8 = arith.subf %0, %7 : vector<16x32xf32>
    %9 = arith.mulf %8, %8 : vector<16x32xf32>
    %cst_6 = arith.constant dense<0.000000e+00> : vector<16xf32>
    %10 = vector.multi_reduction <add>, %9, %cst_6 [1] : vector<16x32xf32> to vector<16xf32>
    %11 = vector.shape_cast %10 : vector<16xf32> to vector<16x1xf32>
    %cst_7 = arith.constant 3.200000e+01 : f32
    %12 = vector.broadcast %cst_7 : f32 to vector<16x1xf32>
    %13 = arith.divf %11, %12 : vector<16x1xf32>
    %14 = vector.broadcast %6 : vector<16x1xf32> to vector<16x32xf32>
    %15 = arith.subf %0, %14 : vector<16x32xf32>
    %cst_8 = arith.constant 9.99999996E-13 : f32
    %16 = vector.broadcast %cst_8 : f32 to vector<16x1xf32>
    %17 = arith.addf %13, %16 : vector<16x1xf32>
    %18 = math.rsqrt %17 : vector<16x1xf32>
    %19 = vector.broadcast %18 : vector<16x1xf32> to vector<16x32xf32>
    %20 = arith.mulf %15, %19 : vector<16x32xf32>
    %21 = vector.broadcast %1 : vector<1x32xf32> to vector<16x32xf32>
    %22 = arith.mulf %20, %21 : vector<16x32xf32>
    %23 = vector.broadcast %2 : vector<1x32xf32> to vector<16x32xf32>
    %24 = arith.addf %22, %23 : vector<16x32xf32>
    %c0_9 = arith.constant 0 : index
    %c0_10 = arith.constant 0 : index
    %25 = vector.load %arg1[%c0_9, %c0_10] : memref<16x16xf32, #tpu.memory_space<vmem>>, vector<16x16xf32>
    %c0_11 = arith.constant 0 : index
    %c0_12 = arith.constant 0 : index
    %c0_13 = arith.constant 0 : index
    %26 = vector.load %arg4[%c0_11, %c0_12, %c0_13] : memref<2x32x96xf32, #tpu.memory_space<vmem>>, vector<1x32x96xf32>
    %27 = vector.shape_cast %26 : vector<1x32x96xf32> to vector<32x96xf32>
    %cst_14 = arith.constant dense<0.000000e+00> : vector<16x96xf32>
    %28 = tpu.matmul %24, %27, %cst_14 {dimension_numbers = #tpu.dot_dimension_numbers<[1], [0], [0], [1], [0, 0, 1, 1], [], []>} : vector<16x32xf32>, vector<32x96xf32>, vector<16x96xf32> -> vector<16x96xf32>
    %c0_15 = arith.constant 0 : index
    %c0_16 = arith.constant 0 : index
    %c0_17 = arith.constant 0 : index
    %29 = vector.load %arg5[%c0_15, %c0_16, %c0_17] : memref<2x1x96xf32, #tpu.memory_space<vmem>>, vector<1x1x96xf32>
    %30 = vector.shape_cast %29 : vector<1x1x96xf32> to vector<1x96xf32>
    %31 = vector.broadcast %30 : vector<1x96xf32> to vector<16x96xf32>
    %32 = arith.addf %28, %31 : vector<16x96xf32>
    %33 = vector.extract_strided_slice %32 {offsets = [0, 0], sizes = [16, 32], strides = [1, 1]} : vector<16x96xf32> to vector<16x32xf32>
    %cst_18 = arith.constant 0.353553385 : f32
    %34 = vector.broadcast %cst_18 : f32 to vector<16x32xf32>
    %35 = arith.mulf %33, %34 : vector<16x32xf32>
    %36 = vector.extract_strided_slice %32 {offsets = [0, 32], sizes = [16, 32], strides = [1, 1]} : vector<16x96xf32> to vector<16x32xf32>
    %37 = vector.extract_strided_slice %32 {offsets = [0, 64], sizes = [16, 32], strides = [1, 1]} : vector<16x96xf32> to vector<16x32xf32>
    %38 = vector.extract_strided_slice %35 {offsets = [0, 0], sizes = [16, 8], strides = [1, 1]} : vector<16x32xf32> to vector<16x8xf32>
    %39 = vector.extract_strided_slice %35 {offsets = [0, 8], sizes = [16, 8], strides = [1, 1]} : vector<16x32xf32> to vector<16x8xf32>
    %40 = vector.extract_strided_slice %35 {offsets = [0, 16], sizes = [16, 8], strides = [1, 1]} : vector<16x32xf32> to vector<16x8xf32>
    %41 = vector.extract_strided_slice %35 {offsets = [0, 24], sizes = [16, 8], strides = [1, 1]} : vector<16x32xf32> to vector<16x8xf32>
    %42 = vector.shape_cast %38 : vector<16x8xf32> to vector<1x16x8xf32>
    %43 = vector.shape_cast %39 : vector<16x8xf32> to vector<1x16x8xf32>
    %44 = vector.shape_cast %40 : vector<16x8xf32> to vector<1x16x8xf32>
    %45 = vector.shape_cast %41 : vector<16x8xf32> to vector<1x16x8xf32>
    %46 = tpu.concatenate %42, %43, %44, %45 in 0 : vector<1x16x8xf32>, vector<1x16x8xf32>, vector<1x16x8xf32>, vector<1x16x8xf32> -> vector<4x16x8xf32>
    %47 = vector.extract_strided_slice %36 {offsets = [0, 0], sizes = [16, 8], strides = [1, 1]} : vector<16x32xf32> to vector<16x8xf32>
    %48 = vector.extract_strided_slice %36 {offsets = [0, 8], sizes = [16, 8], strides = [1, 1]} : vector<16x32xf32> to vector<16x8xf32>
    %49 = vector.extract_strided_slice %36 {offsets = [0, 16], sizes = [16, 8], strides = [1, 1]} : vector<16x32xf32> to vector<16x8xf32>
    %50 = vector.extract_strided_slice %36 {offsets = [0, 24], sizes = [16, 8], strides = [1, 1]} : vector<16x32xf32> to vector<16x8xf32>
    %51 = vector.shape_cast %47 : vector<16x8xf32> to vector<1x16x8xf32>
    %52 = vector.shape_cast %48 : vector<16x8xf32> to vector<1x16x8xf32>
    %53 = vector.shape_cast %49 : vector<16x8xf32> to vector<1x16x8xf32>
    %54 = vector.shape_cast %50 : vector<16x8xf32> to vector<1x16x8xf32>
    %55 = tpu.concatenate %51, %52, %53, %54 in 0 : vector<1x16x8xf32>, vector<1x16x8xf32>, vector<1x16x8xf32>, vector<1x16x8xf32> -> vector<4x16x8xf32>
    %56 = vector.extract_strided_slice %37 {offsets = [0, 0], sizes = [16, 8], strides = [1, 1]} : vector<16x32xf32> to vector<16x8xf32>
    %57 = vector.extract_strided_slice %37 {offsets = [0, 8], sizes = [16, 8], strides = [1, 1]} : vector<16x32xf32> to vector<16x8xf32>
    %58 = vector.extract_strided_slice %37 {offsets = [0, 16], sizes = [16, 8], strides = [1, 1]} : vector<16x32xf32> to vector<16x8xf32>
    %59 = vector.extract_strided_slice %37 {offsets = [0, 24], sizes = [16, 8], strides = [1, 1]} : vector<16x32xf32> to vector<16x8xf32>
    %60 = vector.shape_cast %56 : vector<16x8xf32> to vector<1x16x8xf32>
    %61 = vector.shape_cast %57 : vector<16x8xf32> to vector<1x16x8xf32>
    %62 = vector.shape_cast %58 : vector<16x8xf32> to vector<1x16x8xf32>
    %63 = vector.shape_cast %59 : vector<16x8xf32> to vector<1x16x8xf32>
    %64 = tpu.concatenate %60, %61, %62, %63 in 0 : vector<1x16x8xf32>, vector<1x16x8xf32>, vector<1x16x8xf32>, vector<1x16x8xf32> -> vector<4x16x8xf32>
    "tpu.trace_start"() <{level = 10 : i32, message = "hqd,hkd->hqk"}> : () -> ()
    %cst_19 = arith.constant dense<0.000000e+00> : vector<4x16x16xf32>
    %65 = tpu.matmul %46, %55, %cst_19 {dimension_numbers = #tpu.dot_dimension_numbers<[2], [2], [1], [1], [0, 0, 0, 1, 1, 1], [0], [0]>} : vector<4x16x8xf32>, vector<4x16x8xf32>, vector<4x16x16xf32> -> vector<4x16x16xf32>
    "tpu.trace_stop"() : () -> ()
    %66 = vector.shape_cast %25 : vector<16x16xf32> to vector<1x16x16xf32>
    %67 = vector.broadcast %66 : vector<1x16x16xf32> to vector<4x16x16xf32>
    %68 = arith.addf %65, %67 : vector<4x16x16xf32>
    %cst_20 = arith.constant dense<0xFF800000> : vector<4x16xf32>
    %69 = vector.multi_reduction <maximumf>, %68, %cst_20 [2] : vector<4x16x16xf32> to vector<4x16xf32>
    %70 = vector.shape_cast %69 : vector<4x16xf32> to vector<4x16x1xf32>
    %71 = vector.broadcast %70 : vector<4x16x1xf32> to vector<4x16x16xf32>
    %72 = arith.subf %68, %71 : vector<4x16x16xf32>
    %73 = math.exp %72 : vector<4x16x16xf32>
    %cst_21 = arith.constant dense<0.000000e+00> : vector<4x16xf32>
    %74 = vector.multi_reduction <add>, %73, %cst_21 [2] : vector<4x16x16xf32> to vector<4x16xf32>
    %75 = vector.shape_cast %74 : vector<4x16xf32> to vector<4x16x1xf32>
    %76 = tpu.reciprocal %75 {approx = true} : vector<4x16x1xf32> -> vector<4x16x1xf32>
    %77 = vector.broadcast %76 : vector<4x16x1xf32> to vector<4x16x16xf32>
    %78 = arith.mulf %73, %77 : vector<4x16x16xf32>
    "tpu.trace_start"() <{level = 10 : i32, message = "hqk,hkd->hqd"}> : () -> ()
    %cst_22 = arith.constant dense<0.000000e+00> : vector<4x16x8xf32>
    %79 = tpu.matmul %78, %64, %cst_22 {dimension_numbers = #tpu.dot_dimension_numbers<[2], [1], [1], [2], [0, 0, 0, 1, 1, 2], [0], [0]>} : vector<4x16x16xf32>, vector<4x16x8xf32>, vector<4x16x8xf32> -> vector<4x16x8xf32>
    "tpu.trace_stop"() : () -> ()
    %80 = vector.extract_strided_slice %79 {offsets = [0, 0, 0], sizes = [1, 16, 8], strides = [1, 1, 1]} : vector<4x16x8xf32> to vector<1x16x8xf32>
    %81 = vector.shape_cast %80 : vector<1x16x8xf32> to vector<16x8xf32>
    %82 = vector.extract_strided_slice %79 {offsets = [1, 0, 0], sizes = [1, 16, 8], strides = [1, 1, 1]} : vector<4x16x8xf32> to vector<1x16x8xf32>
    %83 = vector.shape_cast %82 : vector<1x16x8xf32> to vector<16x8xf32>
    %84 = vector.extract_strided_slice %79 {offsets = [2, 0, 0], sizes = [1, 16, 8], strides = [1, 1, 1]} : vector<4x16x8xf32> to vector<1x16x8xf32>
    %85 = vector.shape_cast %84 : vector<1x16x8xf32> to vector<16x8xf32>
    %86 = vector.extract_strided_slice %79 {offsets = [3, 0, 0], sizes = [1, 16, 8], strides = [1, 1, 1]} : vector<4x16x8xf32> to vector<1x16x8xf32>
    %87 = vector.shape_cast %86 : vector<1x16x8xf32> to vector<16x8xf32>
    %88 = tpu.concatenate %81, %83, %85, %87 in 1 : vector<16x8xf32>, vector<16x8xf32>, vector<16x8xf32>, vector<16x8xf32> -> vector<16x32xf32>
    %c0_23 = arith.constant 0 : index
    %c0_24 = arith.constant 0 : index
    %c0_25 = arith.constant 0 : index
    %89 = vector.load %arg6[%c0_23, %c0_24, %c0_25] : memref<2x32x32xf32, #tpu.memory_space<vmem>>, vector<1x32x32xf32>
    %90 = vector.shape_cast %89 : vector<1x32x32xf32> to vector<32x32xf32>
    %cst_26 = arith.constant dense<0.000000e+00> : vector<16x32xf32>
    %91 = tpu.matmul %88, %90, %cst_26 {dimension_numbers = #tpu.dot_dimension_numbers<[1], [0], [0], [1], [0, 0, 1, 1], [], []>} : vector<16x32xf32>, vector<32x32xf32>, vector<16x32xf32> -> vector<16x32xf32>
    %c0_27 = arith.constant 0 : index
    %c0_28 = arith.constant 0 : index
    %c0_29 = arith.constant 0 : index
    %92 = vector.load %arg7[%c0_27, %c0_28, %c0_29] : memref<2x1x32xf32, #tpu.memory_space<vmem>>, vector<1x1x32xf32>
    %93 = vector.shape_cast %92 : vector<1x1x32xf32> to vector<1x32xf32>
    %94 = vector.broadcast %93 : vector<1x32xf32> to vector<16x32xf32>
    %95 = arith.addf %91, %94 : vector<16x32xf32>
    %96 = arith.addf %24, %95 : vector<16x32xf32>
    %c0_30 = arith.constant 0 : index
    %c0_31 = arith.constant 0 : index
    %c0_32 = arith.constant 0 : index
    %97 = vector.load %arg8[%c0_30, %c0_31, %c0_32] : memref<2x1x32xf32, #tpu.memory_space<vmem>>, vector<1x1x32xf32>
    %98 = vector.shape_cast %97 : vector<1x1x32xf32> to vector<1x32xf32>
    %c0_33 = arith.constant 0 : index
    %c0_34 = arith.constant 0 : index
    %c0_35 = arith.constant 0 : index
    %99 = vector.load %arg9[%c0_33, %c0_34, %c0_35] : memref<2x1x32xf32, #tpu.memory_space<vmem>>, vector<1x1x32xf32>
    %100 = vector.shape_cast %99 : vector<1x1x32xf32> to vector<1x32xf32>
    %cst_36 = arith.constant dense<0.000000e+00> : vector<16xf32>
    %101 = vector.multi_reduction <add>, %96, %cst_36 [1] : vector<16x32xf32> to vector<16xf32>
    %102 = vector.shape_cast %101 : vector<16xf32> to vector<16x1xf32>
    %cst_37 = arith.constant 3.200000e+01 : f32
    %103 = vector.broadcast %cst_37 : f32 to vector<16x1xf32>
    %104 = arith.divf %102, %103 : vector<16x1xf32>
    %105 = vector.broadcast %104 : vector<16x1xf32> to vector<16x32xf32>
    %106 = arith.subf %96, %105 : vector<16x32xf32>
    %107 = arith.mulf %106, %106 : vector<16x32xf32>
    %cst_38 = arith.constant dense<0.000000e+00> : vector<16xf32>
    %108 = vector.multi_reduction <add>, %107, %cst_38 [1] : vector<16x32xf32> to vector<16xf32>
    %109 = vector.shape_cast %108 : vector<16xf32> to vector<16x1xf32>
    %cst_39 = arith.constant 3.200000e+01 : f32
    %110 = vector.broadcast %cst_39 : f32 to vector<16x1xf32>
    %111 = arith.divf %109, %110 : vector<16x1xf32>
    %112 = vector.broadcast %104 : vector<16x1xf32> to vector<16x32xf32>
    %113 = arith.subf %96, %112 : vector<16x32xf32>
    %cst_40 = arith.constant 9.99999996E-13 : f32
    %114 = vector.broadcast %cst_40 : f32 to vector<16x1xf32>
    %115 = arith.addf %111, %114 : vector<16x1xf32>
    %116 = math.rsqrt %115 : vector<16x1xf32>
    %117 = vector.broadcast %116 : vector<16x1xf32> to vector<16x32xf32>
    %118 = arith.mulf %113, %117 : vector<16x32xf32>
    %119 = vector.broadcast %98 : vector<1x32xf32> to vector<16x32xf32>
    %120 = arith.mulf %118, %119 : vector<16x32xf32>
    %121 = vector.broadcast %100 : vector<1x32xf32> to vector<16x32xf32>
    %122 = arith.addf %120, %121 : vector<16x32xf32>
    %c0_41 = arith.constant 0 : index
    %c0_42 = arith.constant 0 : index
    %c0_43 = arith.constant 0 : index
    %123 = vector.load %arg10[%c0_41, %c0_42, %c0_43] : memref<2x32x64xf32, #tpu.memory_space<vmem>>, vector<1x32x64xf32>
    %124 = vector.shape_cast %123 : vector<1x32x64xf32> to vector<32x64xf32>
    %cst_44 = arith.constant dense<0.000000e+00> : vector<16x64xf32>
    %125 = tpu.matmul %122, %124, %cst_44 {dimension_numbers = #tpu.dot_dimension_numbers<[1], [0], [0], [1], [0, 0, 1, 1], [], []>} : vector<16x32xf32>, vector<32x64xf32>, vector<16x64xf32> -> vector<16x64xf32>
    %c0_45 = arith.constant 0 : index
    %c0_46 = arith.constant 0 : index
    %c0_47 = arith.constant 0 : index
    %126 = vector.load %arg11[%c0_45, %c0_46, %c0_47] : memref<2x1x64xf32, #tpu.memory_space<vmem>>, vector<1x1x64xf32>
    %127 = vector.shape_cast %126 : vector<1x1x64xf32> to vector<1x64xf32>
    %128 = vector.broadcast %127 : vector<1x64xf32> to vector<16x64xf32>
    %129 = arith.addf %125, %128 : vector<16x64xf32>
    %130 = arith.mulf %129, %129 : vector<16x64xf32>
    %131 = arith.mulf %129, %130 : vector<16x64xf32>
    %cst_48 = arith.constant 4.471500e-02 : f32
    %132 = vector.broadcast %cst_48 : f32 to vector<16x64xf32>
    %133 = arith.mulf %132, %131 : vector<16x64xf32>
    %134 = arith.addf %129, %133 : vector<16x64xf32>
    %cst_49 = arith.constant 0.797884583 : f32
    %135 = vector.broadcast %cst_49 : f32 to vector<16x64xf32>
    %136 = arith.mulf %135, %134 : vector<16x64xf32>
    %137 = math.tanh %136 : vector<16x64xf32>
    %cst_50 = arith.constant 1.000000e+00 : f32
    %138 = vector.broadcast %cst_50 : f32 to vector<16x64xf32>
    %139 = arith.addf %138, %137 : vector<16x64xf32>
    %cst_51 = arith.constant 5.000000e-01 : f32
    %140 = vector.broadcast %cst_51 : f32 to vector<16x64xf32>
    %141 = arith.mulf %140, %139 : vector<16x64xf32>
    %142 = arith.mulf %129, %141 : vector<16x64xf32>
    %c0_52 = arith.constant 0 : index
    %c0_53 = arith.constant 0 : index
    %c0_54 = arith.constant 0 : index
    %143 = vector.load %arg12[%c0_52, %c0_53, %c0_54] : memref<2x64x32xf32, #tpu.memory_space<vmem>>, vector<1x64x32xf32>
    %144 = vector.shape_cast %143 : vector<1x64x32xf32> to vector<64x32xf32>
    %cst_55 = arith.constant dense<0.000000e+00> : vector<16x32xf32>
    %145 = tpu.matmul %142, %144, %cst_55 {dimension_numbers = #tpu.dot_dimension_numbers<[1], [0], [0], [1], [0, 0, 1, 1], [], []>} : vector<16x64xf32>, vector<64x32xf32>, vector<16x32xf32> -> vector<16x32xf32>
    %c0_56 = arith.constant 0 : index
    %c0_57 = arith.constant 0 : index
    %c0_58 = arith.constant 0 : index
    %146 = vector.load %arg13[%c0_56, %c0_57, %c0_58] : memref<2x1x32xf32, #tpu.memory_space<vmem>>, vector<1x1x32xf32>
    %147 = vector.shape_cast %146 : vector<1x1x32xf32> to vector<1x32xf32>
    %148 = vector.broadcast %147 : vector<1x32xf32> to vector<16x32xf32>
    %149 = arith.addf %145, %148 : vector<16x32xf32>
    %150 = arith.addf %122, %149 : vector<16x32xf32>
    %c0_59 = arith.constant 0 : index
    %c0_60 = arith.constant 0 : index
    %c0_61 = arith.constant 0 : index
    %151 = vector.load %arg14[%c0_59, %c0_60, %c0_61] : memref<2x1x32xf32, #tpu.memory_space<vmem>>, vector<1x1x32xf32>
    %152 = vector.shape_cast %151 : vector<1x1x32xf32> to vector<1x32xf32>
    %c0_62 = arith.constant 0 : index
    %c0_63 = arith.constant 0 : index
    %c0_64 = arith.constant 0 : index
    %153 = vector.load %arg15[%c0_62, %c0_63, %c0_64] : memref<2x1x32xf32, #tpu.memory_space<vmem>>, vector<1x1x32xf32>
    %154 = vector.shape_cast %153 : vector<1x1x32xf32> to vector<1x32xf32>
    %cst_65 = arith.constant dense<0.000000e+00> : vector<16xf32>
    %155 = vector.multi_reduction <add>, %150, %cst_65 [1] : vector<16x32xf32> to vector<16xf32>
    %156 = vector.shape_cast %155 : vector<16xf32> to vector<16x1xf32>
    %cst_66 = arith.constant 3.200000e+01 : f32
    %157 = vector.broadcast %cst_66 : f32 to vector<16x1xf32>
    %158 = arith.divf %156, %157 : vector<16x1xf32>
    %159 = vector.broadcast %158 : vector<16x1xf32> to vector<16x32xf32>
    %160 = arith.subf %150, %159 : vector<16x32xf32>
    %161 = arith.mulf %160, %160 : vector<16x32xf32>
    %cst_67 = arith.constant dense<0.000000e+00> : vector<16xf32>
    %162 = vector.multi_reduction <add>, %161, %cst_67 [1] : vector<16x32xf32> to vector<16xf32>
    %163 = vector.shape_cast %162 : vector<16xf32> to vector<16x1xf32>
    %cst_68 = arith.constant 3.200000e+01 : f32
    %164 = vector.broadcast %cst_68 : f32 to vector<16x1xf32>
    %165 = arith.divf %163, %164 : vector<16x1xf32>
    %166 = vector.broadcast %158 : vector<16x1xf32> to vector<16x32xf32>
    %167 = arith.subf %150, %166 : vector<16x32xf32>
    %cst_69 = arith.constant 9.99999996E-13 : f32
    %168 = vector.broadcast %cst_69 : f32 to vector<16x1xf32>
    %169 = arith.addf %165, %168 : vector<16x1xf32>
    %170 = math.rsqrt %169 : vector<16x1xf32>
    %171 = vector.broadcast %170 : vector<16x1xf32> to vector<16x32xf32>
    %172 = arith.mulf %167, %171 : vector<16x32xf32>
    %173 = vector.broadcast %152 : vector<1x32xf32> to vector<16x32xf32>
    %174 = arith.mulf %172, %173 : vector<16x32xf32>
    %175 = vector.broadcast %154 : vector<1x32xf32> to vector<16x32xf32>
    %176 = arith.addf %174, %175 : vector<16x32xf32>
    %c1 = arith.constant 1 : index
    %c0_70 = arith.constant 0 : index
    %c0_71 = arith.constant 0 : index
    %177 = vector.load %arg4[%c1, %c0_70, %c0_71] : memref<2x32x96xf32, #tpu.memory_space<vmem>>, vector<1x32x96xf32>
    %178 = vector.shape_cast %177 : vector<1x32x96xf32> to vector<32x96xf32>
    %cst_72 = arith.constant dense<0.000000e+00> : vector<16x96xf32>
    %179 = tpu.matmul %176, %178, %cst_72 {dimension_numbers = #tpu.dot_dimension_numbers<[1], [0], [0], [1], [0, 0, 1, 1], [], []>} : vector<16x32xf32>, vector<32x96xf32>, vector<16x96xf32> -> vector<16x96xf32>
    %c1_73 = arith.constant 1 : index
    %c0_74 = arith.constant 0 : index
    %c0_75 = arith.constant 0 : index
    %180 = vector.load %arg5[%c1_73, %c0_74, %c0_75] : memref<2x1x96xf32, #tpu.memory_space<vmem>>, vector<1x1x96xf32>
    %181 = vector.shape_cast %180 : vector<1x1x96xf32> to vector<1x96xf32>
    %182 = vector.broadcast %181 : vector<1x96xf32> to vector<16x96xf32>
    %183 = arith.addf %179, %182 : vector<16x96xf32>
    %184 = vector.extract_strided_slice %183 {offsets = [0, 0], sizes = [16, 32], strides = [1, 1]} : vector<16x96xf32> to vector<16x32xf32>
    %cst_76 = arith.constant 0.353553385 : f32
    %185 = vector.broadcast %cst_76 : f32 to vector<16x32xf32>
    %186 = arith.mulf %184, %185 : vector<16x32xf32>
    %187 = vector.extract_strided_slice %183 {offsets = [0, 32], sizes = [16, 32], strides = [1, 1]} : vector<16x96xf32> to vector<16x32xf32>
    %188 = vector.extract_strided_slice %183 {offsets = [0, 64], sizes = [16, 32], strides = [1, 1]} : vector<16x96xf32> to vector<16x32xf32>
    %189 = vector.extract_strided_slice %186 {offsets = [0, 0], sizes = [16, 8], strides = [1, 1]} : vector<16x32xf32> to vector<16x8xf32>
    %190 = vector.extract_strided_slice %186 {offsets = [0, 8], sizes = [16, 8], strides = [1, 1]} : vector<16x32xf32> to vector<16x8xf32>
    %191 = vector.extract_strided_slice %186 {offsets = [0, 16], sizes = [16, 8], strides = [1, 1]} : vector<16x32xf32> to vector<16x8xf32>
    %192 = vector.extract_strided_slice %186 {offsets = [0, 24], sizes = [16, 8], strides = [1, 1]} : vector<16x32xf32> to vector<16x8xf32>
    %193 = vector.shape_cast %189 : vector<16x8xf32> to vector<1x16x8xf32>
    %194 = vector.shape_cast %190 : vector<16x8xf32> to vector<1x16x8xf32>
    %195 = vector.shape_cast %191 : vector<16x8xf32> to vector<1x16x8xf32>
    %196 = vector.shape_cast %192 : vector<16x8xf32> to vector<1x16x8xf32>
    %197 = tpu.concatenate %193, %194, %195, %196 in 0 : vector<1x16x8xf32>, vector<1x16x8xf32>, vector<1x16x8xf32>, vector<1x16x8xf32> -> vector<4x16x8xf32>
    %198 = vector.extract_strided_slice %187 {offsets = [0, 0], sizes = [16, 8], strides = [1, 1]} : vector<16x32xf32> to vector<16x8xf32>
    %199 = vector.extract_strided_slice %187 {offsets = [0, 8], sizes = [16, 8], strides = [1, 1]} : vector<16x32xf32> to vector<16x8xf32>
    %200 = vector.extract_strided_slice %187 {offsets = [0, 16], sizes = [16, 8], strides = [1, 1]} : vector<16x32xf32> to vector<16x8xf32>
    %201 = vector.extract_strided_slice %187 {offsets = [0, 24], sizes = [16, 8], strides = [1, 1]} : vector<16x32xf32> to vector<16x8xf32>
    %202 = vector.shape_cast %198 : vector<16x8xf32> to vector<1x16x8xf32>
    %203 = vector.shape_cast %199 : vector<16x8xf32> to vector<1x16x8xf32>
    %204 = vector.shape_cast %200 : vector<16x8xf32> to vector<1x16x8xf32>
    %205 = vector.shape_cast %201 : vector<16x8xf32> to vector<1x16x8xf32>
    %206 = tpu.concatenate %202, %203, %204, %205 in 0 : vector<1x16x8xf32>, vector<1x16x8xf32>, vector<1x16x8xf32>, vector<1x16x8xf32> -> vector<4x16x8xf32>
    %207 = vector.extract_strided_slice %188 {offsets = [0, 0], sizes = [16, 8], strides = [1, 1]} : vector<16x32xf32> to vector<16x8xf32>
    %208 = vector.extract_strided_slice %188 {offsets = [0, 8], sizes = [16, 8], strides = [1, 1]} : vector<16x32xf32> to vector<16x8xf32>
    %209 = vector.extract_strided_slice %188 {offsets = [0, 16], sizes = [16, 8], strides = [1, 1]} : vector<16x32xf32> to vector<16x8xf32>
    %210 = vector.extract_strided_slice %188 {offsets = [0, 24], sizes = [16, 8], strides = [1, 1]} : vector<16x32xf32> to vector<16x8xf32>
    %211 = vector.shape_cast %207 : vector<16x8xf32> to vector<1x16x8xf32>
    %212 = vector.shape_cast %208 : vector<16x8xf32> to vector<1x16x8xf32>
    %213 = vector.shape_cast %209 : vector<16x8xf32> to vector<1x16x8xf32>
    %214 = vector.shape_cast %210 : vector<16x8xf32> to vector<1x16x8xf32>
    %215 = tpu.concatenate %211, %212, %213, %214 in 0 : vector<1x16x8xf32>, vector<1x16x8xf32>, vector<1x16x8xf32>, vector<1x16x8xf32> -> vector<4x16x8xf32>
    "tpu.trace_start"() <{level = 10 : i32, message = "hqd,hkd->hqk"}> : () -> ()
    %cst_77 = arith.constant dense<0.000000e+00> : vector<4x16x16xf32>
    %216 = tpu.matmul %197, %206, %cst_77 {dimension_numbers = #tpu.dot_dimension_numbers<[2], [2], [1], [1], [0, 0, 0, 1, 1, 1], [0], [0]>} : vector<4x16x8xf32>, vector<4x16x8xf32>, vector<4x16x16xf32> -> vector<4x16x16xf32>
    "tpu.trace_stop"() : () -> ()
    %217 = vector.shape_cast %25 : vector<16x16xf32> to vector<1x16x16xf32>
    %218 = vector.broadcast %217 : vector<1x16x16xf32> to vector<4x16x16xf32>
    %219 = arith.addf %216, %218 : vector<4x16x16xf32>
    %cst_78 = arith.constant dense<0xFF800000> : vector<4x16xf32>
    %220 = vector.multi_reduction <maximumf>, %219, %cst_78 [2] : vector<4x16x16xf32> to vector<4x16xf32>
    %221 = vector.shape_cast %220 : vector<4x16xf32> to vector<4x16x1xf32>
    %222 = vector.broadcast %221 : vector<4x16x1xf32> to vector<4x16x16xf32>
    %223 = arith.subf %219, %222 : vector<4x16x16xf32>
    %224 = math.exp %223 : vector<4x16x16xf32>
    %cst_79 = arith.constant dense<0.000000e+00> : vector<4x16xf32>
    %225 = vector.multi_reduction <add>, %224, %cst_79 [2] : vector<4x16x16xf32> to vector<4x16xf32>
    %226 = vector.shape_cast %225 : vector<4x16xf32> to vector<4x16x1xf32>
    %227 = tpu.reciprocal %226 {approx = true} : vector<4x16x1xf32> -> vector<4x16x1xf32>
    %228 = vector.broadcast %227 : vector<4x16x1xf32> to vector<4x16x16xf32>
    %229 = arith.mulf %224, %228 : vector<4x16x16xf32>
    "tpu.trace_start"() <{level = 10 : i32, message = "hqk,hkd->hqd"}> : () -> ()
    %cst_80 = arith.constant dense<0.000000e+00> : vector<4x16x8xf32>
    %230 = tpu.matmul %229, %215, %cst_80 {dimension_numbers = #tpu.dot_dimension_numbers<[2], [1], [1], [2], [0, 0, 0, 1, 1, 2], [0], [0]>} : vector<4x16x16xf32>, vector<4x16x8xf32>, vector<4x16x8xf32> -> vector<4x16x8xf32>
    "tpu.trace_stop"() : () -> ()
    %231 = vector.extract_strided_slice %230 {offsets = [0, 0, 0], sizes = [1, 16, 8], strides = [1, 1, 1]} : vector<4x16x8xf32> to vector<1x16x8xf32>
    %232 = vector.shape_cast %231 : vector<1x16x8xf32> to vector<16x8xf32>
    %233 = vector.extract_strided_slice %230 {offsets = [1, 0, 0], sizes = [1, 16, 8], strides = [1, 1, 1]} : vector<4x16x8xf32> to vector<1x16x8xf32>
    %234 = vector.shape_cast %233 : vector<1x16x8xf32> to vector<16x8xf32>
    %235 = vector.extract_strided_slice %230 {offsets = [2, 0, 0], sizes = [1, 16, 8], strides = [1, 1, 1]} : vector<4x16x8xf32> to vector<1x16x8xf32>
    %236 = vector.shape_cast %235 : vector<1x16x8xf32> to vector<16x8xf32>
    %237 = vector.extract_strided_slice %230 {offsets = [3, 0, 0], sizes = [1, 16, 8], strides = [1, 1, 1]} : vector<4x16x8xf32> to vector<1x16x8xf32>
    %238 = vector.shape_cast %237 : vector<1x16x8xf32> to vector<16x8xf32>
    %239 = tpu.concatenate %232, %234, %236, %238 in 1 : vector<16x8xf32>, vector<16x8xf32>, vector<16x8xf32>, vector<16x8xf32> -> vector<16x32xf32>
    %c1_81 = arith.constant 1 : index
    %c0_82 = arith.constant 0 : index
    %c0_83 = arith.constant 0 : index
    %240 = vector.load %arg6[%c1_81, %c0_82, %c0_83] : memref<2x32x32xf32, #tpu.memory_space<vmem>>, vector<1x32x32xf32>
    %241 = vector.shape_cast %240 : vector<1x32x32xf32> to vector<32x32xf32>
    %cst_84 = arith.constant dense<0.000000e+00> : vector<16x32xf32>
    %242 = tpu.matmul %239, %241, %cst_84 {dimension_numbers = #tpu.dot_dimension_numbers<[1], [0], [0], [1], [0, 0, 1, 1], [], []>} : vector<16x32xf32>, vector<32x32xf32>, vector<16x32xf32> -> vector<16x32xf32>
    %c1_85 = arith.constant 1 : index
    %c0_86 = arith.constant 0 : index
    %c0_87 = arith.constant 0 : index
    %243 = vector.load %arg7[%c1_85, %c0_86, %c0_87] : memref<2x1x32xf32, #tpu.memory_space<vmem>>, vector<1x1x32xf32>
    %244 = vector.shape_cast %243 : vector<1x1x32xf32> to vector<1x32xf32>
    %245 = vector.broadcast %244 : vector<1x32xf32> to vector<16x32xf32>
    %246 = arith.addf %242, %245 : vector<16x32xf32>
    %247 = arith.addf %176, %246 : vector<16x32xf32>
    %c1_88 = arith.constant 1 : index
    %c0_89 = arith.constant 0 : index
    %c0_90 = arith.constant 0 : index
    %248 = vector.load %arg8[%c1_88, %c0_89, %c0_90] : memref<2x1x32xf32, #tpu.memory_space<vmem>>, vector<1x1x32xf32>
    %249 = vector.shape_cast %248 : vector<1x1x32xf32> to vector<1x32xf32>
    %c1_91 = arith.constant 1 : index
    %c0_92 = arith.constant 0 : index
    %c0_93 = arith.constant 0 : index
    %250 = vector.load %arg9[%c1_91, %c0_92, %c0_93] : memref<2x1x32xf32, #tpu.memory_space<vmem>>, vector<1x1x32xf32>
    %251 = vector.shape_cast %250 : vector<1x1x32xf32> to vector<1x32xf32>
    %cst_94 = arith.constant dense<0.000000e+00> : vector<16xf32>
    %252 = vector.multi_reduction <add>, %247, %cst_94 [1] : vector<16x32xf32> to vector<16xf32>
    %253 = vector.shape_cast %252 : vector<16xf32> to vector<16x1xf32>
    %cst_95 = arith.constant 3.200000e+01 : f32
    %254 = vector.broadcast %cst_95 : f32 to vector<16x1xf32>
    %255 = arith.divf %253, %254 : vector<16x1xf32>
    %256 = vector.broadcast %255 : vector<16x1xf32> to vector<16x32xf32>
    %257 = arith.subf %247, %256 : vector<16x32xf32>
    %258 = arith.mulf %257, %257 : vector<16x32xf32>
    %cst_96 = arith.constant dense<0.000000e+00> : vector<16xf32>
    %259 = vector.multi_reduction <add>, %258, %cst_96 [1] : vector<16x32xf32> to vector<16xf32>
    %260 = vector.shape_cast %259 : vector<16xf32> to vector<16x1xf32>
    %cst_97 = arith.constant 3.200000e+01 : f32
    %261 = vector.broadcast %cst_97 : f32 to vector<16x1xf32>
    %262 = arith.divf %260, %261 : vector<16x1xf32>
    %263 = vector.broadcast %255 : vector<16x1xf32> to vector<16x32xf32>
    %264 = arith.subf %247, %263 : vector<16x32xf32>
    %cst_98 = arith.constant 9.99999996E-13 : f32
    %265 = vector.broadcast %cst_98 : f32 to vector<16x1xf32>
    %266 = arith.addf %262, %265 : vector<16x1xf32>
    %267 = math.rsqrt %266 : vector<16x1xf32>
    %268 = vector.broadcast %267 : vector<16x1xf32> to vector<16x32xf32>
    %269 = arith.mulf %264, %268 : vector<16x32xf32>
    %270 = vector.broadcast %249 : vector<1x32xf32> to vector<16x32xf32>
    %271 = arith.mulf %269, %270 : vector<16x32xf32>
    %272 = vector.broadcast %251 : vector<1x32xf32> to vector<16x32xf32>
    %273 = arith.addf %271, %272 : vector<16x32xf32>
    %c1_99 = arith.constant 1 : index
    %c0_100 = arith.constant 0 : index
    %c0_101 = arith.constant 0 : index
    %274 = vector.load %arg10[%c1_99, %c0_100, %c0_101] : memref<2x32x64xf32, #tpu.memory_space<vmem>>, vector<1x32x64xf32>
    %275 = vector.shape_cast %274 : vector<1x32x64xf32> to vector<32x64xf32>
    %cst_102 = arith.constant dense<0.000000e+00> : vector<16x64xf32>
    %276 = tpu.matmul %273, %275, %cst_102 {dimension_numbers = #tpu.dot_dimension_numbers<[1], [0], [0], [1], [0, 0, 1, 1], [], []>} : vector<16x32xf32>, vector<32x64xf32>, vector<16x64xf32> -> vector<16x64xf32>
    %c1_103 = arith.constant 1 : index
    %c0_104 = arith.constant 0 : index
    %c0_105 = arith.constant 0 : index
    %277 = vector.load %arg11[%c1_103, %c0_104, %c0_105] : memref<2x1x64xf32, #tpu.memory_space<vmem>>, vector<1x1x64xf32>
    %278 = vector.shape_cast %277 : vector<1x1x64xf32> to vector<1x64xf32>
    %279 = vector.broadcast %278 : vector<1x64xf32> to vector<16x64xf32>
    %280 = arith.addf %276, %279 : vector<16x64xf32>
    %281 = arith.mulf %280, %280 : vector<16x64xf32>
    %282 = arith.mulf %280, %281 : vector<16x64xf32>
    %cst_106 = arith.constant 4.471500e-02 : f32
    %283 = vector.broadcast %cst_106 : f32 to vector<16x64xf32>
    %284 = arith.mulf %283, %282 : vector<16x64xf32>
    %285 = arith.addf %280, %284 : vector<16x64xf32>
    %cst_107 = arith.constant 0.797884583 : f32
    %286 = vector.broadcast %cst_107 : f32 to vector<16x64xf32>
    %287 = arith.mulf %286, %285 : vector<16x64xf32>
    %288 = math.tanh %287 : vector<16x64xf32>
    %cst_108 = arith.constant 1.000000e+00 : f32
    %289 = vector.broadcast %cst_108 : f32 to vector<16x64xf32>
    %290 = arith.addf %289, %288 : vector<16x64xf32>
    %cst_109 = arith.constant 5.000000e-01 : f32
    %291 = vector.broadcast %cst_109 : f32 to vector<16x64xf32>
    %292 = arith.mulf %291, %290 : vector<16x64xf32>
    %293 = arith.mulf %280, %292 : vector<16x64xf32>
    %c1_110 = arith.constant 1 : index
    %c0_111 = arith.constant 0 : index
    %c0_112 = arith.constant 0 : index
    %294 = vector.load %arg12[%c1_110, %c0_111, %c0_112] : memref<2x64x32xf32, #tpu.memory_space<vmem>>, vector<1x64x32xf32>
    %295 = vector.shape_cast %294 : vector<1x64x32xf32> to vector<64x32xf32>
    %cst_113 = arith.constant dense<0.000000e+00> : vector<16x32xf32>
    %296 = tpu.matmul %293, %295, %cst_113 {dimension_numbers = #tpu.dot_dimension_numbers<[1], [0], [0], [1], [0, 0, 1, 1], [], []>} : vector<16x64xf32>, vector<64x32xf32>, vector<16x32xf32> -> vector<16x32xf32>
    %c1_114 = arith.constant 1 : index
    %c0_115 = arith.constant 0 : index
    %c0_116 = arith.constant 0 : index
    %297 = vector.load %arg13[%c1_114, %c0_115, %c0_116] : memref<2x1x32xf32, #tpu.memory_space<vmem>>, vector<1x1x32xf32>
    %298 = vector.shape_cast %297 : vector<1x1x32xf32> to vector<1x32xf32>
    %299 = vector.broadcast %298 : vector<1x32xf32> to vector<16x32xf32>
    %300 = arith.addf %296, %299 : vector<16x32xf32>
    %301 = arith.addf %273, %300 : vector<16x32xf32>
    %c1_117 = arith.constant 1 : index
    %c0_118 = arith.constant 0 : index
    %c0_119 = arith.constant 0 : index
    %302 = vector.load %arg14[%c1_117, %c0_118, %c0_119] : memref<2x1x32xf32, #tpu.memory_space<vmem>>, vector<1x1x32xf32>
    %303 = vector.shape_cast %302 : vector<1x1x32xf32> to vector<1x32xf32>
    %c1_120 = arith.constant 1 : index
    %c0_121 = arith.constant 0 : index
    %c0_122 = arith.constant 0 : index
    %304 = vector.load %arg15[%c1_120, %c0_121, %c0_122] : memref<2x1x32xf32, #tpu.memory_space<vmem>>, vector<1x1x32xf32>
    %305 = vector.shape_cast %304 : vector<1x1x32xf32> to vector<1x32xf32>
    %cst_123 = arith.constant dense<0.000000e+00> : vector<16xf32>
    %306 = vector.multi_reduction <add>, %301, %cst_123 [1] : vector<16x32xf32> to vector<16xf32>
    %307 = vector.shape_cast %306 : vector<16xf32> to vector<16x1xf32>
    %cst_124 = arith.constant 3.200000e+01 : f32
    %308 = vector.broadcast %cst_124 : f32 to vector<16x1xf32>
    %309 = arith.divf %307, %308 : vector<16x1xf32>
    %310 = vector.broadcast %309 : vector<16x1xf32> to vector<16x32xf32>
    %311 = arith.subf %301, %310 : vector<16x32xf32>
    %312 = arith.mulf %311, %311 : vector<16x32xf32>
    %cst_125 = arith.constant dense<0.000000e+00> : vector<16xf32>
    %313 = vector.multi_reduction <add>, %312, %cst_125 [1] : vector<16x32xf32> to vector<16xf32>
    %314 = vector.shape_cast %313 : vector<16xf32> to vector<16x1xf32>
    %cst_126 = arith.constant 3.200000e+01 : f32
    %315 = vector.broadcast %cst_126 : f32 to vector<16x1xf32>
    %316 = arith.divf %314, %315 : vector<16x1xf32>
    %317 = vector.broadcast %309 : vector<16x1xf32> to vector<16x32xf32>
    %318 = arith.subf %301, %317 : vector<16x32xf32>
    %cst_127 = arith.constant 9.99999996E-13 : f32
    %319 = vector.broadcast %cst_127 : f32 to vector<16x1xf32>
    %320 = arith.addf %316, %319 : vector<16x1xf32>
    %321 = math.rsqrt %320 : vector<16x1xf32>
    %322 = vector.broadcast %321 : vector<16x1xf32> to vector<16x32xf32>
    %323 = arith.mulf %318, %322 : vector<16x32xf32>
    %324 = vector.broadcast %303 : vector<1x32xf32> to vector<16x32xf32>
    %325 = arith.mulf %323, %324 : vector<16x32xf32>
    %326 = vector.broadcast %305 : vector<1x32xf32> to vector<16x32xf32>
    %327 = arith.addf %325, %326 : vector<16x32xf32>
    %328 = vector.extract_strided_slice %327 {offsets = [0, 0], sizes = [1, 32], strides = [1, 1]} : vector<16x32xf32> to vector<1x32xf32>
    %329 = vector.extract_strided_slice %327 {offsets = [8, 0], sizes = [1, 32], strides = [1, 1]} : vector<16x32xf32> to vector<1x32xf32>
    %330 = tpu.concatenate %328, %329 in 0 : vector<1x32xf32>, vector<1x32xf32> -> vector<2x32xf32>
    %c0_128 = arith.constant 0 : index
    %c0_129 = arith.constant 0 : index
    %331 = vector.load %arg16[%c0_128, %c0_129] : memref<32x2xf32, #tpu.memory_space<vmem>>, vector<32x2xf32>
    %cst_130 = arith.constant dense<0.000000e+00> : vector<2x2xf32>
    %332 = tpu.matmul %330, %331, %cst_130 {dimension_numbers = #tpu.dot_dimension_numbers<[1], [0], [0], [1], [0, 0, 1, 1], [], []>} : vector<2x32xf32>, vector<32x2xf32>, vector<2x2xf32> -> vector<2x2xf32>
    %c0_131 = arith.constant 0 : index
    %c0_132 = arith.constant 0 : index
    %333 = vector.load %arg17[%c0_131, %c0_132] : memref<1x2xf32, #tpu.memory_space<vmem>>, vector<1x2xf32>
    %334 = vector.broadcast %333 : vector<1x2xf32> to vector<2x2xf32>
    %335 = arith.addf %332, %334 : vector<2x2xf32>
    %c0_133 = arith.constant 0 : index
    %c0_134 = arith.constant 0 : index
    %336 = vector.load %arg18[%c0_133, %c0_134] : memref<2x2xf32, #tpu.memory_space<vmem>>, vector<2x2xf32>
    tpu.vector_store %arg18[%c0_133, %c0_134], %335 {strides = array<i32>} : memref<2x2xf32, #tpu.memory_space<vmem>>, vector<2x2xf32>,
    return
  }
}

</mosaic_0001>

<llo_original>
// kernel: tpu_custom_call.1
$region0: #{tpu_custom_call.1}
  #allocation0 [shape = 'u32[]', space=smem, size = 0x4, offset = 0x4, fixed_abs, tag = 'smem constant byte address 0x4 - core index']
  #allocation1 [shape = 'u32[144,128]{1,0:T(1,128)}', space=vmem, size = 0x12000, scoped, tag = 'internal scratch']
  %s0 = inlined_call_operand.hbm [shape: f32[16,32], index: 0, kind: input, shape index: {}]
  %s1 = inlined_call_operand.hbm [shape: f32[16,16], index: 1, kind: input, shape index: {}]
  %s2 = inlined_call_operand.vmem [shape: f32[1,32], index: 2, kind: input, shape index: {}]
  %s3 = inlined_call_operand.hbm [shape: f32[1,32], index: 3, kind: input, shape index: {}]
  %s4 = inlined_call_operand.vmem [shape: f32[2,32,96], index: 4, kind: input, shape index: {}]
  %s5 = inlined_call_operand.vmem [shape: f32[2,1,96], index: 5, kind: input, shape index: {}]
  %s6 = inlined_call_operand.vmem [shape: f32[2,32,32], index: 6, kind: input, shape index: {}]
  %s7 = inlined_call_operand.vmem [shape: f32[2,1,32], index: 7, kind: input, shape index: {}]
  %s8 = inlined_call_operand.vmem [shape: f32[2,1,32], index: 8, kind: input, shape index: {}]
  %s9 = inlined_call_operand.vmem [shape: f32[2,1,32], index: 9, kind: input, shape index: {}]
  %s10 = inlined_call_operand.vmem [shape: f32[2,32,64], index: 10, kind: input, shape index: {}]
  %s11 = inlined_call_operand.vmem [shape: f32[2,1,64], index: 11, kind: input, shape index: {}]
  %s12 = inlined_call_operand.vmem [shape: f32[2,64,32], index: 12, kind: input, shape index: {}]
  %s13 = inlined_call_operand.vmem [shape: f32[2,1,32], index: 13, kind: input, shape index: {}]
  %s14 = inlined_call_operand.vmem [shape: f32[2,1,32], index: 14, kind: input, shape index: {}]
  %s15 = inlined_call_operand.vmem [shape: f32[2,1,32], index: 15, kind: input, shape index: {}]
  %s16 = inlined_call_operand.vmem [shape: f32[32,2], index: 16, kind: input, shape index: {}]
  %s17 = inlined_call_operand.vmem [shape: f32[1,2], index: 17, kind: input, shape index: {}]
  %s18 = inlined_call_operand.hbm [shape: f32[2,2], index: 18, kind: output, shape index: {}]
  %s19 = sld [smem:[#allocation0]]
  $region94: #{tpu_custom_call.1} parent=0
    _
  %s21 = ssub.s32 1, %s19
  %s22 = scalar_select 0, %s21, %s19
  $region1: #{tpu_custom_call.1} parent=0
    #allocation2 [shape = 'u8[8192]{0}', space=vmem, size = 0x2000, scoped, tag = 'input window, operand 0, single buffered']
    #allocation3 [shape = 's32[1]{0}', space=sflag, size = 0x4, scoped, tag = 'scoped memory for tpu_custom_call.1']
    #allocation4 [shape = 's32[1]{0}', space=sflag, size = 0x4, scoped, tag = 'scoped memory for tpu_custom_call.1']
    #allocation5 [shape = 'u8[8192]{0}', space=vmem, size = 0x2000, scoped, tag = 'input window, operand 1, single buffered']
    #allocation6 [shape = 's32[1]{0}', space=sflag, size = 0x4, scoped, tag = 'scoped memory for tpu_custom_call.1']
    #allocation7 [shape = 'u8[512]{0}', space=vmem, size = 0x400, scoped, tag = 'input window, operand 3, single buffered']
    #allocation8 [shape = 'u8[1024]{0}', space=vmem, size = 0x400, scoped, tag = 'output window, operand 0, single buffered']
    %23 = vsyncpa [#allocation3], 0
    %24 = vsyncpa [#allocation6], 0
    %25 = vsyncpa [#allocation4], 0
    // Predicated region
    $region2: #{tpu_custom_call.1} parent=1 // pred_check
      _
    $region3: #{tpu_custom_call.1} parent=1 // pred_check_branch
      %27 = sbr.rel (0) target = $region5
    $region4: #{tpu_custom_call.1} parent=1 // pred_region
      %s29 = ssub.s32 256, 256
      %30 = vsyncadd [#allocation3], %s29
      %s31 = sshll.u32 [#allocation2], 4
      %s32 = int_to_ptr.vmem [resolvable:$true] %s31
      %37 = dma.hbm_to_vmem [thread:$0]  %s0, 256, %s32, [#allocation3], 128, 128, 8
    $region5: #{tpu_custom_call.1} parent=1 // pred_fallthru
      _
    // Predicated region
    $region6: #{tpu_custom_call.1} parent=1 // pred_check
      _
    $region7: #{tpu_custom_call.1} parent=1 // pred_check_branch
      %39 = sbr.rel (0) target = $region9
    $region8: #{tpu_custom_call.1} parent=1 // pred_region
      %s41 = ssub.s32 256, 256
      %42 = vsyncadd [#allocation6], %s41
      %s43 = sshll.u32 [#allocation5], 4
      %s44 = int_to_ptr.vmem [resolvable:$true] %s43
      %49 = dma.hbm_to_vmem [thread:$0]  %s1, 256, %s44, [#allocation6], 128, 128, 8
    $region9: #{tpu_custom_call.1} parent=1 // pred_fallthru
      _
    // Predicated region
    $region10: #{tpu_custom_call.1} parent=1 // pred_check
      _
    $region11: #{tpu_custom_call.1} parent=1 // pred_check_branch
      %51 = sbr.rel (0) target = $region13
    $region12: #{tpu_custom_call.1} parent=1 // pred_region
      _
    $region13: #{tpu_custom_call.1} parent=1 // pred_fallthru
      _
    // Predicated region
    $region14: #{tpu_custom_call.1} parent=1 // pred_check
      _
    $region15: #{tpu_custom_call.1} parent=1 // pred_check_branch
      %53 = sbr.rel (0) target = $region17
    $region16: #{tpu_custom_call.1} parent=1 // pred_region
      %s55 = ssub.s32 16, 16
      %56 = vsyncadd [#allocation6], %s55
      %s58 = sshll.u32 [#allocation7], 4
      %s59 = int_to_ptr.vmem [resolvable:$true] %s58
      %61 = dma.hbm_to_vmem [thread:$0]  %s3, 16, %s59, [#allocation6]
    $region17: #{tpu_custom_call.1} parent=1 // pred_fallthru
      _
    // Predicated region
    $region18: #{tpu_custom_call.1} parent=1 // pred_check
      _
    $region19: #{tpu_custom_call.1} parent=1 // pred_check_branch
      %63 = sbr.rel (0) target = $region21
    $region20: #{tpu_custom_call.1} parent=1 // pred_region
      _
    $region21: #{tpu_custom_call.1} parent=1 // pred_fallthru
      _
    // Predicated region
    $region22: #{tpu_custom_call.1} parent=1 // pred_check
      _
    $region23: #{tpu_custom_call.1} parent=1 // pred_check_branch
      %65 = sbr.rel (0) target = $region25
    $region24: #{tpu_custom_call.1} parent=1 // pred_region
      _
    $region25: #{tpu_custom_call.1} parent=1 // pred_fallthru
      _
    // Predicated region
    $region26: #{tpu_custom_call.1} parent=1 // pred_check
      _
    $region27: #{tpu_custom_call.1} parent=1 // pred_check_branch
      %67 = sbr.rel (0) target = $region29
    $region28: #{tpu_custom_call.1} parent=1 // pred_region
      _
    $region29: #{tpu_custom_call.1} parent=1 // pred_fallthru
      _
    // Predicated region
    $region30: #{tpu_custom_call.1} parent=1 // pred_check
      _
    $region31: #{tpu_custom_call.1} parent=1 // pred_check_branch
      %69 = sbr.rel (0) target = $region33
    $region32: #{tpu_custom_call.1} parent=1 // pred_region
      _
    $region33: #{tpu_custom_call.1} parent=1 // pred_fallthru
      _
    // Predicated region
    $region34: #{tpu_custom_call.1} parent=1 // pred_check
      _
    $region35: #{tpu_custom_call.1} parent=1 // pred_check_branch
      %71 = sbr.rel (0) target = $region37
    $region36: #{tpu_custom_call.1} parent=1 // pred_region
      _
    $region37: #{tpu_custom_call.1} parent=1 // pred_fallthru
      _
    // Predicated region
    $region38: #{tpu_custom_call.1} parent=1 // pred_check
      _
    $region39: #{tpu_custom_call.1} parent=1 // pred_check_branch
      %73 = sbr.rel (0) target = $region41
    $region40: #{tpu_custom_call.1} parent=1 // pred_region
      _
    $region41: #{tpu_custom_call.1} parent=1 // pred_fallthru
      _
    // Predicated region
    $region42: #{tpu_custom_call.1} parent=1 // pred_check
      _
    $region43: #{tpu_custom_call.1} parent=1 // pred_check_branch
      %75 = sbr.rel (0) target = $region45
    $region44: #{tpu_custom_call.1} parent=1 // pred_region
      _
    $region45: #{tpu_custom_call.1} parent=1 // pred_fallthru
      _
    // Predicated region
    $region46: #{tpu_custom_call.1} parent=1 // pred_check
      _
    $region47: #{tpu_custom_call.1} parent=1 // pred_check_branch
      %77 = sbr.rel (0) target = $region49
    $region48: #{tpu_custom_call.1} parent=1 // pred_region
      _
    $region49: #{tpu_custom_call.1} parent=1 // pred_fallthru
      _
    // Predicated region
    $region50: #{tpu_custom_call.1} parent=1 // pred_check
      _
    $region51: #{tpu_custom_call.1} parent=1 // pred_check_branch
      %79 = sbr.rel (0) target = $region53
    $region52: #{tpu_custom_call.1} parent=1 // pred_region
      _
    $region53: #{tpu_custom_call.1} parent=1 // pred_fallthru
      _
    // Predicated region
    $region54: #{tpu_custom_call.1} parent=1 // pred_check
      _
    $region55: #{tpu_custom_call.1} parent=1 // pred_check_branch
      %81 = sbr.rel (0) target = $region57
    $region56: #{tpu_custom_call.1} parent=1 // pred_region
      _
    $region57: #{tpu_custom_call.1} parent=1 // pred_fallthru
      _
    // Predicated region
    $region58: #{tpu_custom_call.1} parent=1 // pred_check
      _
    $region59: #{tpu_custom_call.1} parent=1 // pred_check_branch
      %83 = sbr.rel (0) target = $region61
    $region60: #{tpu_custom_call.1} parent=1 // pred_region
      _
    $region61: #{tpu_custom_call.1} parent=1 // pred_fallthru
      _
    // Predicated region
    $region62: #{tpu_custom_call.1} parent=1 // pred_check
      _
    $region63: #{tpu_custom_call.1} parent=1 // pred_check_branch
      %85 = sbr.rel (0) target = $region65
    $region64: #{tpu_custom_call.1} parent=1 // pred_region
      _
    $region65: #{tpu_custom_call.1} parent=1 // pred_fallthru
      _
    // Predicated region
    $region66: #{tpu_custom_call.1} parent=1 // pred_check
      _
    $region67: #{tpu_custom_call.1} parent=1 // pred_check_branch
      %87 = sbr.rel (0) target = $region69
    $region68: #{tpu_custom_call.1} parent=1 // pred_region
      _
    $region69: #{tpu_custom_call.1} parent=1 // pred_fallthru
      _
    // Predicated region
    $region70: #{tpu_custom_call.1} parent=1 // pred_check
      _
    $region71: #{tpu_custom_call.1} parent=1 // pred_check_branch
      %89 = sbr.rel (0) target = $region73
    $region72: #{tpu_custom_call.1} parent=1 // pred_region
      _
    $region73: #{tpu_custom_call.1} parent=1 // pred_fallthru
      _
    // Predicated region
    $region74: #{tpu_custom_call.1} parent=1 // pred_check
      _
    $region75: #{tpu_custom_call.1} parent=1 // pred_check_branch
      %91 = sbr.rel (0) target = $region77
    $region76: #{tpu_custom_call.1} parent=1 // pred_region
      %92 = dma.done [#allocation3], 256
    $region77: #{tpu_custom_call.1} parent=1 // pred_fallthru
      _
    // Predicated region
    $region78: #{tpu_custom_call.1} parent=1 // pred_check
      _
    $region79: #{tpu_custom_call.1} parent=1 // pred_check_branch
      %94 = sbr.rel (0) target = $region81
    $region80: #{tpu_custom_call.1} parent=1 // pred_region
      %95 = dma.done [#allocation6], 256
    $region81: #{tpu_custom_call.1} parent=1 // pred_fallthru
      _
    // Predicated region
    $region82: #{tpu_custom_call.1} parent=1 // pred_check
      _
    $region83: #{tpu_custom_call.1} parent=1 // pred_check_branch
      %97 = sbr.rel (0) target = $region85
    $region84: #{tpu_custom_call.1} parent=1 // pred_region
      %98 = dma.done [#allocation6], 16
    $region85: #{tpu_custom_call.1} parent=1 // pred_fallthru
      _
    %v99 = vld [vmem:[#allocation2] sm:$0xff]
    %v100 = vld [vmem:[#allocation2 + $0x8] sm:$0xff]
    %v101 = vld [vmem:[%s2] sm:$0x1]
    %v102 = vld [vmem:[#allocation7] sm:$0x1]
    %vm103 = vcmask 261120
    %v104 = vsel %vm103, %v99, 0.0
    %105 = vadd.xlane.f32.xlu0 %v104
    %v106 = vpop.xlane.xlu0 %105
    %v107 = vsel %vm103, %v100, 0.0
    %108 = vadd.xlane.f32.xlu0 %v107
    %v109 = vpop.xlane.xlu0 %108
    %v110 = vrcp.pop 32.0
    %v111 = vmul.f32 %v106, %v110
    %v112 = vmul.f32 %v109, %v110
    %v113 = vsub.f32 %v99, %v111
    %v114 = vsub.f32 %v100, %v112
    %v115 = vmul.f32 %v113, %v113
    %v116 = vmul.f32 %v114, %v114
    %v117 = vsel %vm103, %v115, 0.0
    %118 = vadd.xlane.f32.xlu0 %v117
    %v119 = vpop.xlane.xlu0 %118
    %v120 = vsel %vm103, %v116, 0.0
    %121 = vadd.xlane.f32.xlu0 %v120
    %v122 = vpop.xlane.xlu0 %121
    %v123 = vmul.f32 %v119, %v110
    %v124 = vmul.f32 %v122, %v110
    %v125 = vadd.f32 %v123, 1e-12
    %v126 = vadd.f32 %v124, 1e-12
    %v127 = vrsqrt.pop %v125
    %v128 = vrsqrt.pop %v126
    %v129 = vmul.f32 %v113, %v127
    %v130 = vmul.f32 %v114, %v128
    %v132 = vlaneseq
    %v133 = vshrl.u32 %v132, 7
    %v134 = vsub.s32 0, %v133
    %v135 = vrot.slane %v101, %v134
    %v137 = vmul.f32 %v129, %v135
    %v138 = vmul.f32 %v130, %v135
    %v140 = vlaneseq
    %v141 = vshrl.u32 %v140, 7
    %v142 = vsub.s32 0, %v141
    %v143 = vrot.slane %v102, %v142
    %v145 = vadd.f32 %v137, %v143
    %v146 = vadd.f32 %v138, %v143
    %v147 = vld [vmem:[#allocation5] sm:$0xff]
    %v148 = vld [vmem:[#allocation5 + $0x8] sm:$0xff]
    %v149 = vld [vmem:[%s4] sm:$0xff]
    %v150 = vld [vmem:[%s4 + $0x8] sm:$0xff]
    %v151 = vld [vmem:[%s4 + $0x10] sm:$0xff]
    %v152 = vld [vmem:[%s4 + $0x18] sm:$0xff]
    %v153 = vld [vmem:[%s5] sm:$0x1]
    %v155 = vlaneseq
    %v156 = vshrl.u32 %v155, 7
    %v157 = vsub.s32 0, %v156
    %v158 = vrot.slane %v153, %v157
    %v161 = vsel %vm103, %v145, 0
    %v164 = vsel %vm103, %v146, 0
    %166 = vmatprep.subr.mxu0 0.0
    %167 = vmatpush1.msra.mxu0 %v149
    %168 = vmatprep.subr.mxu0 0.0
    %169 = vmatpush1.msra.mxu0 %v150
    %170 = vmatprep.subr.mxu0 0.0
    %171 = vmatpush1.msra.mxu0 %v151
    %172 = vmatprep.subr.mxu0 0.0
    %173 = vmatpush1.msra.mxu0 %v152
    %174 = vmatprep.subr.mxu0 0.0
    %175 = vmatpush1.msra.mxu0 0.0
    %176 = vmatprep.subr.mxu0 0.0
    %177 = vmatpush1.msra.mxu0 0.0
    %178 = vmatprep.subr.mxu0 0.0
    %179 = vmatpush1.msra.mxu0 0.0
    %180 = vmatprep.subr.mxu0 0.0
    %181 = vmatpush1.msra.mxu0 0.0
    %182 = vmatprep.subr.mxu0 0.0
    %183 = vmatpush1.msra.mxu0 0.0
    %184 = vmatprep.subr.mxu0 0.0
    %185 = vmatpush1.msra.mxu0 0.0
    %186 = vmatprep.subr.mxu0 0.0
    %187 = vmatpush1.msra.mxu0 0.0
    %188 = vmatprep.subr.mxu0 0.0
    %189 = vmatpush1.msra.mxu0 0.0
    %190 = vmatprep.subr.mxu0 0.0
    %191 = vmatpush1.msra.mxu0 0.0
    %192 = vmatprep.subr.mxu0 0.0
    %193 = vmatpush1.msra.mxu0 0.0
    %194 = vmatprep.subr.mxu0 0.0
    %195 = vmatpush1.msra.mxu0 0.0
    %196 = vmatprep.subr.mxu0 0.0
    %197 = vmatpush1.msra.mxu0 0.0
    %198 = vmatprep.subr.mxu0 0.0
    %199 = vmatpush1.msra.mxu0 0.0
    %200 = vmatprep.subr.mxu0 0.0
    %201 = vmatpush1.msra.mxu0 0.0
    %202 = vmatprep.subr.mxu0 0.0
    %203 = vmatpush1.msra.mxu0 0.0
    %204 = vmatprep.subr.mxu0 0.0
    %205 = vmatpush1.msra.mxu0 0.0
    %206 = vmatprep.subr.mxu0 0.0
    %207 = vmatpush1.msra.mxu0 0.0
    %208 = vmatprep.subr.mxu0 0.0
    %209 = vmatpush1.msra.mxu0 0.0
    %210 = vmatprep.subr.mxu0 0.0
    %211 = vmatpush1.msra.mxu0 0.0
    %212 = vmatprep.subr.mxu0 0.0
    %213 = vmatpush1.msra.mxu0 0.0
    %214 = vmatprep.subr.mxu0 0.0
    %215 = vmatpush1.msra.mxu0 0.0
    %216 = vmatprep.subr.mxu0 0.0
    %217 = vmatpush1.msra.mxu0 0.0
    %218 = vmatprep.subr.mxu0 0.0
    %219 = vmatpush1.msra.mxu0 0.0
    %220 = vmatprep.subr.mxu0 0.0
    %221 = vmatpush1.msra.mxu0 0.0
    %222 = vmatprep.subr.mxu0 0.0
    %223 = vmatpush1.msra.mxu0 0.0
    %224 = vmatprep.subr.mxu0 0.0
    %225 = vmatpush1.msra.mxu0 0.0
    %226 = vmatprep.subr.mxu0 0.0
    %227 = vmatpush1.msra.mxu0 0.0
    %228 = vmatprep.subr.mxu0 0.0
    %229 = vmatpush1.msra.mxu0 0.0
    %230 = vmatprep.mubr.f32.mxu0 0.0
    %231 = vmatmul.mubr.f32.gmra.mrb[0].mxu0 %v161
    %v232 = vpop.f32.mrb[0].mxu0
    %v233 = vadd.f32 %v158, %v232
    %v234 = vpop.f32.mrb[0].mxu0
    %235 = vmatprep.mubr.f32.mxu0 0.0
    %236 = vmatmul.mubr.f32.gmra.mrb[0].mxu0 %v164
    %v237 = vpop.f32.mrb[0].mxu0
    %v238 = vadd.f32 %v158, %v237
    %v239 = vpop.f32.mrb[0].mxu0
    %240 = vdwg.mxu0
    %v241 = vmul.f32 %v233, 0.35355338
    %v242 = vmul.f32 %v238, 0.35355338
    %245 = vrot.lane.b32.xlu0 %v241, 120
    %v246 = vpop.permute.xlu0 %245
    %247 = vrot.lane.b32.xlu0 %v242, 120
    %v248 = vpop.permute.xlu0 %247
    %249 = vrot.lane.b32.xlu0 %v241, 112
    %v250 = vpop.permute.xlu0 %249
    %251 = vrot.lane.b32.xlu0 %v242, 112
    %v252 = vpop.permute.xlu0 %251
    %253 = vrot.lane.b32.xlu0 %v241, 104
    %v254 = vpop.permute.xlu0 %253
    %255 = vrot.lane.b32.xlu0 %v242, 104
    %v256 = vpop.permute.xlu0 %255
    %259 = vrot.lane.b32.xlu0 %v233, 120
    %v260 = vpop.permute.xlu0 %259
    %261 = vrot.lane.b32.xlu0 %v238, 120
    %v262 = vpop.permute.xlu0 %261
    %263 = vrot.lane.b32.xlu0 %v233, 112
    %v264 = vpop.permute.xlu0 %263
    %265 = vrot.lane.b32.xlu0 %v238, 112
    %v266 = vpop.permute.xlu0 %265
    %267 = vrot.lane.b32.xlu0 %v233, 104
    %v268 = vpop.permute.xlu0 %267
    %269 = vrot.lane.b32.xlu0 %v238, 104
    %v270 = vpop.permute.xlu0 %269
    %271 = vrot.lane.b32.xlu0 %v233, 96
    %v272 = vpop.permute.xlu0 %271
    %273 = vrot.lane.b32.xlu0 %v238, 96
    %v274 = vpop.permute.xlu0 %273
    %vm275 = vcmask 64512
    %v276 = vsel %vm275, %v241, 0
    %v278 = vsel %vm275, %v242, 0
    %v280 = vsel %vm275, %v272, 0
    %v282 = vsel %vm275, %v274, 0
    %284 = vmatprep.subr.mxu0 0.0
    %285 = vmatpush1.xpose.msra.mxu0 %v280
    %286 = vmatprep.subr.mxu0 0.0
    %287 = vmatpush1.xpose.msra.mxu0 %v282
    %288 = vmatprep.subr.mxu0 0.0
    %289 = vmatpush1.xpose.msra.mxu0 0.0
    %290 = vmatprep.subr.mxu0 0.0
    %291 = vmatpush1.xpose.msra.mxu0 0.0
    %292 = vmatprep.subr.mxu0 0.0
    %293 = vmatpush1.xpose.msra.mxu0 0.0
    %294 = vmatprep.subr.mxu0 0.0
    %295 = vmatpush1.xpose.msra.mxu0 0.0
    %296 = vmatprep.subr.mxu0 0.0
    %297 = vmatpush1.xpose.msra.mxu0 0.0
    %298 = vmatprep.subr.mxu0 0.0
    %299 = vmatpush1.xpose.msra.mxu0 0.0
    %300 = vmatprep.subr.mxu0 0.0
    %301 = vmatpush1.xpose.msra.mxu0 0.0
    %302 = vmatprep.subr.mxu0 0.0
    %303 = vmatpush1.xpose.msra.mxu0 0.0
    %304 = vmatprep.subr.mxu0 0.0
    %305 = vmatpush1.xpose.msra.mxu0 0.0
    %306 = vmatprep.subr.mxu0 0.0
    %307 = vmatpush1.xpose.msra.mxu0 0.0
    %308 = vmatprep.subr.mxu0 0.0
    %309 = vmatpush1.xpose.msra.mxu0 0.0
    %310 = vmatprep.subr.mxu0 0.0
    %311 = vmatpush1.xpose.msra.mxu0 0.0
    %312 = vmatprep.subr.mxu0 0.0
    %313 = vmatpush1.xpose.msra.mxu0 0.0
    %314 = vmatprep.subr.mxu0 0.0
    %315 = vmatpush1.xpose.msra.mxu0 0.0
    %316 = vmatprep.subr.mxu0 0.0
    %317 = vmatpush1.xpose.msra.mxu0 0.0
    %318 = vmatprep.subr.mxu0 0.0
    %319 = vmatpush1.xpose.msra.mxu0 0.0
    %320 = vmatprep.subr.mxu0 0.0
    %321 = vmatpush1.xpose.msra.mxu0 0.0
    %322 = vmatprep.subr.mxu0 0.0
    %323 = vmatpush1.xpose.msra.mxu0 0.0
    %324 = vmatprep.subr.mxu0 0.0
    %325 = vmatpush1.xpose.msra.mxu0 0.0
    %326 = vmatprep.subr.mxu0 0.0
    %327 = vmatpush1.xpose.msra.mxu0 0.0
    %328 = vmatprep.subr.mxu0 0.0
    %329 = vmatpush1.xpose.msra.mxu0 0.0
    %330 = vmatprep.subr.mxu0 0.0
    %331 = vmatpush1.xpose.msra.mxu0 0.0
    %332 = vmatprep.subr.mxu0 0.0
    %333 = vmatpush1.xpose.msra.mxu0 0.0
    %334 = vmatprep.subr.mxu0 0.0
    %335 = vmatpush1.xpose.msra.mxu0 0.0
    %336 = vmatprep.subr.mxu0 0.0
    %337 = vmatpush1.xpose.msra.mxu0 0.0
    %338 = vmatprep.subr.mxu0 0.0
    %339 = vmatpush1.xpose.msra.mxu0 0.0
    %340 = vmatprep.subr.mxu0 0.0
    %341 = vmatpush1.xpose.msra.mxu0 0.0
    %342 = vmatprep.subr.mxu0 0.0
    %343 = vmatpush1.xpose.msra.mxu0 0.0
    %344 = vmatprep.subr.mxu0 0.0
    %345 = vmatpush1.xpose.msra.mxu0 0.0
    %346 = vmatprep.subr.mxu0 0.0
    %347 = vmatpush1.xpose.msra.mxu0 0.0
    %348 = vmatprep.mubr.f32.mxu0 0.0
    %349 = vmatmul.mubr.f32.gmra.mrb[0].mxu0 %v276
    %v350 = vpop.f32.mrb[0].mxu0
    %v351 = vadd.f32 %v147, %v350
    %v352 = vpop.f32.mrb[0].mxu0
    %353 = vmatprep.mubr.f32.mxu0 0.0
    %354 = vmatmul.mubr.f32.gmra.mrb[0].mxu0 %v278
    %v355 = vpop.f32.mrb[0].mxu0
    %v356 = vadd.f32 %v148, %v355
    %v357 = vpop.f32.mrb[0].mxu0
    %358 = vdwg.mxu0
    %359 = vrot.lane.b32.xlu0 %v260, 96
    %v360 = vpop.permute.xlu0 %359
    %361 = vrot.lane.b32.xlu0 %v262, 96
    %v362 = vpop.permute.xlu0 %361
    %v363 = vsel %vm275, %v246, 0
    %v365 = vsel %vm275, %v248, 0
    %v367 = vsel %vm275, %v360, 0
    %v369 = vsel %vm275, %v362, 0
    %371 = vmatprep.subr.mxu0 0.0
    %372 = vmatpush1.xpose.msra.mxu0 %v367
    %373 = vmatprep.subr.mxu0 0.0
    %374 = vmatpush1.xpose.msra.mxu0 %v369
    %375 = vmatprep.subr.mxu0 0.0
    %376 = vmatpush1.xpose.msra.mxu0 0.0
    %377 = vmatprep.subr.mxu0 0.0
    %378 = vmatpush1.xpose.msra.mxu0 0.0
    %379 = vmatprep.subr.mxu0 0.0
    %380 = vmatpush1.xpose.msra.mxu0 0.0
    %381 = vmatprep.subr.mxu0 0.0
    %382 = vmatpush1.xpose.msra.mxu0 0.0
    %383 = vmatprep.subr.mxu0 0.0
    %384 = vmatpush1.xpose.msra.mxu0 0.0
    %385 = vmatprep.subr.mxu0 0.0
    %386 = vmatpush1.xpose.msra.mxu0 0.0
    %387 = vmatprep.subr.mxu0 0.0
    %388 = vmatpush1.xpose.msra.mxu0 0.0
    %389 = vmatprep.subr.mxu0 0.0
    %390 = vmatpush1.xpose.msra.mxu0 0.0
    %391 = vmatprep.subr.mxu0 0.0
    %392 = vmatpush1.xpose.msra.mxu0 0.0
    %393 = vmatprep.subr.mxu0 0.0
    %394 = vmatpush1.xpose.msra.mxu0 0.0
    %395 = vmatprep.subr.mxu0 0.0
    %396 = vmatpush1.xpose.msra.mxu0 0.0
    %397 = vmatprep.subr.mxu0 0.0
    %398 = vmatpush1.xpose.msra.mxu0 0.0
    %399 = vmatprep.subr.mxu0 0.0
    %400 = vmatpush1.xpose.msra.mxu0 0.0
    %401 = vmatprep.subr.mxu0 0.0
    %402 = vmatpush1.xpose.msra.mxu0 0.0
    %403 = vmatprep.subr.mxu0 0.0
    %404 = vmatpush1.xpose.msra.mxu0 0.0
    %405 = vmatprep.subr.mxu0 0.0
    %406 = vmatpush1.xpose.msra.mxu0 0.0
    %407 = vmatprep.subr.mxu0 0.0
    %408 = vmatpush1.xpose.msra.mxu0 0.0
    %409 = vmatprep.subr.mxu0 0.0
    %410 = vmatpush1.xpose.msra.mxu0 0.0
    %411 = vmatprep.subr.mxu0 0.0
    %412 = vmatpush1.xpose.msra.mxu0 0.0
    %413 = vmatprep.subr.mxu0 0.0
    %414 = vmatpush1.xpose.msra.mxu0 0.0
    %415 = vmatprep.subr.mxu0 0.0
    %416 = vmatpush1.xpose.msra.mxu0 0.0
    %417 = vmatprep.subr.mxu0 0.0
    %418 = vmatpush1.xpose.msra.mxu0 0.0
    %419 = vmatprep.subr.mxu0 0.0
    %420 = vmatpush1.xpose.msra.mxu0 0.0
    %421 = vmatprep.subr.mxu0 0.0
    %422 = vmatpush1.xpose.msra.mxu0 0.0
    %423 = vmatprep.subr.mxu0 0.0
    %424 = vmatpush1.xpose.msra.mxu0 0.0
    %425 = vmatprep.subr.mxu0 0.0
    %426 = vmatpush1.xpose.msra.mxu0 0.0
    %427 = vmatprep.subr.mxu0 0.0
    %428 = vmatpush1.xpose.msra.mxu0 0.0
    %429 = vmatprep.subr.mxu0 0.0
    %430 = vmatpush1.xpose.msra.mxu0 0.0
    %431 = vmatprep.subr.mxu0 0.0
    %432 = vmatpush1.xpose.msra.mxu0 0.0
    %433 = vmatprep.subr.mxu0 0.0
    %434 = vmatpush1.xpose.msra.mxu0 0.0
    %435 = vmatprep.mubr.f32.mxu0 0.0
    %436 = vmatmul.mubr.f32.gmra.mrb[0].mxu0 %v363
    %v437 = vpop.f32.mrb[0].mxu0
    %v438 = vadd.f32 %v147, %v437
    %v439 = vpop.f32.mrb[0].mxu0
    %440 = vmatprep.mubr.f32.mxu0 0.0
    %441 = vmatmul.mubr.f32.gmra.mrb[0].mxu0 %v365
    %v442 = vpop.f32.mrb[0].mxu0
    %v443 = vadd.f32 %v148, %v442
    %v444 = vpop.f32.mrb[0].mxu0
    %445 = vdwg.mxu0
    %446 = vrot.lane.b32.xlu0 %v264, 96
    %v447 = vpop.permute.xlu0 %446
    %448 = vrot.lane.b32.xlu0 %v266, 96
    %v449 = vpop.permute.xlu0 %448
    %v450 = vsel %vm275, %v250, 0
    %v452 = vsel %vm275, %v252, 0
    %v454 = vsel %vm275, %v447, 0
    %v456 = vsel %vm275, %v449, 0
    %458 = vmatprep.subr.mxu0 0.0
    %459 = vmatpush1.xpose.msra.mxu0 %v454
    %460 = vmatprep.subr.mxu0 0.0
    %461 = vmatpush1.xpose.msra.mxu0 %v456
    %462 = vmatprep.subr.mxu0 0.0
    %463 = vmatpush1.xpose.msra.mxu0 0.0
    %464 = vmatprep.subr.mxu0 0.0
    %465 = vmatpush1.xpose.msra.mxu0 0.0
    %466 = vmatprep.subr.mxu0 0.0
    %467 = vmatpush1.xpose.msra.mxu0 0.0
    %468 = vmatprep.subr.mxu0 0.0
    %469 = vmatpush1.xpose.msra.mxu0 0.0
    %470 = vmatprep.subr.mxu0 0.0
    %471 = vmatpush1.xpose.msra.mxu0 0.0
    %472 = vmatprep.subr.mxu0 0.0
    %473 = vmatpush1.xpose.msra.mxu0 0.0
    %474 = vmatprep.subr.mxu0 0.0
    %475 = vmatpush1.xpose.msra.mxu0 0.0
    %476 = vmatprep.subr.mxu0 0.0
    %477 = vmatpush1.xpose.msra.mxu0 0.0
    %478 = vmatprep.subr.mxu0 0.0
    %479 = vmatpush1.xpose.msra.mxu0 0.0
    %480 = vmatprep.subr.mxu0 0.0
    %481 = vmatpush1.xpose.msra.mxu0 0.0
    %482 = vmatprep.subr.mxu0 0.0
    %483 = vmatpush1.xpose.msra.mxu0 0.0
    %484 = vmatprep.subr.mxu0 0.0
    %485 = vmatpush1.xpose.msra.mxu0 0.0
    %486 = vmatprep.subr.mxu0 0.0
    %487 = vmatpush1.xpose.msra.mxu0 0.0
    %488 = vmatprep.subr.mxu0 0.0
    %489 = vmatpush1.xpose.msra.mxu0 0.0
    %490 = vmatprep.subr.mxu0 0.0
    %491 = vmatpush1.xpose.msra.mxu0 0.0
    %492 = vmatprep.subr.mxu0 0.0
    %493 = vmatpush1.xpose.msra.mxu0 0.0
    %494 = vmatprep.subr.mxu0 0.0
    %495 = vmatpush1.xpose.msra.mxu0 0.0
    %496 = vmatprep.subr.mxu0 0.0
    %497 = vmatpush1.xpose.msra.mxu0 0.0
    %498 = vmatprep.subr.mxu0 0.0
    %499 = vmatpush1.xpose.msra.mxu0 0.0
    %500 = vmatprep.subr.mxu0 0.0
    %501 = vmatpush1.xpose.msra.mxu0 0.0
    %502 = vmatprep.subr.mxu0 0.0
    %503 = vmatpush1.xpose.msra.mxu0 0.0
    %504 = vmatprep.subr.mxu0 0.0
    %505 = vmatpush1.xpose.msra.mxu0 0.0
    %506 = vmatprep.subr.mxu0 0.0
    %507 = vmatpush1.xpose.msra.mxu0 0.0
    %508 = vmatprep.subr.mxu0 0.0
    %509 = vmatpush1.xpose.msra.mxu0 0.0
    %510 = vmatprep.subr.mxu0 0.0
    %511 = vmatpush1.xpose.msra.mxu0 0.0
    %512 = vmatprep.subr.mxu0 0.0
    %513 = vmatpush1.xpose.msra.mxu0 0.0
    %514 = vmatprep.subr.mxu0 0.0
    %515 = vmatpush1.xpose.msra.mxu0 0.0
    %516 = vmatprep.subr.mxu0 0.0
    %517 = vmatpush1.xpose.msra.mxu0 0.0
    %518 = vmatprep.subr.mxu0 0.0
    %519 = vmatpush1.xpose.msra.mxu0 0.0
    %520 = vmatprep.subr.mxu0 0.0
    %521 = vmatpush1.xpose.msra.mxu0 0.0
    %522 = vmatprep.mubr.f32.mxu0 0.0
    %523 = vmatmul.mubr.f32.gmra.mrb[0].mxu0 %v450
    %v524 = vpop.f32.mrb[0].mxu0
    %v525 = vadd.f32 %v147, %v524
    %v526 = vpop.f32.mrb[0].mxu0
    %527 = vmatprep.mubr.f32.mxu0 0.0
    %528 = vmatmul.mubr.f32.gmra.mrb[0].mxu0 %v452
    %v529 = vpop.f32.mrb[0].mxu0
    %v530 = vadd.f32 %v148, %v529
    %v531 = vpop.f32.mrb[0].mxu0
    %532 = vdwg.mxu0
    %533 = vrot.lane.b32.xlu0 %v268, 96
    %v534 = vpop.permute.xlu0 %533
    %535 = vrot.lane.b32.xlu0 %v270, 96
    %v536 = vpop.permute.xlu0 %535
    %v537 = vsel %vm275, %v254, 0
    %v539 = vsel %vm275, %v256, 0
    %v541 = vsel %vm275, %v534, 0
    %v543 = vsel %vm275, %v536, 0
    %545 = vmatprep.subr.mxu0 0.0
    %546 = vmatpush1.xpose.msra.mxu0 %v541
    %547 = vmatprep.subr.mxu0 0.0
    %548 = vmatpush1.xpose.msra.mxu0 %v543
    %549 = vmatprep.subr.mxu0 0.0
    %550 = vmatpush1.xpose.msra.mxu0 0.0
    %551 = vmatprep.subr.mxu0 0.0
    %552 = vmatpush1.xpose.msra.mxu0 0.0
    %553 = vmatprep.subr.mxu0 0.0
    %554 = vmatpush1.xpose.msra.mxu0 0.0
    %555 = vmatprep.subr.mxu0 0.0
    %556 = vmatpush1.xpose.msra.mxu0 0.0
    %557 = vmatprep.subr.mxu0 0.0
    %558 = vmatpush1.xpose.msra.mxu0 0.0
    %559 = vmatprep.subr.mxu0 0.0
    %560 = vmatpush1.xpose.msra.mxu0 0.0
    %561 = vmatprep.subr.mxu0 0.0
    %562 = vmatpush1.xpose.msra.mxu0 0.0
    %563 = vmatprep.subr.mxu0 0.0
    %564 = vmatpush1.xpose.msra.mxu0 0.0
    %565 = vmatprep.subr.mxu0 0.0
    %566 = vmatpush1.xpose.msra.mxu0 0.0
    %567 = vmatprep.subr.mxu0 0.0
    %568 = vmatpush1.xpose.msra.mxu0 0.0
    %569 = vmatprep.subr.mxu0 0.0
    %570 = vmatpush1.xpose.msra.mxu0 0.0
    %571 = vmatprep.subr.mxu0 0.0
    %572 = vmatpush1.xpose.msra.mxu0 0.0
    %573 = vmatprep.subr.mxu0 0.0
    %574 = vmatpush1.xpose.msra.mxu0 0.0
    %575 = vmatprep.subr.mxu0 0.0
    %576 = vmatpush1.xpose.msra.mxu0 0.0
    %577 = vmatprep.subr.mxu0 0.0
    %578 = vmatpush1.xpose.msra.mxu0 0.0
    %579 = vmatprep.subr.mxu0 0.0
    %580 = vmatpush1.xpose.msra.mxu0 0.0
    %581 = vmatprep.subr.mxu0 0.0
    %582 = vmatpush1.xpose.msra.mxu0 0.0
    %583 = vmatprep.subr.mxu0 0.0
    %584 = vmatpush1.xpose.msra.mxu0 0.0
    %585 = vmatprep.subr.mxu0 0.0
    %586 = vmatpush1.xpose.msra.mxu0 0.0
    %587 = vmatprep.subr.mxu0 0.0
    %588 = vmatpush1.xpose.msra.mxu0 0.0
    %589 = vmatprep.subr.mxu0 0.0
    %590 = vmatpush1.xpose.msra.mxu0 0.0
    %591 = vmatprep.subr.mxu0 0.0
    %592 = vmatpush1.xpose.msra.mxu0 0.0
    %593 = vmatprep.subr.mxu0 0.0
    %594 = vmatpush1.xpose.msra.mxu0 0.0
    %595 = vmatprep.subr.mxu0 0.0
    %596 = vmatpush1.xpose.msra.mxu0 0.0
    %597 = vmatprep.subr.mxu0 0.0
    %598 = vmatpush1.xpose.msra.mxu0 0.0
    %599 = vmatprep.subr.mxu0 0.0
    %600 = vmatpush1.xpose.msra.mxu0 0.0
    %601 = vmatprep.subr.mxu0 0.0
    %602 = vmatpush1.xpose.msra.mxu0 0.0
    %603 = vmatprep.subr.mxu0 0.0
    %604 = vmatpush1.xpose.msra.mxu0 0.0
    %605 = vmatprep.subr.mxu0 0.0
    %606 = vmatpush1.xpose.msra.mxu0 0.0
    %607 = vmatprep.subr.mxu0 0.0
    %608 = vmatpush1.xpose.msra.mxu0 0.0
    %609 = vmatprep.mubr.f32.mxu0 0.0
    %610 = vmatmul.mubr.f32.gmra.mrb[0].mxu0 %v537
    %v611 = vpop.f32.mrb[0].mxu0
    %v612 = vadd.f32 %v147, %v611
    %v613 = vpop.f32.mrb[0].mxu0
    %614 = vmatprep.mubr.f32.mxu0 0.0
    %615 = vmatmul.mubr.f32.gmra.mrb[0].mxu0 %v539
    %v616 = vpop.f32.mrb[0].mxu0
    %v617 = vadd.f32 %v148, %v616
    %v618 = vpop.f32.mrb[0].mxu0
    %619 = vdwg.mxu0
    %vm620 = vcmask 130048
    %v621 = vsel %vm620, %v351, -inf
    %622 = vmax.xlane.f32.xlu0 %v621
    %v623 = vpop.xlane.xlu0 %622
    %v624 = vsel %vm620, %v356, -inf
    %625 = vmax.xlane.f32.xlu0 %v624
    %v626 = vpop.xlane.xlu0 %625
    %v627 = vsel %vm620, %v438, -inf
    %628 = vmax.xlane.f32.xlu0 %v627
    %v629 = vpop.xlane.xlu0 %628
    %v630 = vsel %vm620, %v443, -inf
    %631 = vmax.xlane.f32.xlu0 %v630
    %v632 = vpop.xlane.xlu0 %631
    %v633 = vsel %vm620, %v525, -inf
    %634 = vmax.xlane.f32.xlu0 %v633
    %v635 = vpop.xlane.xlu0 %634
    %v636 = vsel %vm620, %v530, -inf
    %637 = vmax.xlane.f32.xlu0 %v636
    %v638 = vpop.xlane.xlu0 %637
    %v639 = vsel %vm620, %v612, -inf
    %640 = vmax.xlane.f32.xlu0 %v639
    %v641 = vpop.xlane.xlu0 %640
    %v642 = vsel %vm620, %v617, -inf
    %643 = vmax.xlane.f32.xlu0 %v642
    %v644 = vpop.xlane.xlu0 %643
    %v645 = vsub.f32 %v351, %v623
    %v646 = vsub.f32 %v356, %v626
    %v647 = vsub.f32 %v438, %v629
    %v648 = vsub.f32 %v443, %v632
    %v649 = vsub.f32 %v525, %v635
    %v650 = vsub.f32 %v530, %v638
    %v651 = vsub.f32 %v612, %v641
    %v652 = vsub.f32 %v617, %v644
    %v653 = vmul.f32 %v645, 1.442695
    %v654 = vpow.pop %v653
    %v655 = vmul.f32 %v646, 1.442695
    %v656 = vpow.pop %v655
    %v657 = vmul.f32 %v647, 1.442695
    %v658 = vpow.pop %v657
    %v659 = vmul.f32 %v648, 1.442695
    %v660 = vpow.pop %v659
    %v661 = vmul.f32 %v649, 1.442695
    %v662 = vpow.pop %v661
    %v663 = vmul.f32 %v650, 1.442695
    %v664 = vpow.pop %v663
    %v665 = vmul.f32 %v651, 1.442695
    %v666 = vpow.pop %v665
    %v667 = vmul.f32 %v652, 1.442695
    %v668 = vpow.pop %v667
    %v669 = vsel %vm620, %v654, 0.0
    %670 = vadd.xlane.f32.xlu0 %v669
    %v671 = vpop.xlane.xlu0 %670
    %v672 = vsel %vm620, %v656, 0.0
    %673 = vadd.xlane.f32.xlu0 %v672
    %v674 = vpop.xlane.xlu0 %673
    %v675 = vsel %vm620, %v658, 0.0
    %676 = vadd.xlane.f32.xlu0 %v675
    %v677 = vpop.xlane.xlu0 %676
    %v678 = vsel %vm620, %v660, 0.0
    %679 = vadd.xlane.f32.xlu0 %v678
    %v680 = vpop.xlane.xlu0 %679
    %v681 = vsel %vm620, %v662, 0.0
    %682 = vadd.xlane.f32.xlu0 %v681
    %v683 = vpop.xlane.xlu0 %682
    %v684 = vsel %vm620, %v664, 0.0
    %685 = vadd.xlane.f32.xlu0 %v684
    %v686 = vpop.xlane.xlu0 %685
    %v687 = vsel %vm620, %v666, 0.0
    %688 = vadd.xlane.f32.xlu0 %v687
    %v689 = vpop.xlane.xlu0 %688
    %v690 = vsel %vm620, %v668, 0.0
    %691 = vadd.xlane.f32.xlu0 %v690
    %v692 = vpop.xlane.xlu0 %691
    %v693 = vrcp.pop %v671
    %v694 = vrcp.pop %v674
    %v695 = vrcp.pop %v677
    %v696 = vrcp.pop %v680
    %v697 = vrcp.pop %v683
    %v698 = vrcp.pop %v686
    %v699 = vrcp.pop %v689
    %v700 = vrcp.pop %v692
    %v701 = vmul.f32 %v654, %v693
    %v702 = vmul.f32 %v656, %v694
    %v703 = vmul.f32 %v658, %v695
    %v704 = vmul.f32 %v660, %v696
    %v705 = vmul.f32 %v662, %v697
    %v706 = vmul.f32 %v664, %v698
    %v707 = vmul.f32 %v666, %v699
    %v708 = vmul.f32 %v668, %v700
    %709 = vrot.lane.b32.xlu0 %v233, 64
    %v710 = vpop.permute.xlu0 %709
    %711 = vrot.lane.b32.xlu0 %v238, 64
    %v712 = vpop.permute.xlu0 %711
    %v716 = vsel %vm620, %v701, 0
    %v719 = vsel %vm620, %v702, 0
    %721 = vmatprep.subr.mxu0 0.0
    %722 = vmatpush1.msra.mxu0 %v710
    %723 = vmatprep.subr.mxu0 0.0
    %724 = vmatpush1.msra.mxu0 %v712
    %725 = vmatprep.subr.mxu0 0.0
    %726 = vmatpush1.msra.mxu0 0.0
    %727 = vmatprep.subr.mxu0 0.0
    %728 = vmatpush1.msra.mxu0 0.0
    %729 = vmatprep.subr.mxu0 0.0
    %730 = vmatpush1.msra.mxu0 0.0
    %731 = vmatprep.subr.mxu0 0.0
    %732 = vmatpush1.msra.mxu0 0.0
    %733 = vmatprep.subr.mxu0 0.0
    %734 = vmatpush1.msra.mxu0 0.0
    %735 = vmatprep.subr.mxu0 0.0
    %736 = vmatpush1.msra.mxu0 0.0
    %737 = vmatprep.subr.mxu0 0.0
    %738 = vmatpush1.msra.mxu0 0.0
    %739 = vmatprep.subr.mxu0 0.0
    %740 = vmatpush1.msra.mxu0 0.0
    %741 = vmatprep.subr.mxu0 0.0
    %742 = vmatpush1.msra.mxu0 0.0
    %743 = vmatprep.subr.mxu0 0.0
    %744 = vmatpush1.msra.mxu0 0.0
    %745 = vmatprep.subr.mxu0 0.0
    %746 = vmatpush1.msra.mxu0 0.0
    %747 = vmatprep.subr.mxu0 0.0
    %748 = vmatpush1.msra.mxu0 0.0
    %749 = vmatprep.subr.mxu0 0.0
    %750 = vmatpush1.msra.mxu0 0.0
    %751 = vmatprep.subr.mxu0 0.0
    %752 = vmatpush1.msra.mxu0 0.0
    %753 = vmatprep.subr.mxu0 0.0
    %754 = vmatpush1.msra.mxu0 0.0
    %755 = vmatprep.subr.mxu0 0.0
    %756 = vmatpush1.msra.mxu0 0.0
    %757 = vmatprep.subr.mxu0 0.0
    %758 = vmatpush1.msra.mxu0 0.0
    %759 = vmatprep.subr.mxu0 0.0
    %760 = vmatpush1.msra.mxu0 0.0
    %761 = vmatprep.subr.mxu0 0.0
    %762 = vmatpush1.msra.mxu0 0.0
    %763 = vmatprep.subr.mxu0 0.0
    %764 = vmatpush1.msra.mxu0 0.0
    %765 = vmatprep.subr.mxu0 0.0
    %766 = vmatpush1.msra.mxu0 0.0
    %767 = vmatprep.subr.mxu0 0.0
    %768 = vmatpush1.msra.mxu0 0.0
    %769 = vmatprep.subr.mxu0 0.0
    %770 = vmatpush1.msra.mxu0 0.0
    %771 = vmatprep.subr.mxu0 0.0
    %772 = vmatpush1.msra.mxu0 0.0
    %773 = vmatprep.subr.mxu0 0.0
    %774 = vmatpush1.msra.mxu0 0.0
    %775 = vmatprep.subr.mxu0 0.0
    %776 = vmatpush1.msra.mxu0 0.0
    %777 = vmatprep.subr.mxu0 0.0
    %778 = vmatpush1.msra.mxu0 0.0
    %779 = vmatprep.subr.mxu0 0.0
    %780 = vmatpush1.msra.mxu0 0.0
    %781 = vmatprep.subr.mxu0 0.0
    %782 = vmatpush1.msra.mxu0 0.0
    %783 = vmatprep.subr.mxu0 0.0
    %784 = vmatpush1.msra.mxu0 0.0
    %785 = vmatprep.mubr.f32.mxu0 0.0
    %786 = vmatmul.mubr.f32.gmra.mrb[0].mxu0 %v716
    %v787 = vpop.f32.mrb[0].mxu0
    %v788 = vadd.f32 0.0, %v787
    %v789 = vpop.f32.mrb[0].mxu0
    %790 = vmatprep.mubr.f32.mxu0 0.0
    %791 = vmatmul.mubr.f32.gmra.mrb[0].mxu0 %v719
    %v792 = vpop.f32.mrb[0].mxu0
    %v793 = vadd.f32 0.0, %v792
    %v794 = vpop.f32.mrb[0].mxu0
    %795 = vdwg.mxu0
    %796 = vrot.lane.b32.xlu0 %v260, 64
    %v797 = vpop.permute.xlu0 %796
    %798 = vrot.lane.b32.xlu0 %v262, 64
    %v799 = vpop.permute.xlu0 %798
    %v803 = vsel %vm620, %v703, 0
    %v806 = vsel %vm620, %v704, 0
    %808 = vmatprep.subr.mxu0 0.0
    %809 = vmatpush1.msra.mxu0 %v797
    %810 = vmatprep.subr.mxu0 0.0
    %811 = vmatpush1.msra.mxu0 %v799
    %812 = vmatprep.subr.mxu0 0.0
    %813 = vmatpush1.msra.mxu0 0.0
    %814 = vmatprep.subr.mxu0 0.0
    %815 = vmatpush1.msra.mxu0 0.0
    %816 = vmatprep.subr.mxu0 0.0
    %817 = vmatpush1.msra.mxu0 0.0
    %818 = vmatprep.subr.mxu0 0.0
    %819 = vmatpush1.msra.mxu0 0.0
    %820 = vmatprep.subr.mxu0 0.0
    %821 = vmatpush1.msra.mxu0 0.0
    %822 = vmatprep.subr.mxu0 0.0
    %823 = vmatpush1.msra.mxu0 0.0
    %824 = vmatprep.subr.mxu0 0.0
    %825 = vmatpush1.msra.mxu0 0.0
    %826 = vmatprep.subr.mxu0 0.0
    %827 = vmatpush1.msra.mxu0 0.0
    %828 = vmatprep.subr.mxu0 0.0
    %829 = vmatpush1.msra.mxu0 0.0
    %830 = vmatprep.subr.mxu0 0.0
    %831 = vmatpush1.msra.mxu0 0.0
    %832 = vmatprep.subr.mxu0 0.0
    %833 = vmatpush1.msra.mxu0 0.0
    %834 = vmatprep.subr.mxu0 0.0
    %835 = vmatpush1.msra.mxu0 0.0
    %836 = vmatprep.subr.mxu0 0.0
    %837 = vmatpush1.msra.mxu0 0.0
    %838 = vmatprep.subr.mxu0 0.0
    %839 = vmatpush1.msra.mxu0 0.0
    %840 = vmatprep.subr.mxu0 0.0
    %841 = vmatpush1.msra.mxu0 0.0
    %842 = vmatprep.subr.mxu0 0.0
    %843 = vmatpush1.msra.mxu0 0.0
    %844 = vmatprep.subr.mxu0 0.0
    %845 = vmatpush1.msra.mxu0 0.0
    %846 = vmatprep.subr.mxu0 0.0
    %847 = vmatpush1.msra.mxu0 0.0
    %848 = vmatprep.subr.mxu0 0.0
    %849 = vmatpush1.msra.mxu0 0.0
    %850 = vmatprep.subr.mxu0 0.0
    %851 = vmatpush1.msra.mxu0 0.0
    %852 = vmatprep.subr.mxu0 0.0
    %853 = vmatpush1.msra.mxu0 0.0
    %854 = vmatprep.subr.mxu0 0.0
    %855 = vmatpush1.msra.mxu0 0.0
    %856 = vmatprep.subr.mxu0 0.0
    %857 = vmatpush1.msra.mxu0 0.0
    %858 = vmatprep.subr.mxu0 0.0
    %859 = vmatpush1.msra.mxu0 0.0
    %860 = vmatprep.subr.mxu0 0.0
    %861 = vmatpush1.msra.mxu0 0.0
    %862 = vmatprep.subr.mxu0 0.0
    %863 = vmatpush1.msra.mxu0 0.0
    %864 = vmatprep.subr.mxu0 0.0
    %865 = vmatpush1.msra.mxu0 0.0
    %866 = vmatprep.subr.mxu0 0.0
    %867 = vmatpush1.msra.mxu0 0.0
    %868 = vmatprep.subr.mxu0 0.0
    %869 = vmatpush1.msra.mxu0 0.0
    %870 = vmatprep.subr.mxu0 0.0
    %871 = vmatpush1.msra.mxu0 0.0
    %872 = vmatprep.mubr.f32.mxu0 0.0
    %873 = vmatmul.mubr.f32.gmra.mrb[0].mxu0 %v803
    %v874 = vpop.f32.mrb[0].mxu0
    %v875 = vadd.f32 0.0, %v874
    %v876 = vpop.f32.mrb[0].mxu0
    %877 = vmatprep.mubr.f32.mxu0 0.0
    %878 = vmatmul.mubr.f32.gmra.mrb[0].mxu0 %v806
    %v879 = vpop.f32.mrb[0].mxu0
    %v880 = vadd.f32 0.0, %v879
    %v881 = vpop.f32.mrb[0].mxu0
    %882 = vdwg.mxu0
    %883 = vrot.lane.b32.xlu0 %v264, 64
    %v884 = vpop.permute.xlu0 %883
    %885 = vrot.lane.b32.xlu0 %v266, 64
    %v886 = vpop.permute.xlu0 %885
    %v890 = vsel %vm620, %v705, 0
    %v893 = vsel %vm620, %v706, 0
    %895 = vmatprep.subr.mxu0 0.0
    %896 = vmatpush1.msra.mxu0 %v884
    %897 = vmatprep.subr.mxu0 0.0
    %898 = vmatpush1.msra.mxu0 %v886
    %899 = vmatprep.subr.mxu0 0.0
    %900 = vmatpush1.msra.mxu0 0.0
    %901 = vmatprep.subr.mxu0 0.0
    %902 = vmatpush1.msra.mxu0 0.0
    %903 = vmatprep.subr.mxu0 0.0
    %904 = vmatpush1.msra.mxu0 0.0
    %905 = vmatprep.subr.mxu0 0.0
    %906 = vmatpush1.msra.mxu0 0.0
    %907 = vmatprep.subr.mxu0 0.0
    %908 = vmatpush1.msra.mxu0 0.0
    %909 = vmatprep.subr.mxu0 0.0
    %910 = vmatpush1.msra.mxu0 0.0
    %911 = vmatprep.subr.mxu0 0.0
    %912 = vmatpush1.msra.mxu0 0.0
    %913 = vmatprep.subr.mxu0 0.0
    %914 = vmatpush1.msra.mxu0 0.0
    %915 = vmatprep.subr.mxu0 0.0
    %916 = vmatpush1.msra.mxu0 0.0
    %917 = vmatprep.subr.mxu0 0.0
    %918 = vmatpush1.msra.mxu0 0.0
    %919 = vmatprep.subr.mxu0 0.0
    %920 = vmatpush1.msra.mxu0 0.0
    %921 = vmatprep.subr.mxu0 0.0
    %922 = vmatpush1.msra.mxu0 0.0
    %923 = vmatprep.subr.mxu0 0.0
    %924 = vmatpush1.msra.mxu0 0.0
    %925 = vmatprep.subr.mxu0 0.0
    %926 = vmatpush1.msra.mxu0 0.0
    %927 = vmatprep.subr.mxu0 0.0
    %928 = vmatpush1.msra.mxu0 0.0
    %929 = vmatprep.subr.mxu0 0.0
    %930 = vmatpush1.msra.mxu0 0.0
    %931 = vmatprep.subr.mxu0 0.0
    %932 = vmatpush1.msra.mxu0 0.0
    %933 = vmatprep.subr.mxu0 0.0
    %934 = vmatpush1.msra.mxu0 0.0
    %935 = vmatprep.subr.mxu0 0.0
    %936 = vmatpush1.msra.mxu0 0.0
    %937 = vmatprep.subr.mxu0 0.0
    %938 = vmatpush1.msra.mxu0 0.0
    %939 = vmatprep.subr.mxu0 0.0
    %940 = vmatpush1.msra.mxu0 0.0
    %941 = vmatprep.subr.mxu0 0.0
    %942 = vmatpush1.msra.mxu0 0.0
    %943 = vmatprep.subr.mxu0 0.0
    %944 = vmatpush1.msra.mxu0 0.0
    %945 = vmatprep.subr.mxu0 0.0
    %946 = vmatpush1.msra.mxu0 0.0
    %947 = vmatprep.subr.mxu0 0.0
    %948 = vmatpush1.msra.mxu0 0.0
    %949 = vmatprep.subr.mxu0 0.0
    %950 = vmatpush1.msra.mxu0 0.0
    %951 = vmatprep.subr.mxu0 0.0
    %952 = vmatpush1.msra.mxu0 0.0
    %953 = vmatprep.subr.mxu0 0.0
    %954 = vmatpush1.msra.mxu0 0.0
    %955 = vmatprep.subr.mxu0 0.0
    %956 = vmatpush1.msra.mxu0 0.0
    %957 = vmatprep.subr.mxu0 0.0
    %958 = vmatpush1.msra.mxu0 0.0
    %959 = vmatprep.mubr.f32.mxu0 0.0
    %960 = vmatmul.mubr.f32.gmra.mrb[0].mxu0 %v890
    %v961 = vpop.f32.mrb[0].mxu0
    %v962 = vadd.f32 0.0, %v961
    %v963 = vpop.f32.mrb[0].mxu0
    %964 = vmatprep.mubr.f32.mxu0 0.0
    %965 = vmatmul.mubr.f32.gmra.mrb[0].mxu0 %v893
    %v966 = vpop.f32.mrb[0].mxu0
    %v967 = vadd.f32 0.0, %v966
    %v968 = vpop.f32.mrb[0].mxu0
    %969 = vdwg.mxu0
    %970 = vrot.lane.b32.xlu0 %v268, 64
    %v971 = vpop.permute.xlu0 %970
    %972 = vrot.lane.b32.xlu0 %v270, 64
    %v973 = vpop.permute.xlu0 %972
    %v977 = vsel %vm620, %v707, 0
    %v980 = vsel %vm620, %v708, 0
    %982 = vmatprep.subr.mxu0 0.0
    %983 = vmatpush1.msra.mxu0 %v971
    %984 = vmatprep.subr.mxu0 0.0
    %985 = vmatpush1.msra.mxu0 %v973
    %986 = vmatprep.subr.mxu0 0.0
    %987 = vmatpush1.msra.mxu0 0.0
    %988 = vmatprep.subr.mxu0 0.0
    %989 = vmatpush1.msra.mxu0 0.0
    %990 = vmatprep.subr.mxu0 0.0
    %991 = vmatpush1.msra.mxu0 0.0
    %992 = vmatprep.subr.mxu0 0.0
    %993 = vmatpush1.msra.mxu0 0.0
    %994 = vmatprep.subr.mxu0 0.0
    %995 = vmatpush1.msra.mxu0 0.0
    %996 = vmatprep.subr.mxu0 0.0
    %997 = vmatpush1.msra.mxu0 0.0
    %998 = vmatprep.subr.mxu0 0.0
    %999 = vmatpush1.msra.mxu0 0.0
    %1000 = vmatprep.subr.mxu0 0.0
    %1001 = vmatpush1.msra.mxu0 0.0
    %1002 = vmatprep.subr.mxu0 0.0
    %1003 = vmatpush1.msra.mxu0 0.0
    %1004 = vmatprep.subr.mxu0 0.0
    %1005 = vmatpush1.msra.mxu0 0.0
    %1006 = vmatprep.subr.mxu0 0.0
    %1007 = vmatpush1.msra.mxu0 0.0
    %1008 = vmatprep.subr.mxu0 0.0
    %1009 = vmatpush1.msra.mxu0 0.0
    %1010 = vmatprep.subr.mxu0 0.0
    %1011 = vmatpush1.msra.mxu0 0.0
    %1012 = vmatprep.subr.mxu0 0.0
    %1013 = vmatpush1.msra.mxu0 0.0
    %1014 = vmatprep.subr.mxu0 0.0
    %1015 = vmatpush1.msra.mxu0 0.0
    %1016 = vmatprep.subr.mxu0 0.0
    %1017 = vmatpush1.msra.mxu0 0.0
    %1018 = vmatprep.subr.mxu0 0.0
    %1019 = vmatpush1.msra.mxu0 0.0
    %1020 = vmatprep.subr.mxu0 0.0
    %1021 = vmatpush1.msra.mxu0 0.0
    %1022 = vmatprep.subr.mxu0 0.0
    %1023 = vmatpush1.msra.mxu0 0.0
    %1024 = vmatprep.subr.mxu0 0.0
    %1025 = vmatpush1.msra.mxu0 0.0
    %1026 = vmatprep.subr.mxu0 0.0
    %1027 = vmatpush1.msra.mxu0 0.0
    %1028 = vmatprep.subr.mxu0 0.0
    %1029 = vmatpush1.msra.mxu0 0.0
    %1030 = vmatprep.subr.mxu0 0.0
    %1031 = vmatpush1.msra.mxu0 0.0
    %1032 = vmatprep.subr.mxu0 0.0
    %1033 = vmatpush1.msra.mxu0 0.0
    %1034 = vmatprep.subr.mxu0 0.0
    %1035 = vmatpush1.msra.mxu0 0.0
    %1036 = vmatprep.subr.mxu0 0.0
    %1037 = vmatpush1.msra.mxu0 0.0
    %1038 = vmatprep.subr.mxu0 0.0
    %1039 = vmatpush1.msra.mxu0 0.0
    %1040 = vmatprep.subr.mxu0 0.0
    %1041 = vmatpush1.msra.mxu0 0.0
    %1042 = vmatprep.subr.mxu0 0.0
    %1043 = vmatpush1.msra.mxu0 0.0
    %1044 = vmatprep.subr.mxu0 0.0
    %1045 = vmatpush1.msra.mxu0 0.0
    %1046 = vmatprep.mubr.f32.mxu0 0.0
    %1047 = vmatmul.mubr.f32.gmra.mrb[0].mxu0 %v977
    %v1048 = vpop.f32.mrb[0].mxu0
    %v1049 = vadd.f32 0.0, %v1048
    %v1050 = vpop.f32.mrb[0].mxu0
    %1051 = vmatprep.mubr.f32.mxu0 0.0
    %1052 = vmatmul.mubr.f32.gmra.mrb[0].mxu0 %v980
    %v1053 = vpop.f32.mrb[0].mxu0
    %v1054 = vadd.f32 0.0, %v1053
    %v1055 = vpop.f32.mrb[0].mxu0
    %1056 = vdwg.mxu0
    %1059 = vrot.lane.b32.xlu0 %v875, 8
    %v1060 = vpop.permute.xlu0 %1059
    %1061 = vrot.lane.b32.xlu0 %v880, 8
    %v1062 = vpop.permute.xlu0 %1061
    %1067 = vrot.lane.b32.xlu0 %v962, 16
    %v1068 = vpop.permute.xlu0 %1067
    %1069 = vrot.lane.b32.xlu0 %v967, 16
    %v1070 = vpop.permute.xlu0 %1069
    %1075 = vrot.lane.b32.xlu0 %v1049, 24
    %v1076 = vpop.permute.xlu0 %1075
    %1077 = vrot.lane.b32.xlu0 %v1054, 24
    %v1078 = vpop.permute.xlu0 %1077
    %v1081 = vsel %vm275, %v788, %v1060
    %v1082 = vsel %vm275, %v793, %v1062
    %v1083 = vsel %vm620, %v1081, %v1068
    %v1084 = vsel %vm620, %v1082, %v1070
    %vm1085 = vcmask 195584
    %v1086 = vsel %vm1085, %v1083, %v1076
    %v1087 = vsel %vm1085, %v1084, %v1078
    %v1088 = vld [vmem:[%s6] sm:$0xff]
    %v1089 = vld [vmem:[%s6 + $0x8] sm:$0xff]
    %v1090 = vld [vmem:[%s6 + $0x10] sm:$0xff]
    %v1091 = vld [vmem:[%s6 + $0x18] sm:$0xff]
    %v1092 = vld [vmem:[%s7] sm:$0x1]
    %v1094 = vlaneseq
    %v1095 = vshrl.u32 %v1094, 7
    %v1096 = vsub.s32 0, %v1095
    %v1097 = vrot.slane %v1092, %v1096
    %v1100 = vsel %vm103, %v1086, 0
    %v1103 = vsel %vm103, %v1087, 0
    %1105 = vmatprep.subr.mxu0 0.0
    %1106 = vmatpush1.msra.mxu0 %v1088
    %1107 = vmatprep.subr.mxu0 0.0
    %1108 = vmatpush1.msra.mxu0 %v1089
    %1109 = vmatprep.subr.mxu0 0.0
    %1110 = vmatpush1.msra.mxu0 %v1090
    %1111 = vmatprep.subr.mxu0 0.0
    %1112 = vmatpush1.msra.mxu0 %v1091
    %1113 = vmatprep.subr.mxu0 0.0
    %1114 = vmatpush1.msra.mxu0 0.0
    %1115 = vmatprep.subr.mxu0 0.0
    %1116 = vmatpush1.msra.mxu0 0.0
    %1117 = vmatprep.subr.mxu0 0.0
    %1118 = vmatpush1.msra.mxu0 0.0
    %1119 = vmatprep.subr.mxu0 0.0
    %1120 = vmatpush1.msra.mxu0 0.0
    %1121 = vmatprep.subr.mxu0 0.0
    %1122 = vmatpush1.msra.mxu0 0.0
    %1123 = vmatprep.subr.mxu0 0.0
    %1124 = vmatpush1.msra.mxu0 0.0
    %1125 = vmatprep.subr.mxu0 0.0
    %1126 = vmatpush1.msra.mxu0 0.0
    %1127 = vmatprep.subr.mxu0 0.0
    %1128 = vmatpush1.msra.mxu0 0.0
    %1129 = vmatprep.subr.mxu0 0.0
    %1130 = vmatpush1.msra.mxu0 0.0
    %1131 = vmatprep.subr.mxu0 0.0
    %1132 = vmatpush1.msra.mxu0 0.0
    %1133 = vmatprep.subr.mxu0 0.0
    %1134 = vmatpush1.msra.mxu0 0.0
    %1135 = vmatprep.subr.mxu0 0.0
    %1136 = vmatpush1.msra.mxu0 0.0
    %1137 = vmatprep.subr.mxu0 0.0
    %1138 = vmatpush1.msra.mxu0 0.0
    %1139 = vmatprep.subr.mxu0 0.0
    %1140 = vmatpush1.msra.mxu0 0.0
    %1141 = vmatprep.subr.mxu0 0.0
    %1142 = vmatpush1.msra.mxu0 0.0
    %1143 = vmatprep.subr.mxu0 0.0
    %1144 = vmatpush1.msra.mxu0 0.0
    %1145 = vmatprep.subr.mxu0 0.0
    %1146 = vmatpush1.msra.mxu0 0.0
    %1147 = vmatprep.subr.mxu0 0.0
    %1148 = vmatpush1.msra.mxu0 0.0
    %1149 = vmatprep.subr.mxu0 0.0
    %1150 = vmatpush1.msra.mxu0 0.0
    %1151 = vmatprep.subr.mxu0 0.0
    %1152 = vmatpush1.msra.mxu0 0.0
    %1153 = vmatprep.subr.mxu0 0.0
    %1154 = vmatpush1.msra.mxu0 0.0
    %1155 = vmatprep.subr.mxu0 0.0
    %1156 = vmatpush1.msra.mxu0 0.0
    %1157 = vmatprep.subr.mxu0 0.0
    %1158 = vmatpush1.msra.mxu0 0.0
    %1159 = vmatprep.subr.mxu0 0.0
    %1160 = vmatpush1.msra.mxu0 0.0
    %1161 = vmatprep.subr.mxu0 0.0
    %1162 = vmatpush1.msra.mxu0 0.0
    %1163 = vmatprep.subr.mxu0 0.0
    %1164 = vmatpush1.msra.mxu0 0.0
    %1165 = vmatprep.subr.mxu0 0.0
    %1166 = vmatpush1.msra.mxu0 0.0
    %1167 = vmatprep.subr.mxu0 0.0
    %1168 = vmatpush1.msra.mxu0 0.0
    %1169 = vmatprep.mubr.f32.mxu0 0.0
    %1170 = vmatmul.mubr.f32.gmra.mrb[0].mxu0 %v1100
    %v1171 = vpop.f32.mrb[0].mxu0
    %v1172 = vadd.f32 %v1097, %v1171
    %v1173 = vpop.f32.mrb[0].mxu0
    %1174 = vmatprep.mubr.f32.mxu0 0.0
    %1175 = vmatmul.mubr.f32.gmra.mrb[0].mxu0 %v1103
    %v1176 = vpop.f32.mrb[0].mxu0
    %v1177 = vadd.f32 %v1097, %v1176
    %v1178 = vpop.f32.mrb[0].mxu0
    %1179 = vdwg.mxu0
    %v1180 = vadd.f32 %v145, %v1172
    %v1181 = vadd.f32 %v146, %v1177
    %v1182 = vld [vmem:[%s8] sm:$0x1]
    %v1183 = vld [vmem:[%s9] sm:$0x1]
    %v1184 = vsel %vm103, %v1180, 0.0
    %1185 = vadd.xlane.f32.xlu0 %v1184
    %v1186 = vpop.xlane.xlu0 %1185
    %v1187 = vsel %vm103, %v1181, 0.0
    %1188 = vadd.xlane.f32.xlu0 %v1187
    %v1189 = vpop.xlane.xlu0 %1188
    %v1190 = vmul.f32 %v1186, %v110
    %v1191 = vmul.f32 %v1189, %v110
    %v1192 = vsub.f32 %v1180, %v1190
    %v1193 = vsub.f32 %v1181, %v1191
    %v1194 = vmul.f32 %v1192, %v1192
    %v1195 = vmul.f32 %v1193, %v1193
    %v1196 = vsel %vm103, %v1194, 0.0
    %1197 = vadd.xlane.f32.xlu0 %v1196
    %v1198 = vpop.xlane.xlu0 %1197
    %v1199 = vsel %vm103, %v1195, 0.0
    %1200 = vadd.xlane.f32.xlu0 %v1199
    %v1201 = vpop.xlane.xlu0 %1200
    %v1202 = vmul.f32 %v1198, %v110
    %v1203 = vmul.f32 %v1201, %v110
    %v1204 = vadd.f32 %v1202, 1e-12
    %v1205 = vadd.f32 %v1203, 1e-12
    %v1206 = vrsqrt.pop %v1204
    %v1207 = vrsqrt.pop %v1205
    %v1208 = vmul.f32 %v1192, %v1206
    %v1209 = vmul.f32 %v1193, %v1207
    %v1211 = vlaneseq
    %v1212 = vshrl.u32 %v1211, 7
    %v1213 = vsub.s32 0, %v1212
    %v1214 = vrot.slane %v1182, %v1213
    %v1216 = vmul.f32 %v1208, %v1214
    %v1217 = vmul.f32 %v1209, %v1214
    %v1219 = vlaneseq
    %v1220 = vshrl.u32 %v1219, 7
    %v1221 = vsub.s32 0, %v1220
    %v1222 = vrot.slane %v1183, %v1221
    %v1224 = vadd.f32 %v1216, %v1222
    %v1225 = vadd.f32 %v1217, %v1222
    %v1226 = vld [vmem:[%s10] sm:$0xff]
    %v1227 = vld [vmem:[%s10 + $0x8] sm:$0xff]
    %v1228 = vld [vmem:[%s10 + $0x10] sm:$0xff]
    %v1229 = vld [vmem:[%s10 + $0x18] sm:$0xff]
    %v1230 = vld [vmem:[%s11] sm:$0x1]
    %v1232 = vlaneseq
    %v1233 = vshrl.u32 %v1232, 7
    %v1234 = vsub.s32 0, %v1233
    %v1235 = vrot.slane %v1230, %v1234
    %v1238 = vsel %vm103, %v1224, 0
    %v1241 = vsel %vm103, %v1225, 0
    %1243 = vmatprep.subr.mxu0 0.0
    %1244 = vmatpush1.msra.mxu0 %v1226
    %1245 = vmatprep.subr.mxu0 0.0
    %1246 = vmatpush1.msra.mxu0 %v1227
    %1247 = vmatprep.subr.mxu0 0.0
    %1248 = vmatpush1.msra.mxu0 %v1228
    %1249 = vmatprep.subr.mxu0 0.0
    %1250 = vmatpush1.msra.mxu0 %v1229
    %1251 = vmatprep.subr.mxu0 0.0
    %1252 = vmatpush1.msra.mxu0 0.0
    %1253 = vmatprep.subr.mxu0 0.0
    %1254 = vmatpush1.msra.mxu0 0.0
    %1255 = vmatprep.subr.mxu0 0.0
    %1256 = vmatpush1.msra.mxu0 0.0
    %1257 = vmatprep.subr.mxu0 0.0
    %1258 = vmatpush1.msra.mxu0 0.0
    %1259 = vmatprep.subr.mxu0 0.0
    %1260 = vmatpush1.msra.mxu0 0.0
    %1261 = vmatprep.subr.mxu0 0.0
    %1262 = vmatpush1.msra.mxu0 0.0
    %1263 = vmatprep.subr.mxu0 0.0
    %1264 = vmatpush1.msra.mxu0 0.0
    %1265 = vmatprep.subr.mxu0 0.0
    %1266 = vmatpush1.msra.mxu0 0.0
    %1267 = vmatprep.subr.mxu0 0.0
    %1268 = vmatpush1.msra.mxu0 0.0
    %1269 = vmatprep.subr.mxu0 0.0
    %1270 = vmatpush1.msra.mxu0 0.0
    %1271 = vmatprep.subr.mxu0 0.0
    %1272 = vmatpush1.msra.mxu0 0.0
    %1273 = vmatprep.subr.mxu0 0.0
    %1274 = vmatpush1.msra.mxu0 0.0
    %1275 = vmatprep.subr.mxu0 0.0
    %1276 = vmatpush1.msra.mxu0 0.0
    %1277 = vmatprep.subr.mxu0 0.0
    %1278 = vmatpush1.msra.mxu0 0.0
    %1279 = vmatprep.subr.mxu0 0.0
    %1280 = vmatpush1.msra.mxu0 0.0
    %1281 = vmatprep.subr.mxu0 0.0
    %1282 = vmatpush1.msra.mxu0 0.0
    %1283 = vmatprep.subr.mxu0 0.0
    %1284 = vmatpush1.msra.mxu0 0.0
    %1285 = vmatprep.subr.mxu0 0.0
    %1286 = vmatpush1.msra.mxu0 0.0
    %1287 = vmatprep.subr.mxu0 0.0
    %1288 = vmatpush1.msra.mxu0 0.0
    %1289 = vmatprep.subr.mxu0 0.0
    %1290 = vmatpush1.msra.mxu0 0.0
    %1291 = vmatprep.subr.mxu0 0.0
    %1292 = vmatpush1.msra.mxu0 0.0
    %1293 = vmatprep.subr.mxu0 0.0
    %1294 = vmatpush1.msra.mxu0 0.0
    %1295 = vmatprep.subr.mxu0 0.0
    %1296 = vmatpush1.msra.mxu0 0.0
    %1297 = vmatprep.subr.mxu0 0.0
    %1298 = vmatpush1.msra.mxu0 0.0
    %1299 = vmatprep.subr.mxu0 0.0
    %1300 = vmatpush1.msra.mxu0 0.0
    %1301 = vmatprep.subr.mxu0 0.0
    %1302 = vmatpush1.msra.mxu0 0.0
    %1303 = vmatprep.subr.mxu0 0.0
    %1304 = vmatpush1.msra.mxu0 0.0
    %1305 = vmatprep.subr.mxu0 0.0
    %1306 = vmatpush1.msra.mxu0 0.0
    %1307 = vmatprep.mubr.f32.mxu0 0.0
    %1308 = vmatmul.mubr.f32.gmra.mrb[0].mxu0 %v1238
    %v1309 = vpop.f32.mrb[0].mxu0
    %v1310 = vadd.f32 %v1235, %v1309
    %v1311 = vpop.f32.mrb[0].mxu0
    %1312 = vmatprep.mubr.f32.mxu0 0.0
    %1313 = vmatmul.mubr.f32.gmra.mrb[0].mxu0 %v1241
    %v1314 = vpop.f32.mrb[0].mxu0
    %v1315 = vadd.f32 %v1235, %v1314
    %v1316 = vpop.f32.mrb[0].mxu0
    %1317 = vdwg.mxu0
    %v1318 = vmul.f32 %v1310, %v1310
    %v1319 = vmul.f32 %v1315, %v1315
    %v1320 = vmul.f32 %v1310, %v1318
    %v1321 = vmul.f32 %v1315, %v1319
    %v1322 = vmul.f32 %v1320, 0.044715
    %v1323 = vmul.f32 %v1321, 0.044715
    %v1324 = vadd.f32 %v1310, %v1322
    %v1325 = vadd.f32 %v1315, %v1323
    %v1326 = vmul.f32 %v1324, 0.7978846
    %v1327 = vmul.f32 %v1325, 0.7978846
    %v1328 = vtanh.pop %v1326
    %v1329 = vtanh.pop %v1327
    %v1330 = vadd.f32 %v1328, 1.0
    %v1331 = vadd.f32 %v1329, 1.0
    %v1332 = vmul.f32 %v1330, 0.5
    %v1333 = vmul.f32 %v1331, 0.5
    %v1334 = vmul.f32 %v1310, %v1332
    %v1335 = vmul.f32 %v1315, %v1333
    %v1336 = vld [vmem:[%s12] sm:$0xff]
    %v1337 = vld [vmem:[%s12 + $0x8] sm:$0xff]
    %v1338 = vld [vmem:[%s12 + $0x10] sm:$0xff]
    %v1339 = vld [vmem:[%s12 + $0x18] sm:$0xff]
    %v1340 = vld [vmem:[%s12 + $0x20] sm:$0xff]
    %v1341 = vld [vmem:[%s12 + $0x28] sm:$0xff]
    %v1342 = vld [vmem:[%s12 + $0x30] sm:$0xff]
    %v1343 = vld [vmem:[%s12 + $0x38] sm:$0xff]
    %v1344 = vld [vmem:[%s13] sm:$0x1]
    %v1346 = vlaneseq
    %v1347 = vshrl.u32 %v1346, 7
    %v1348 = vsub.s32 0, %v1347
    %v1349 = vrot.slane %v1344, %v1348
    %vm1351 = vcmask 523264
    %v1353 = vsel %vm1351, %v1334, 0
    %v1356 = vsel %vm1351, %v1335, 0
    %1358 = vmatprep.subr.mxu0 0.0
    %1359 = vmatpush1.msra.mxu0 %v1336
    %1360 = vmatprep.subr.mxu0 0.0
    %1361 = vmatpush1.msra.mxu0 %v1337
    %1362 = vmatprep.subr.mxu0 0.0
    %1363 = vmatpush1.msra.mxu0 %v1338
    %1364 = vmatprep.subr.mxu0 0.0
    %1365 = vmatpush1.msra.mxu0 %v1339
    %1366 = vmatprep.subr.mxu0 0.0
    %1367 = vmatpush1.msra.mxu0 %v1340
    %1368 = vmatprep.subr.mxu0 0.0
    %1369 = vmatpush1.msra.mxu0 %v1341
    %1370 = vmatprep.subr.mxu0 0.0
    %1371 = vmatpush1.msra.mxu0 %v1342
    %1372 = vmatprep.subr.mxu0 0.0
    %1373 = vmatpush1.msra.mxu0 %v1343
    %1374 = vmatprep.subr.mxu0 0.0
    %1375 = vmatpush1.msra.mxu0 0.0
    %1376 = vmatprep.subr.mxu0 0.0
    %1377 = vmatpush1.msra.mxu0 0.0
    %1378 = vmatprep.subr.mxu0 0.0
    %1379 = vmatpush1.msra.mxu0 0.0
    %1380 = vmatprep.subr.mxu0 0.0
    %1381 = vmatpush1.msra.mxu0 0.0
    %1382 = vmatprep.subr.mxu0 0.0
    %1383 = vmatpush1.msra.mxu0 0.0
    %1384 = vmatprep.subr.mxu0 0.0
    %1385 = vmatpush1.msra.mxu0 0.0
    %1386 = vmatprep.subr.mxu0 0.0
    %1387 = vmatpush1.msra.mxu0 0.0
    %1388 = vmatprep.subr.mxu0 0.0
    %1389 = vmatpush1.msra.mxu0 0.0
    %1390 = vmatprep.subr.mxu0 0.0
    %1391 = vmatpush1.msra.mxu0 0.0
    %1392 = vmatprep.subr.mxu0 0.0
    %1393 = vmatpush1.msra.mxu0 0.0
    %1394 = vmatprep.subr.mxu0 0.0
    %1395 = vmatpush1.msra.mxu0 0.0
    %1396 = vmatprep.subr.mxu0 0.0
    %1397 = vmatpush1.msra.mxu0 0.0
    %1398 = vmatprep.subr.mxu0 0.0
    %1399 = vmatpush1.msra.mxu0 0.0
    %1400 = vmatprep.subr.mxu0 0.0
    %1401 = vmatpush1.msra.mxu0 0.0
    %1402 = vmatprep.subr.mxu0 0.0
    %1403 = vmatpush1.msra.mxu0 0.0
    %1404 = vmatprep.subr.mxu0 0.0
    %1405 = vmatpush1.msra.mxu0 0.0
    %1406 = vmatprep.subr.mxu0 0.0
    %1407 = vmatpush1.msra.mxu0 0.0
    %1408 = vmatprep.subr.mxu0 0.0
    %1409 = vmatpush1.msra.mxu0 0.0
    %1410 = vmatprep.subr.mxu0 0.0
    %1411 = vmatpush1.msra.mxu0 0.0
    %1412 = vmatprep.subr.mxu0 0.0
    %1413 = vmatpush1.msra.mxu0 0.0
    %1414 = vmatprep.subr.mxu0 0.0
    %1415 = vmatpush1.msra.mxu0 0.0
    %1416 = vmatprep.subr.mxu0 0.0
    %1417 = vmatpush1.msra.mxu0 0.0
    %1418 = vmatprep.subr.mxu0 0.0
    %1419 = vmatpush1.msra.mxu0 0.0
    %1420 = vmatprep.subr.mxu0 0.0
    %1421 = vmatpush1.msra.mxu0 0.0
    %1422 = vmatprep.mubr.f32.mxu0 0.0
    %1423 = vmatmul.mubr.f32.gmra.mrb[0].mxu0 %v1353
    %v1424 = vpop.f32.mrb[0].mxu0
    %v1425 = vadd.f32 %v1349, %v1424
    %v1426 = vpop.f32.mrb[0].mxu0
    %1427 = vmatprep.mubr.f32.mxu0 0.0
    %1428 = vmatmul.mubr.f32.gmra.mrb[0].mxu0 %v1356
    %v1429 = vpop.f32.mrb[0].mxu0
    %v1430 = vadd.f32 %v1349, %v1429
    %v1431 = vpop.f32.mrb[0].mxu0
    %1432 = vdwg.mxu0
    %v1433 = vadd.f32 %v1224, %v1425
    %v1434 = vadd.f32 %v1225, %v1430
    %v1435 = vld [vmem:[%s14] sm:$0x1]
    %v1436 = vld [vmem:[%s15] sm:$0x1]
    %v1437 = vsel %vm103, %v1433, 0.0
    %1438 = vadd.xlane.f32.xlu0 %v1437
    %v1439 = vpop.xlane.xlu0 %1438
    %v1440 = vsel %vm103, %v1434, 0.0
    %1441 = vadd.xlane.f32.xlu0 %v1440
    %v1442 = vpop.xlane.xlu0 %1441
    %v1443 = vmul.f32 %v1439, %v110
    %v1444 = vmul.f32 %v1442, %v110
    %v1445 = vsub.f32 %v1433, %v1443
    %v1446 = vsub.f32 %v1434, %v1444
    %v1447 = vmul.f32 %v1445, %v1445
    %v1448 = vmul.f32 %v1446, %v1446
    %v1449 = vsel %vm103, %v1447, 0.0
    %1450 = vadd.xlane.f32.xlu0 %v1449
    %v1451 = vpop.xlane.xlu0 %1450
    %v1452 = vsel %vm103, %v1448, 0.0
    %1453 = vadd.xlane.f32.xlu0 %v1452
    %v1454 = vpop.xlane.xlu0 %1453
    %v1455 = vmul.f32 %v1451, %v110
    %v1456 = vmul.f32 %v1454, %v110
    %v1457 = vadd.f32 %v1455, 1e-12
    %v1458 = vadd.f32 %v1456, 1e-12
    %v1459 = vrsqrt.pop %v1457
    %v1460 = vrsqrt.pop %v1458
    %v1461 = vmul.f32 %v1445, %v1459
    %v1462 = vmul.f32 %v1446, %v1460
    %v1464 = vlaneseq
    %v1465 = vshrl.u32 %v1464, 7
    %v1466 = vsub.s32 0, %v1465
    %v1467 = vrot.slane %v1435, %v1466
    %v1469 = vmul.f32 %v1461, %v1467
    %v1470 = vmul.f32 %v1462, %v1467
    %v1472 = vlaneseq
    %v1473 = vshrl.u32 %v1472, 7
    %v1474 = vsub.s32 0, %v1473
    %v1475 = vrot.slane %v1436, %v1474
    %v1477 = vadd.f32 %v1469, %v1475
    %v1478 = vadd.f32 %v1470, %v1475
    %s1479 = scalar_lea.vmem %s4, 32
    %v1480 = vld [vmem:[%s1479] sm:$0xff]
    %v1481 = vld [vmem:[%s1479 + $0x8] sm:$0xff]
    %v1482 = vld [vmem:[%s1479 + $0x10] sm:$0xff]
    %v1483 = vld [vmem:[%s1479 + $0x18] sm:$0xff]
    %s1484 = scalar_lea.vmem %s5, 1
    %v1485 = vld [vmem:[%s1484] sm:$0x1]
    %v1487 = vlaneseq
    %v1488 = vshrl.u32 %v1487, 7
    %v1489 = vsub.s32 0, %v1488
    %v1490 = vrot.slane %v1485, %v1489
    %v1493 = vsel %vm103, %v1477, 0
    %v1496 = vsel %vm103, %v1478, 0
    %1498 = vmatprep.subr.mxu0 0.0
    %1499 = vmatpush1.msra.mxu0 %v1480
    %1500 = vmatprep.subr.mxu0 0.0
    %1501 = vmatpush1.msra.mxu0 %v1481
    %1502 = vmatprep.subr.mxu0 0.0
    %1503 = vmatpush1.msra.mxu0 %v1482
    %1504 = vmatprep.subr.mxu0 0.0
    %1505 = vmatpush1.msra.mxu0 %v1483
    %1506 = vmatprep.subr.mxu0 0.0
    %1507 = vmatpush1.msra.mxu0 0.0
    %1508 = vmatprep.subr.mxu0 0.0
    %1509 = vmatpush1.msra.mxu0 0.0
    %1510 = vmatprep.subr.mxu0 0.0
    %1511 = vmatpush1.msra.mxu0 0.0
    %1512 = vmatprep.subr.mxu0 0.0
    %1513 = vmatpush1.msra.mxu0 0.0
    %1514 = vmatprep.subr.mxu0 0.0
    %1515 = vmatpush1.msra.mxu0 0.0
    %1516 = vmatprep.subr.mxu0 0.0
    %1517 = vmatpush1.msra.mxu0 0.0
    %1518 = vmatprep.subr.mxu0 0.0
    %1519 = vmatpush1.msra.mxu0 0.0
    %1520 = vmatprep.subr.mxu0 0.0
    %1521 = vmatpush1.msra.mxu0 0.0
    %1522 = vmatprep.subr.mxu0 0.0
    %1523 = vmatpush1.msra.mxu0 0.0
    %1524 = vmatprep.subr.mxu0 0.0
    %1525 = vmatpush1.msra.mxu0 0.0
    %1526 = vmatprep.subr.mxu0 0.0
    %1527 = vmatpush1.msra.mxu0 0.0
    %1528 = vmatprep.subr.mxu0 0.0
    %1529 = vmatpush1.msra.mxu0 0.0
    %1530 = vmatprep.subr.mxu0 0.0
    %1531 = vmatpush1.msra.mxu0 0.0
    %1532 = vmatprep.subr.mxu0 0.0
    %1533 = vmatpush1.msra.mxu0 0.0
    %1534 = vmatprep.subr.mxu0 0.0
    %1535 = vmatpush1.msra.mxu0 0.0
    %1536 = vmatprep.subr.mxu0 0.0
    %1537 = vmatpush1.msra.mxu0 0.0
    %1538 = vmatprep.subr.mxu0 0.0
    %1539 = vmatpush1.msra.mxu0 0.0
    %1540 = vmatprep.subr.mxu0 0.0
    %1541 = vmatpush1.msra.mxu0 0.0
    %1542 = vmatprep.subr.mxu0 0.0
    %1543 = vmatpush1.msra.mxu0 0.0
    %1544 = vmatprep.subr.mxu0 0.0
    %1545 = vmatpush1.msra.mxu0 0.0
    %1546 = vmatprep.subr.mxu0 0.0
    %1547 = vmatpush1.msra.mxu0 0.0
    %1548 = vmatprep.subr.mxu0 0.0
    %1549 = vmatpush1.msra.mxu0 0.0
    %1550 = vmatprep.subr.mxu0 0.0
    %1551 = vmatpush1.msra.mxu0 0.0
    %1552 = vmatprep.subr.mxu0 0.0
    %1553 = vmatpush1.msra.mxu0 0.0
    %1554 = vmatprep.subr.mxu0 0.0
    %1555 = vmatpush1.msra.mxu0 0.0
    %1556 = vmatprep.subr.mxu0 0.0
    %1557 = vmatpush1.msra.mxu0 0.0
    %1558 = vmatprep.subr.mxu0 0.0
    %1559 = vmatpush1.msra.mxu0 0.0
    %1560 = vmatprep.subr.mxu0 0.0
    %1561 = vmatpush1.msra.mxu0 0.0
    %1562 = vmatprep.mubr.f32.mxu0 0.0
    %1563 = vmatmul.mubr.f32.gmra.mrb[0].mxu0 %v1493
    %v1564 = vpop.f32.mrb[0].mxu0
    %v1565 = vadd.f32 %v1490, %v1564
    %v1566 = vpop.f32.mrb[0].mxu0
    %1567 = vmatprep.mubr.f32.mxu0 0.0
    %1568 = vmatmul.mubr.f32.gmra.mrb[0].mxu0 %v1496
    %v1569 = vpop.f32.mrb[0].mxu0
    %v1570 = vadd.f32 %v1490, %v1569
    %v1571 = vpop.f32.mrb[0].mxu0
    %1572 = vdwg.mxu0
    %v1573 = vmul.f32 %v1565, 0.35355338
    %v1574 = vmul.f32 %v1570, 0.35355338
    %1577 = vrot.lane.b32.xlu0 %v1573, 120
    %v1578 = vpop.permute.xlu0 %1577
    %1579 = vrot.lane.b32.xlu0 %v1574, 120
    %v1580 = vpop.permute.xlu0 %1579
    %1581 = vrot.lane.b32.xlu0 %v1573, 112
    %v1582 = vpop.permute.xlu0 %1581
    %1583 = vrot.lane.b32.xlu0 %v1574, 112
    %v1584 = vpop.permute.xlu0 %1583
    %1585 = vrot.lane.b32.xlu0 %v1573, 104
    %v1586 = vpop.permute.xlu0 %1585
    %1587 = vrot.lane.b32.xlu0 %v1574, 104
    %v1588 = vpop.permute.xlu0 %1587
    %1591 = vrot.lane.b32.xlu0 %v1565, 120
    %v1592 = vpop.permute.xlu0 %1591
    %1593 = vrot.lane.b32.xlu0 %v1570, 120
    %v1594 = vpop.permute.xlu0 %1593
    %1595 = vrot.lane.b32.xlu0 %v1565, 112
    %v1596 = vpop.permute.xlu0 %1595
    %1597 = vrot.lane.b32.xlu0 %v1570, 112
    %v1598 = vpop.permute.xlu0 %1597
    %1599 = vrot.lane.b32.xlu0 %v1565, 104
    %v1600 = vpop.permute.xlu0 %1599
    %1601 = vrot.lane.b32.xlu0 %v1570, 104
    %v1602 = vpop.permute.xlu0 %1601
    %1603 = vrot.lane.b32.xlu0 %v1565, 96
    %v1604 = vpop.permute.xlu0 %1603
    %1605 = vrot.lane.b32.xlu0 %v1570, 96
    %v1606 = vpop.permute.xlu0 %1605
    %v1607 = vsel %vm275, %v1573, 0
    %v1609 = vsel %vm275, %v1574, 0
    %v1611 = vsel %vm275, %v1604, 0
    %v1613 = vsel %vm275, %v1606, 0
    %1615 = vmatprep.subr.mxu0 0.0
    %1616 = vmatpush1.xpose.msra.mxu0 %v1611
    %1617 = vmatprep.subr.mxu0 0.0
    %1618 = vmatpush1.xpose.msra.mxu0 %v1613
    %1619 = vmatprep.subr.mxu0 0.0
    %1620 = vmatpush1.xpose.msra.mxu0 0.0
    %1621 = vmatprep.subr.mxu0 0.0
    %1622 = vmatpush1.xpose.msra.mxu0 0.0
    %1623 = vmatprep.subr.mxu0 0.0
    %1624 = vmatpush1.xpose.msra.mxu0 0.0
    %1625 = vmatprep.subr.mxu0 0.0
    %1626 = vmatpush1.xpose.msra.mxu0 0.0
    %1627 = vmatprep.subr.mxu0 0.0
    %1628 = vmatpush1.xpose.msra.mxu0 0.0
    %1629 = vmatprep.subr.mxu0 0.0
    %1630 = vmatpush1.xpose.msra.mxu0 0.0
    %1631 = vmatprep.subr.mxu0 0.0
    %1632 = vmatpush1.xpose.msra.mxu0 0.0
    %1633 = vmatprep.subr.mxu0 0.0
    %1634 = vmatpush1.xpose.msra.mxu0 0.0
    %1635 = vmatprep.subr.mxu0 0.0
    %1636 = vmatpush1.xpose.msra.mxu0 0.0
    %1637 = vmatprep.subr.mxu0 0.0
    %1638 = vmatpush1.xpose.msra.mxu0 0.0
    %1639 = vmatprep.subr.mxu0 0.0
    %1640 = vmatpush1.xpose.msra.mxu0 0.0
    %1641 = vmatprep.subr.mxu0 0.0
    %1642 = vmatpush1.xpose.msra.mxu0 0.0
    %1643 = vmatprep.subr.mxu0 0.0
    %1644 = vmatpush1.xpose.msra.mxu0 0.0
    %1645 = vmatprep.subr.mxu0 0.0
    %1646 = vmatpush1.xpose.msra.mxu0 0.0
    %1647 = vmatprep.subr.mxu0 0.0
    %1648 = vmatpush1.xpose.msra.mxu0 0.0
    %1649 = vmatprep.subr.mxu0 0.0
    %1650 = vmatpush1.xpose.msra.mxu0 0.0
    %1651 = vmatprep.subr.mxu0 0.0
    %1652 = vmatpush1.xpose.msra.mxu0 0.0
    %1653 = vmatprep.subr.mxu0 0.0
    %1654 = vmatpush1.xpose.msra.mxu0 0.0
    %1655 = vmatprep.subr.mxu0 0.0
    %1656 = vmatpush1.xpose.msra.mxu0 0.0
    %1657 = vmatprep.subr.mxu0 0.0
    %1658 = vmatpush1.xpose.msra.mxu0 0.0
    %1659 = vmatprep.subr.mxu0 0.0
    %1660 = vmatpush1.xpose.msra.mxu0 0.0
    %1661 = vmatprep.subr.mxu0 0.0
    %1662 = vmatpush1.xpose.msra.mxu0 0.0
    %1663 = vmatprep.subr.mxu0 0.0
    %1664 = vmatpush1.xpose.msra.mxu0 0.0
    %1665 = vmatprep.subr.mxu0 0.0
    %1666 = vmatpush1.xpose.msra.mxu0 0.0
    %1667 = vmatprep.subr.mxu0 0.0
    %1668 = vmatpush1.xpose.msra.mxu0 0.0
    %1669 = vmatprep.subr.mxu0 0.0
    %1670 = vmatpush1.xpose.msra.mxu0 0.0
    %1671 = vmatprep.subr.mxu0 0.0
    %1672 = vmatpush1.xpose.msra.mxu0 0.0
    %1673 = vmatprep.subr.mxu0 0.0
    %1674 = vmatpush1.xpose.msra.mxu0 0.0
    %1675 = vmatprep.subr.mxu0 0.0
    %1676 = vmatpush1.xpose.msra.mxu0 0.0
    %1677 = vmatprep.subr.mxu0 0.0
    %1678 = vmatpush1.xpose.msra.mxu0 0.0
    %1679 = vmatprep.mubr.f32.mxu0 0.0
    %1680 = vmatmul.mubr.f32.gmra.mrb[0].mxu0 %v1607
    %v1681 = vpop.f32.mrb[0].mxu0
    %v1682 = vadd.f32 %v147, %v1681
    %v1683 = vpop.f32.mrb[0].mxu0
    %1684 = vmatprep.mubr.f32.mxu0 0.0
    %1685 = vmatmul.mubr.f32.gmra.mrb[0].mxu0 %v1609
    %v1686 = vpop.f32.mrb[0].mxu0
    %v1687 = vadd.f32 %v148, %v1686
    %v1688 = vpop.f32.mrb[0].mxu0
    %1689 = vdwg.mxu0
    %1690 = vrot.lane.b32.xlu0 %v1592, 96
    %v1691 = vpop.permute.xlu0 %1690
    %1692 = vrot.lane.b32.xlu0 %v1594, 96
    %v1693 = vpop.permute.xlu0 %1692
    %v1694 = vsel %vm275, %v1578, 0
    %v1696 = vsel %vm275, %v1580, 0
    %v1698 = vsel %vm275, %v1691, 0
    %v1700 = vsel %vm275, %v1693, 0
    %1702 = vmatprep.subr.mxu0 0.0
    %1703 = vmatpush1.xpose.msra.mxu0 %v1698
    %1704 = vmatprep.subr.mxu0 0.0
    %1705 = vmatpush1.xpose.msra.mxu0 %v1700
    %1706 = vmatprep.subr.mxu0 0.0
    %1707 = vmatpush1.xpose.msra.mxu0 0.0
    %1708 = vmatprep.subr.mxu0 0.0
    %1709 = vmatpush1.xpose.msra.mxu0 0.0
    %1710 = vmatprep.subr.mxu0 0.0
    %1711 = vmatpush1.xpose.msra.mxu0 0.0
    %1712 = vmatprep.subr.mxu0 0.0
    %1713 = vmatpush1.xpose.msra.mxu0 0.0
    %1714 = vmatprep.subr.mxu0 0.0
    %1715 = vmatpush1.xpose.msra.mxu0 0.0
    %1716 = vmatprep.subr.mxu0 0.0
    %1717 = vmatpush1.xpose.msra.mxu0 0.0
    %1718 = vmatprep.subr.mxu0 0.0
    %1719 = vmatpush1.xpose.msra.mxu0 0.0
    %1720 = vmatprep.subr.mxu0 0.0
    %1721 = vmatpush1.xpose.msra.mxu0 0.0
    %1722 = vmatprep.subr.mxu0 0.0
    %1723 = vmatpush1.xpose.msra.mxu0 0.0
    %1724 = vmatprep.subr.mxu0 0.0
    %1725 = vmatpush1.xpose.msra.mxu0 0.0
    %1726 = vmatprep.subr.mxu0 0.0
    %1727 = vmatpush1.xpose.msra.mxu0 0.0
    %1728 = vmatprep.subr.mxu0 0.0
    %1729 = vmatpush1.xpose.msra.mxu0 0.0
    %1730 = vmatprep.subr.mxu0 0.0
    %1731 = vmatpush1.xpose.msra.mxu0 0.0
    %1732 = vmatprep.subr.mxu0 0.0
    %1733 = vmatpush1.xpose.msra.mxu0 0.0
    %1734 = vmatprep.subr.mxu0 0.0
    %1735 = vmatpush1.xpose.msra.mxu0 0.0
    %1736 = vmatprep.subr.mxu0 0.0
    %1737 = vmatpush1.xpose.msra.mxu0 0.0
    %1738 = vmatprep.subr.mxu0 0.0
    %1739 = vmatpush1.xpose.msra.mxu0 0.0
    %1740 = vmatprep.subr.mxu0 0.0
    %1741 = vmatpush1.xpose.msra.mxu0 0.0
    %1742 = vmatprep.subr.mxu0 0.0
    %1743 = vmatpush1.xpose.msra.mxu0 0.0
    %1744 = vmatprep.subr.mxu0 0.0
    %1745 = vmatpush1.xpose.msra.mxu0 0.0
    %1746 = vmatprep.subr.mxu0 0.0
    %1747 = vmatpush1.xpose.msra.mxu0 0.0
    %1748 = vmatprep.subr.mxu0 0.0
    %1749 = vmatpush1.xpose.msra.mxu0 0.0
    %1750 = vmatprep.subr.mxu0 0.0
    %1751 = vmatpush1.xpose.msra.mxu0 0.0
    %1752 = vmatprep.subr.mxu0 0.0
    %1753 = vmatpush1.xpose.msra.mxu0 0.0
    %1754 = vmatprep.subr.mxu0 0.0
    %1755 = vmatpush1.xpose.msra.mxu0 0.0
    %1756 = vmatprep.subr.mxu0 0.0
    %1757 = vmatpush1.xpose.msra.mxu0 0.0
    %1758 = vmatprep.subr.mxu0 0.0
    %1759 = vmatpush1.xpose.msra.mxu0 0.0
    %1760 = vmatprep.subr.mxu0 0.0
    %1761 = vmatpush1.xpose.msra.mxu0 0.0
    %1762 = vmatprep.subr.mxu0 0.0
    %1763 = vmatpush1.xpose.msra.mxu0 0.0
    %1764 = vmatprep.subr.mxu0 0.0
    %1765 = vmatpush1.xpose.msra.mxu0 0.0
    %1766 = vmatprep.mubr.f32.mxu0 0.0
    %1767 = vmatmul.mubr.f32.gmra.mrb[0].mxu0 %v1694
    %v1768 = vpop.f32.mrb[0].mxu0
    %v1769 = vadd.f32 %v147, %v1768
    %v1770 = vpop.f32.mrb[0].mxu0
    %1771 = vmatprep.mubr.f32.mxu0 0.0
    %1772 = vmatmul.mubr.f32.gmra.mrb[0].mxu0 %v1696
    %v1773 = vpop.f32.mrb[0].mxu0
    %v1774 = vadd.f32 %v148, %v1773
    %v1775 = vpop.f32.mrb[0].mxu0
    %1776 = vdwg.mxu0
    %1777 = vrot.lane.b32.xlu0 %v1596, 96
    %v1778 = vpop.permute.xlu0 %1777
    %1779 = vrot.lane.b32.xlu0 %v1598, 96
    %v1780 = vpop.permute.xlu0 %1779
    %v1781 = vsel %vm275, %v1582, 0
    %v1783 = vsel %vm275, %v1584, 0
    %v1785 = vsel %vm275, %v1778, 0
    %v1787 = vsel %vm275, %v1780, 0
    %1789 = vmatprep.subr.mxu0 0.0
    %1790 = vmatpush1.xpose.msra.mxu0 %v1785
    %1791 = vmatprep.subr.mxu0 0.0
    %1792 = vmatpush1.xpose.msra.mxu0 %v1787
    %1793 = vmatprep.subr.mxu0 0.0
    %1794 = vmatpush1.xpose.msra.mxu0 0.0
    %1795 = vmatprep.subr.mxu0 0.0
    %1796 = vmatpush1.xpose.msra.mxu0 0.0
    %1797 = vmatprep.subr.mxu0 0.0
    %1798 = vmatpush1.xpose.msra.mxu0 0.0
    %1799 = vmatprep.subr.mxu0 0.0
    %1800 = vmatpush1.xpose.msra.mxu0 0.0
    %1801 = vmatprep.subr.mxu0 0.0
    %1802 = vmatpush1.xpose.msra.mxu0 0.0
    %1803 = vmatprep.subr.mxu0 0.0
    %1804 = vmatpush1.xpose.msra.mxu0 0.0
    %1805 = vmatprep.subr.mxu0 0.0
    %1806 = vmatpush1.xpose.msra.mxu0 0.0
    %1807 = vmatprep.subr.mxu0 0.0
    %1808 = vmatpush1.xpose.msra.mxu0 0.0
    %1809 = vmatprep.subr.mxu0 0.0
    %1810 = vmatpush1.xpose.msra.mxu0 0.0
    %1811 = vmatprep.subr.mxu0 0.0
    %1812 = vmatpush1.xpose.msra.mxu0 0.0
    %1813 = vmatprep.subr.mxu0 0.0
    %1814 = vmatpush1.xpose.msra.mxu0 0.0
    %1815 = vmatprep.subr.mxu0 0.0
    %1816 = vmatpush1.xpose.msra.mxu0 0.0
    %1817 = vmatprep.subr.mxu0 0.0
    %1818 = vmatpush1.xpose.msra.mxu0 0.0
    %1819 = vmatprep.subr.mxu0 0.0
    %1820 = vmatpush1.xpose.msra.mxu0 0.0
    %1821 = vmatprep.subr.mxu0 0.0
    %1822 = vmatpush1.xpose.msra.mxu0 0.0
    %1823 = vmatprep.subr.mxu0 0.0
    %1824 = vmatpush1.xpose.msra.mxu0 0.0
    %1825 = vmatprep.subr.mxu0 0.0
    %1826 = vmatpush1.xpose.msra.mxu0 0.0
    %1827 = vmatprep.subr.mxu0 0.0
    %1828 = vmatpush1.xpose.msra.mxu0 0.0
    %1829 = vmatprep.subr.mxu0 0.0
    %1830 = vmatpush1.xpose.msra.mxu0 0.0
    %1831 = vmatprep.subr.mxu0 0.0
    %1832 = vmatpush1.xpose.msra.mxu0 0.0
    %1833 = vmatprep.subr.mxu0 0.0
    %1834 = vmatpush1.xpose.msra.mxu0 0.0
    %1835 = vmatprep.subr.mxu0 0.0
    %1836 = vmatpush1.xpose.msra.mxu0 0.0
    %1837 = vmatprep.subr.mxu0 0.0
    %1838 = vmatpush1.xpose.msra.mxu0 0.0
    %1839 = vmatprep.subr.mxu0 0.0
    %1840 = vmatpush1.xpose.msra.mxu0 0.0
    %1841 = vmatprep.subr.mxu0 0.0
    %1842 = vmatpush1.xpose.msra.mxu0 0.0
    %1843 = vmatprep.subr.mxu0 0.0
    %1844 = vmatpush1.xpose.msra.mxu0 0.0
    %1845 = vmatprep.subr.mxu0 0.0
    %1846 = vmatpush1.xpose.msra.mxu0 0.0
    %1847 = vmatprep.subr.mxu0 0.0
    %1848 = vmatpush1.xpose.msra.mxu0 0.0
    %1849 = vmatprep.subr.mxu0 0.0
    %1850 = vmatpush1.xpose.msra.mxu0 0.0
    %1851 = vmatprep.subr.mxu0 0.0
    %1852 = vmatpush1.xpose.msra.mxu0 0.0
    %1853 = vmatprep.mubr.f32.mxu0 0.0
    %1854 = vmatmul.mubr.f32.gmra.mrb[0].mxu0 %v1781
    %v1855 = vpop.f32.mrb[0].mxu0
    %v1856 = vadd.f32 %v147, %v1855
    %v1857 = vpop.f32.mrb[0].mxu0
    %1858 = vmatprep.mubr.f32.mxu0 0.0
    %1859 = vmatmul.mubr.f32.gmra.mrb[0].mxu0 %v1783
    %v1860 = vpop.f32.mrb[0].mxu0
    %v1861 = vadd.f32 %v148, %v1860
    %v1862 = vpop.f32.mrb[0].mxu0
    %1863 = vdwg.mxu0
    %1864 = vrot.lane.b32.xlu0 %v1600, 96
    %v1865 = vpop.permute.xlu0 %1864
    %1866 = vrot.lane.b32.xlu0 %v1602, 96
    %v1867 = vpop.permute.xlu0 %1866
    %v1868 = vsel %vm275, %v1586, 0
    %v1870 = vsel %vm275, %v1588, 0
    %v1872 = vsel %vm275, %v1865, 0
    %v1874 = vsel %vm275, %v1867, 0
    %1876 = vmatprep.subr.mxu0 0.0
    %1877 = vmatpush1.xpose.msra.mxu0 %v1872
    %1878 = vmatprep.subr.mxu0 0.0
    %1879 = vmatpush1.xpose.msra.mxu0 %v1874
    %1880 = vmatprep.subr.mxu0 0.0
    %1881 = vmatpush1.xpose.msra.mxu0 0.0
    %1882 = vmatprep.subr.mxu0 0.0
    %1883 = vmatpush1.xpose.msra.mxu0 0.0
    %1884 = vmatprep.subr.mxu0 0.0
    %1885 = vmatpush1.xpose.msra.mxu0 0.0
    %1886 = vmatprep.subr.mxu0 0.0
    %1887 = vmatpush1.xpose.msra.mxu0 0.0
    %1888 = vmatprep.subr.mxu0 0.0
    %1889 = vmatpush1.xpose.msra.mxu0 0.0
    %1890 = vmatprep.subr.mxu0 0.0
    %1891 = vmatpush1.xpose.msra.mxu0 0.0
    %1892 = vmatprep.subr.mxu0 0.0
    %1893 = vmatpush1.xpose.msra.mxu0 0.0
    %1894 = vmatprep.subr.mxu0 0.0
    %1895 = vmatpush1.xpose.msra.mxu0 0.0
    %1896 = vmatprep.subr.mxu0 0.0
    %1897 = vmatpush1.xpose.msra.mxu0 0.0
    %1898 = vmatprep.subr.mxu0 0.0
    %1899 = vmatpush1.xpose.msra.mxu0 0.0
    %1900 = vmatprep.subr.mxu0 0.0
    %1901 = vmatpush1.xpose.msra.mxu0 0.0
    %1902 = vmatprep.subr.mxu0 0.0
    %1903 = vmatpush1.xpose.msra.mxu0 0.0
    %1904 = vmatprep.subr.mxu0 0.0
    %1905 = vmatpush1.xpose.msra.mxu0 0.0
    %1906 = vmatprep.subr.mxu0 0.0
    %1907 = vmatpush1.xpose.msra.mxu0 0.0
    %1908 = vmatprep.subr.mxu0 0.0
    %1909 = vmatpush1.xpose.msra.mxu0 0.0
    %1910 = vmatprep.subr.mxu0 0.0
    %1911 = vmatpush1.xpose.msra.mxu0 0.0
    %1912 = vmatprep.subr.mxu0 0.0
    %1913 = vmatpush1.xpose.msra.mxu0 0.0
    %1914 = vmatprep.subr.mxu0 0.0
    %1915 = vmatpush1.xpose.msra.mxu0 0.0
    %1916 = vmatprep.subr.mxu0 0.0
    %1917 = vmatpush1.xpose.msra.mxu0 0.0
    %1918 = vmatprep.subr.mxu0 0.0
    %1919 = vmatpush1.xpose.msra.mxu0 0.0
    %1920 = vmatprep.subr.mxu0 0.0
    %1921 = vmatpush1.xpose.msra.mxu0 0.0
    %1922 = vmatprep.subr.mxu0 0.0
    %1923 = vmatpush1.xpose.msra.mxu0 0.0
    %1924 = vmatprep.subr.mxu0 0.0
    %1925 = vmatpush1.xpose.msra.mxu0 0.0
    %1926 = vmatprep.subr.mxu0 0.0
    %1927 = vmatpush1.xpose.msra.mxu0 0.0
    %1928 = vmatprep.subr.mxu0 0.0
    %1929 = vmatpush1.xpose.msra.mxu0 0.0
    %1930 = vmatprep.subr.mxu0 0.0
    %1931 = vmatpush1.xpose.msra.mxu0 0.0
    %1932 = vmatprep.subr.mxu0 0.0
    %1933 = vmatpush1.xpose.msra.mxu0 0.0
    %1934 = vmatprep.subr.mxu0 0.0
    %1935 = vmatpush1.xpose.msra.mxu0 0.0
    %1936 = vmatprep.subr.mxu0 0.0
    %1937 = vmatpush1.xpose.msra.mxu0 0.0
    %1938 = vmatprep.subr.mxu0 0.0
    %1939 = vmatpush1.xpose.msra.mxu0 0.0
    %1940 = vmatprep.mubr.f32.mxu0 0.0
    %1941 = vmatmul.mubr.f32.gmra.mrb[0].mxu0 %v1868
    %v1942 = vpop.f32.mrb[0].mxu0
    %v1943 = vadd.f32 %v147, %v1942
    %v1944 = vpop.f32.mrb[0].mxu0
    %1945 = vmatprep.mubr.f32.mxu0 0.0
    %1946 = vmatmul.mubr.f32.gmra.mrb[0].mxu0 %v1870
    %v1947 = vpop.f32.mrb[0].mxu0
    %v1948 = vadd.f32 %v148, %v1947
    %v1949 = vpop.f32.mrb[0].mxu0
    %1950 = vdwg.mxu0
    %v1951 = vsel %vm620, %v1682, -inf
    %1952 = vmax.xlane.f32.xlu0 %v1951
    %v1953 = vpop.xlane.xlu0 %1952
    %v1954 = vsel %vm620, %v1687, -inf
    %1955 = vmax.xlane.f32.xlu0 %v1954
    %v1956 = vpop.xlane.xlu0 %1955
    %v1957 = vsel %vm620, %v1769, -inf
    %1958 = vmax.xlane.f32.xlu0 %v1957
    %v1959 = vpop.xlane.xlu0 %1958
    %v1960 = vsel %vm620, %v1774, -inf
    %1961 = vmax.xlane.f32.xlu0 %v1960
    %v1962 = vpop.xlane.xlu0 %1961
    %v1963 = vsel %vm620, %v1856, -inf
    %1964 = vmax.xlane.f32.xlu0 %v1963
    %v1965 = vpop.xlane.xlu0 %1964
    %v1966 = vsel %vm620, %v1861, -inf
    %1967 = vmax.xlane.f32.xlu0 %v1966
    %v1968 = vpop.xlane.xlu0 %1967
    %v1969 = vsel %vm620, %v1943, -inf
    %1970 = vmax.xlane.f32.xlu0 %v1969
    %v1971 = vpop.xlane.xlu0 %1970
    %v1972 = vsel %vm620, %v1948, -inf
    %1973 = vmax.xlane.f32.xlu0 %v1972
    %v1974 = vpop.xlane.xlu0 %1973
    %v1975 = vsub.f32 %v1682, %v1953
    %v1976 = vsub.f32 %v1687, %v1956
    %v1977 = vsub.f32 %v1769, %v1959
    %v1978 = vsub.f32 %v1774, %v1962
    %v1979 = vsub.f32 %v1856, %v1965
    %v1980 = vsub.f32 %v1861, %v1968
    %v1981 = vsub.f32 %v1943, %v1971
    %v1982 = vsub.f32 %v1948, %v1974
    %v1983 = vmul.f32 %v1975, 1.442695
    %v1984 = vpow.pop %v1983
    %v1985 = vmul.f32 %v1976, 1.442695
    %v1986 = vpow.pop %v1985
    %v1987 = vmul.f32 %v1977, 1.442695
    %v1988 = vpow.pop %v1987
    %v1989 = vmul.f32 %v1978, 1.442695
    %v1990 = vpow.pop %v1989
    %v1991 = vmul.f32 %v1979, 1.442695
    %v1992 = vpow.pop %v1991
    %v1993 = vmul.f32 %v1980, 1.442695
    %v1994 = vpow.pop %v1993
    %v1995 = vmul.f32 %v1981, 1.442695
    %v1996 = vpow.pop %v1995
    %v1997 = vmul.f32 %v1982, 1.442695
    %v1998 = vpow.pop %v1997
    %v1999 = vsel %vm620, %v1984, 0.0
    %2000 = vadd.xlane.f32.xlu0 %v1999
    %v2001 = vpop.xlane.xlu0 %2000
    %v2002 = vsel %vm620, %v1986, 0.0
    %2003 = vadd.xlane.f32.xlu0 %v2002
    %v2004 = vpop.xlane.xlu0 %2003
    %v2005 = vsel %vm620, %v1988, 0.0
    %2006 = vadd.xlane.f32.xlu0 %v2005
    %v2007 = vpop.xlane.xlu0 %2006
    %v2008 = vsel %vm620, %v1990, 0.0
    %2009 = vadd.xlane.f32.xlu0 %v2008
    %v2010 = vpop.xlane.xlu0 %2009
    %v2011 = vsel %vm620, %v1992, 0.0
    %2012 = vadd.xlane.f32.xlu0 %v2011
    %v2013 = vpop.xlane.xlu0 %2012
    %v2014 = vsel %vm620, %v1994, 0.0
    %2015 = vadd.xlane.f32.xlu0 %v2014
    %v2016 = vpop.xlane.xlu0 %2015
    %v2017 = vsel %vm620, %v1996, 0.0
    %2018 = vadd.xlane.f32.xlu0 %v2017
    %v2019 = vpop.xlane.xlu0 %2018
    %v2020 = vsel %vm620, %v1998, 0.0
    %2021 = vadd.xlane.f32.xlu0 %v2020
    %v2022 = vpop.xlane.xlu0 %2021
    %v2023 = vrcp.pop %v2001
    %v2024 = vrcp.pop %v2004
    %v2025 = vrcp.pop %v2007
    %v2026 = vrcp.pop %v2010
    %v2027 = vrcp.pop %v2013
    %v2028 = vrcp.pop %v2016
    %v2029 = vrcp.pop %v2019
    %v2030 = vrcp.pop %v2022
    %v2031 = vmul.f32 %v1984, %v2023
    %v2032 = vmul.f32 %v1986, %v2024
    %v2033 = vmul.f32 %v1988, %v2025
    %v2034 = vmul.f32 %v1990, %v2026
    %v2035 = vmul.f32 %v1992, %v2027
    %v2036 = vmul.f32 %v1994, %v2028
    %v2037 = vmul.f32 %v1996, %v2029
    %v2038 = vmul.f32 %v1998, %v2030
    %2039 = vrot.lane.b32.xlu0 %v1565, 64
    %v2040 = vpop.permute.xlu0 %2039
    %2041 = vrot.lane.b32.xlu0 %v1570, 64
    %v2042 = vpop.permute.xlu0 %2041
    %v2046 = vsel %vm620, %v2031, 0
    %v2049 = vsel %vm620, %v2032, 0
    %2051 = vmatprep.subr.mxu0 0.0
    %2052 = vmatpush1.msra.mxu0 %v2040
    %2053 = vmatprep.subr.mxu0 0.0
    %2054 = vmatpush1.msra.mxu0 %v2042
    %2055 = vmatprep.subr.mxu0 0.0
    %2056 = vmatpush1.msra.mxu0 0.0
    %2057 = vmatprep.subr.mxu0 0.0
    %2058 = vmatpush1.msra.mxu0 0.0
    %2059 = vmatprep.subr.mxu0 0.0
    %2060 = vmatpush1.msra.mxu0 0.0
    %2061 = vmatprep.subr.mxu0 0.0
    %2062 = vmatpush1.msra.mxu0 0.0
    %2063 = vmatprep.subr.mxu0 0.0
    %2064 = vmatpush1.msra.mxu0 0.0
    %2065 = vmatprep.subr.mxu0 0.0
    %2066 = vmatpush1.msra.mxu0 0.0
    %2067 = vmatprep.subr.mxu0 0.0
    %2068 = vmatpush1.msra.mxu0 0.0
    %2069 = vmatprep.subr.mxu0 0.0
    %2070 = vmatpush1.msra.mxu0 0.0
    %2071 = vmatprep.subr.mxu0 0.0
    %2072 = vmatpush1.msra.mxu0 0.0
    %2073 = vmatprep.subr.mxu0 0.0
    %2074 = vmatpush1.msra.mxu0 0.0
    %2075 = vmatprep.subr.mxu0 0.0
    %2076 = vmatpush1.msra.mxu0 0.0
    %2077 = vmatprep.subr.mxu0 0.0
    %2078 = vmatpush1.msra.mxu0 0.0
    %2079 = vmatprep.subr.mxu0 0.0
    %2080 = vmatpush1.msra.mxu0 0.0
    %2081 = vmatprep.subr.mxu0 0.0
    %2082 = vmatpush1.msra.mxu0 0.0
    %2083 = vmatprep.subr.mxu0 0.0
    %2084 = vmatpush1.msra.mxu0 0.0
    %2085 = vmatprep.subr.mxu0 0.0
    %2086 = vmatpush1.msra.mxu0 0.0
    %2087 = vmatprep.subr.mxu0 0.0
    %2088 = vmatpush1.msra.mxu0 0.0
    %2089 = vmatprep.subr.mxu0 0.0
    %2090 = vmatpush1.msra.mxu0 0.0
    %2091 = vmatprep.subr.mxu0 0.0
    %2092 = vmatpush1.msra.mxu0 0.0
    %2093 = vmatprep.subr.mxu0 0.0
    %2094 = vmatpush1.msra.mxu0 0.0
    %2095 = vmatprep.subr.mxu0 0.0
    %2096 = vmatpush1.msra.mxu0 0.0
    %2097 = vmatprep.subr.mxu0 0.0
    %2098 = vmatpush1.msra.mxu0 0.0
    %2099 = vmatprep.subr.mxu0 0.0
    %2100 = vmatpush1.msra.mxu0 0.0
    %2101 = vmatprep.subr.mxu0 0.0
    %2102 = vmatpush1.msra.mxu0 0.0
    %2103 = vmatprep.subr.mxu0 0.0
    %2104 = vmatpush1.msra.mxu0 0.0
    %2105 = vmatprep.subr.mxu0 0.0
    %2106 = vmatpush1.msra.mxu0 0.0
    %2107 = vmatprep.subr.mxu0 0.0
    %2108 = vmatpush1.msra.mxu0 0.0
    %2109 = vmatprep.subr.mxu0 0.0
    %2110 = vmatpush1.msra.mxu0 0.0
    %2111 = vmatprep.subr.mxu0 0.0
    %2112 = vmatpush1.msra.mxu0 0.0
    %2113 = vmatprep.subr.mxu0 0.0
    %2114 = vmatpush1.msra.mxu0 0.0
    %2115 = vmatprep.mubr.f32.mxu0 0.0
    %2116 = vmatmul.mubr.f32.gmra.mrb[0].mxu0 %v2046
    %v2117 = vpop.f32.mrb[0].mxu0
    %v2118 = vadd.f32 0.0, %v2117
    %v2119 = vpop.f32.mrb[0].mxu0
    %2120 = vmatprep.mubr.f32.mxu0 0.0
    %2121 = vmatmul.mubr.f32.gmra.mrb[0].mxu0 %v2049
    %v2122 = vpop.f32.mrb[0].mxu0
    %v2123 = vadd.f32 0.0, %v2122
    %v2124 = vpop.f32.mrb[0].mxu0
    %2125 = vdwg.mxu0
    %2126 = vrot.lane.b32.xlu0 %v1592, 64
    %v2127 = vpop.permute.xlu0 %2126
    %2128 = vrot.lane.b32.xlu0 %v1594, 64
    %v2129 = vpop.permute.xlu0 %2128
    %v2133 = vsel %vm620, %v2033, 0
    %v2136 = vsel %vm620, %v2034, 0
    %2138 = vmatprep.subr.mxu0 0.0
    %2139 = vmatpush1.msra.mxu0 %v2127
    %2140 = vmatprep.subr.mxu0 0.0
    %2141 = vmatpush1.msra.mxu0 %v2129
    %2142 = vmatprep.subr.mxu0 0.0
    %2143 = vmatpush1.msra.mxu0 0.0
    %2144 = vmatprep.subr.mxu0 0.0
    %2145 = vmatpush1.msra.mxu0 0.0
    %2146 = vmatprep.subr.mxu0 0.0
    %2147 = vmatpush1.msra.mxu0 0.0
    %2148 = vmatprep.subr.mxu0 0.0
    %2149 = vmatpush1.msra.mxu0 0.0
    %2150 = vmatprep.subr.mxu0 0.0
    %2151 = vmatpush1.msra.mxu0 0.0
    %2152 = vmatprep.subr.mxu0 0.0
    %2153 = vmatpush1.msra.mxu0 0.0
    %2154 = vmatprep.subr.mxu0 0.0
    %2155 = vmatpush1.msra.mxu0 0.0
    %2156 = vmatprep.subr.mxu0 0.0
    %2157 = vmatpush1.msra.mxu0 0.0
    %2158 = vmatprep.subr.mxu0 0.0
    %2159 = vmatpush1.msra.mxu0 0.0
    %2160 = vmatprep.subr.mxu0 0.0
    %2161 = vmatpush1.msra.mxu0 0.0
    %2162 = vmatprep.subr.mxu0 0.0
    %2163 = vmatpush1.msra.mxu0 0.0
    %2164 = vmatprep.subr.mxu0 0.0
    %2165 = vmatpush1.msra.mxu0 0.0
    %2166 = vmatprep.subr.mxu0 0.0
    %2167 = vmatpush1.msra.mxu0 0.0
    %2168 = vmatprep.subr.mxu0 0.0
    %2169 = vmatpush1.msra.mxu0 0.0
    %2170 = vmatprep.subr.mxu0 0.0
    %2171 = vmatpush1.msra.mxu0 0.0
    %2172 = vmatprep.subr.mxu0 0.0
    %2173 = vmatpush1.msra.mxu0 0.0
    %2174 = vmatprep.subr.mxu0 0.0
    %2175 = vmatpush1.msra.mxu0 0.0
    %2176 = vmatprep.subr.mxu0 0.0
    %2177 = vmatpush1.msra.mxu0 0.0
    %2178 = vmatprep.subr.mxu0 0.0
    %2179 = vmatpush1.msra.mxu0 0.0
    %2180 = vmatprep.subr.mxu0 0.0
    %2181 = vmatpush1.msra.mxu0 0.0
    %2182 = vmatprep.subr.mxu0 0.0
    %2183 = vmatpush1.msra.mxu0 0.0
    %2184 = vmatprep.subr.mxu0 0.0
    %2185 = vmatpush1.msra.mxu0 0.0
    %2186 = vmatprep.subr.mxu0 0.0
    %2187 = vmatpush1.msra.mxu0 0.0
    %2188 = vmatprep.subr.mxu0 0.0
    %2189 = vmatpush1.msra.mxu0 0.0
    %2190 = vmatprep.subr.mxu0 0.0
    %2191 = vmatpush1.msra.mxu0 0.0
    %2192 = vmatprep.subr.mxu0 0.0
    %2193 = vmatpush1.msra.mxu0 0.0
    %2194 = vmatprep.subr.mxu0 0.0
    %2195 = vmatpush1.msra.mxu0 0.0
    %2196 = vmatprep.subr.mxu0 0.0
    %2197 = vmatpush1.msra.mxu0 0.0
    %2198 = vmatprep.subr.mxu0 0.0
    %2199 = vmatpush1.msra.mxu0 0.0
    %2200 = vmatprep.subr.mxu0 0.0
    %2201 = vmatpush1.msra.mxu0 0.0
    %2202 = vmatprep.mubr.f32.mxu0 0.0
    %2203 = vmatmul.mubr.f32.gmra.mrb[0].mxu0 %v2133
    %v2204 = vpop.f32.mrb[0].mxu0
    %v2205 = vadd.f32 0.0, %v2204
    %v2206 = vpop.f32.mrb[0].mxu0
    %2207 = vmatprep.mubr.f32.mxu0 0.0
    %2208 = vmatmul.mubr.f32.gmra.mrb[0].mxu0 %v2136
    %v2209 = vpop.f32.mrb[0].mxu0
    %v2210 = vadd.f32 0.0, %v2209
    %v2211 = vpop.f32.mrb[0].mxu0
    %2212 = vdwg.mxu0
    %2213 = vrot.lane.b32.xlu0 %v1596, 64
    %v2214 = vpop.permute.xlu0 %2213
    %2215 = vrot.lane.b32.xlu0 %v1598, 64
    %v2216 = vpop.permute.xlu0 %2215
    %v2220 = vsel %vm620, %v2035, 0
    %v2223 = vsel %vm620, %v2036, 0
    %2225 = vmatprep.subr.mxu0 0.0
    %2226 = vmatpush1.msra.mxu0 %v2214
    %2227 = vmatprep.subr.mxu0 0.0
    %2228 = vmatpush1.msra.mxu0 %v2216
    %2229 = vmatprep.subr.mxu0 0.0
    %2230 = vmatpush1.msra.mxu0 0.0
    %2231 = vmatprep.subr.mxu0 0.0
    %2232 = vmatpush1.msra.mxu0 0.0
    %2233 = vmatprep.subr.mxu0 0.0
    %2234 = vmatpush1.msra.mxu0 0.0
    %2235 = vmatprep.subr.mxu0 0.0
    %2236 = vmatpush1.msra.mxu0 0.0
    %2237 = vmatprep.subr.mxu0 0.0
    %2238 = vmatpush1.msra.mxu0 0.0
    %2239 = vmatprep.subr.mxu0 0.0
    %2240 = vmatpush1.msra.mxu0 0.0
    %2241 = vmatprep.subr.mxu0 0.0
    %2242 = vmatpush1.msra.mxu0 0.0
    %2243 = vmatprep.subr.mxu0 0.0
    %2244 = vmatpush1.msra.mxu0 0.0
    %2245 = vmatprep.subr.mxu0 0.0
    %2246 = vmatpush1.msra.mxu0 0.0
    %2247 = vmatprep.subr.mxu0 0.0
    %2248 = vmatpush1.msra.mxu0 0.0
    %2249 = vmatprep.subr.mxu0 0.0
    %2250 = vmatpush1.msra.mxu0 0.0
    %2251 = vmatprep.subr.mxu0 0.0
    %2252 = vmatpush1.msra.mxu0 0.0
    %2253 = vmatprep.subr.mxu0 0.0
    %2254 = vmatpush1.msra.mxu0 0.0
    %2255 = vmatprep.subr.mxu0 0.0
    %2256 = vmatpush1.msra.mxu0 0.0
    %2257 = vmatprep.subr.mxu0 0.0
    %2258 = vmatpush1.msra.mxu0 0.0
    %2259 = vmatprep.subr.mxu0 0.0
    %2260 = vmatpush1.msra.mxu0 0.0
    %2261 = vmatprep.subr.mxu0 0.0
    %2262 = vmatpush1.msra.mxu0 0.0
    %2263 = vmatprep.subr.mxu0 0.0
    %2264 = vmatpush1.msra.mxu0 0.0
    %2265 = vmatprep.subr.mxu0 0.0
    %2266 = vmatpush1.msra.mxu0 0.0
    %2267 = vmatprep.subr.mxu0 0.0
    %2268 = vmatpush1.msra.mxu0 0.0
    %2269 = vmatprep.subr.mxu0 0.0
    %2270 = vmatpush1.msra.mxu0 0.0
    %2271 = vmatprep.subr.mxu0 0.0
    %2272 = vmatpush1.msra.mxu0 0.0
    %2273 = vmatprep.subr.mxu0 0.0
    %2274 = vmatpush1.msra.mxu0 0.0
    %2275 = vmatprep.subr.mxu0 0.0
    %2276 = vmatpush1.msra.mxu0 0.0
    %2277 = vmatprep.subr.mxu0 0.0
    %2278 = vmatpush1.msra.mxu0 0.0
    %2279 = vmatprep.subr.mxu0 0.0
    %2280 = vmatpush1.msra.mxu0 0.0
    %2281 = vmatprep.subr.mxu0 0.0
    %2282 = vmatpush1.msra.mxu0 0.0
    %2283 = vmatprep.subr.mxu0 0.0
    %2284 = vmatpush1.msra.mxu0 0.0
    %2285 = vmatprep.subr.mxu0 0.0
    %2286 = vmatpush1.msra.mxu0 0.0
    %2287 = vmatprep.subr.mxu0 0.0
    %2288 = vmatpush1.msra.mxu0 0.0
    %2289 = vmatprep.mubr.f32.mxu0 0.0
    %2290 = vmatmul.mubr.f32.gmra.mrb[0].mxu0 %v2220
    %v2291 = vpop.f32.mrb[0].mxu0
    %v2292 = vadd.f32 0.0, %v2291
    %v2293 = vpop.f32.mrb[0].mxu0
    %2294 = vmatprep.mubr.f32.mxu0 0.0
    %2295 = vmatmul.mubr.f32.gmra.mrb[0].mxu0 %v2223
    %v2296 = vpop.f32.mrb[0].mxu0
    %v2297 = vadd.f32 0.0, %v2296
    %v2298 = vpop.f32.mrb[0].mxu0
    %2299 = vdwg.mxu0
    %2300 = vrot.lane.b32.xlu0 %v1600, 64
    %v2301 = vpop.permute.xlu0 %2300
    %2302 = vrot.lane.b32.xlu0 %v1602, 64
    %v2303 = vpop.permute.xlu0 %2302
    %v2307 = vsel %vm620, %v2037, 0
    %v2310 = vsel %vm620, %v2038, 0
    %2312 = vmatprep.subr.mxu0 0.0
    %2313 = vmatpush1.msra.mxu0 %v2301
    %2314 = vmatprep.subr.mxu0 0.0
    %2315 = vmatpush1.msra.mxu0 %v2303
    %2316 = vmatprep.subr.mxu0 0.0
    %2317 = vmatpush1.msra.mxu0 0.0
    %2318 = vmatprep.subr.mxu0 0.0
    %2319 = vmatpush1.msra.mxu0 0.0
    %2320 = vmatprep.subr.mxu0 0.0
    %2321 = vmatpush1.msra.mxu0 0.0
    %2322 = vmatprep.subr.mxu0 0.0
    %2323 = vmatpush1.msra.mxu0 0.0
    %2324 = vmatprep.subr.mxu0 0.0
    %2325 = vmatpush1.msra.mxu0 0.0
    %2326 = vmatprep.subr.mxu0 0.0
    %2327 = vmatpush1.msra.mxu0 0.0
    %2328 = vmatprep.subr.mxu0 0.0
    %2329 = vmatpush1.msra.mxu0 0.0
    %2330 = vmatprep.subr.mxu0 0.0
    %2331 = vmatpush1.msra.mxu0 0.0
    %2332 = vmatprep.subr.mxu0 0.0
    %2333 = vmatpush1.msra.mxu0 0.0
    %2334 = vmatprep.subr.mxu0 0.0
    %2335 = vmatpush1.msra.mxu0 0.0
    %2336 = vmatprep.subr.mxu0 0.0
    %2337 = vmatpush1.msra.mxu0 0.0
    %2338 = vmatprep.subr.mxu0 0.0
    %2339 = vmatpush1.msra.mxu0 0.0
    %2340 = vmatprep.subr.mxu0 0.0
    %2341 = vmatpush1.msra.mxu0 0.0
    %2342 = vmatprep.subr.mxu0 0.0
    %2343 = vmatpush1.msra.mxu0 0.0
    %2344 = vmatprep.subr.mxu0 0.0
    %2345 = vmatpush1.msra.mxu0 0.0
    %2346 = vmatprep.subr.mxu0 0.0
    %2347 = vmatpush1.msra.mxu0 0.0
    %2348 = vmatprep.subr.mxu0 0.0
    %2349 = vmatpush1.msra.mxu0 0.0
    %2350 = vmatprep.subr.mxu0 0.0
    %2351 = vmatpush1.msra.mxu0 0.0
    %2352 = vmatprep.subr.mxu0 0.0
    %2353 = vmatpush1.msra.mxu0 0.0
    %2354 = vmatprep.subr.mxu0 0.0
    %2355 = vmatpush1.msra.mxu0 0.0
    %2356 = vmatprep.subr.mxu0 0.0
    %2357 = vmatpush1.msra.mxu0 0.0
    %2358 = vmatprep.subr.mxu0 0.0
    %2359 = vmatpush1.msra.mxu0 0.0
    %2360 = vmatprep.subr.mxu0 0.0
    %2361 = vmatpush1.msra.mxu0 0.0
    %2362 = vmatprep.subr.mxu0 0.0
    %2363 = vmatpush1.msra.mxu0 0.0
    %2364 = vmatprep.subr.mxu0 0.0
    %2365 = vmatpush1.msra.mxu0 0.0
    %2366 = vmatprep.subr.mxu0 0.0
    %2367 = vmatpush1.msra.mxu0 0.0
    %2368 = vmatprep.subr.mxu0 0.0
    %2369 = vmatpush1.msra.mxu0 0.0
    %2370 = vmatprep.subr.mxu0 0.0
    %2371 = vmatpush1.msra.mxu0 0.0
    %2372 = vmatprep.subr.mxu0 0.0
    %2373 = vmatpush1.msra.mxu0 0.0
    %2374 = vmatprep.subr.mxu0 0.0
    %2375 = vmatpush1.msra.mxu0 0.0
    %2376 = vmatprep.mubr.f32.mxu0 0.0
    %2377 = vmatmul.mubr.f32.gmra.mrb[0].mxu0 %v2307
    %v2378 = vpop.f32.mrb[0].mxu0
    %v2379 = vadd.f32 0.0, %v2378
    %v2380 = vpop.f32.mrb[0].mxu0
    %2381 = vmatprep.mubr.f32.mxu0 0.0
    %2382 = vmatmul.mubr.f32.gmra.mrb[0].mxu0 %v2310
    %v2383 = vpop.f32.mrb[0].mxu0
    %v2384 = vadd.f32 0.0, %v2383
    %v2385 = vpop.f32.mrb[0].mxu0
    %2386 = vdwg.mxu0
    %2389 = vrot.lane.b32.xlu0 %v2205, 8
    %v2390 = vpop.permute.xlu0 %2389
    %2391 = vrot.lane.b32.xlu0 %v2210, 8
    %v2392 = vpop.permute.xlu0 %2391
    %2397 = vrot.lane.b32.xlu0 %v2292, 16
    %v2398 = vpop.permute.xlu0 %2397
    %2399 = vrot.lane.b32.xlu0 %v2297, 16
    %v2400 = vpop.permute.xlu0 %2399
    %2405 = vrot.lane.b32.xlu0 %v2379, 24
    %v2406 = vpop.permute.xlu0 %2405
    %2407 = vrot.lane.b32.xlu0 %v2384, 24
    %v2408 = vpop.permute.xlu0 %2407
    %v2411 = vsel %vm275, %v2118, %v2390
    %v2412 = vsel %vm275, %v2123, %v2392
    %v2413 = vsel %vm620, %v2411, %v2398
    %v2414 = vsel %vm620, %v2412, %v2400
    %v2415 = vsel %vm1085, %v2413, %v2406
    %v2416 = vsel %vm1085, %v2414, %v2408
    %s2417 = scalar_lea.vmem %s6, 32
    %v2418 = vld [vmem:[%s2417] sm:$0xff]
    %v2419 = vld [vmem:[%s2417 + $0x8] sm:$0xff]
    %v2420 = vld [vmem:[%s2417 + $0x10] sm:$0xff]
    %v2421 = vld [vmem:[%s2417 + $0x18] sm:$0xff]
    %s2422 = scalar_lea.vmem %s7, 1
    %v2423 = vld [vmem:[%s2422] sm:$0x1]
    %v2425 = vlaneseq
    %v2426 = vshrl.u32 %v2425, 7
    %v2427 = vsub.s32 0, %v2426
    %v2428 = vrot.slane %v2423, %v2427
    %v2431 = vsel %vm103, %v2415, 0
    %v2434 = vsel %vm103, %v2416, 0
    %2436 = vmatprep.subr.mxu0 0.0
    %2437 = vmatpush1.msra.mxu0 %v2418
    %2438 = vmatprep.subr.mxu0 0.0
    %2439 = vmatpush1.msra.mxu0 %v2419
    %2440 = vmatprep.subr.mxu0 0.0
    %2441 = vmatpush1.msra.mxu0 %v2420
    %2442 = vmatprep.subr.mxu0 0.0
    %2443 = vmatpush1.msra.mxu0 %v2421
    %2444 = vmatprep.subr.mxu0 0.0
    %2445 = vmatpush1.msra.mxu0 0.0
    %2446 = vmatprep.subr.mxu0 0.0
    %2447 = vmatpush1.msra.mxu0 0.0
    %2448 = vmatprep.subr.mxu0 0.0
    %2449 = vmatpush1.msra.mxu0 0.0
    %2450 = vmatprep.subr.mxu0 0.0
    %2451 = vmatpush1.msra.mxu0 0.0
    %2452 = vmatprep.subr.mxu0 0.0
    %2453 = vmatpush1.msra.mxu0 0.0
    %2454 = vmatprep.subr.mxu0 0.0
    %2455 = vmatpush1.msra.mxu0 0.0
    %2456 = vmatprep.subr.mxu0 0.0
    %2457 = vmatpush1.msra.mxu0 0.0
    %2458 = vmatprep.subr.mxu0 0.0
    %2459 = vmatpush1.msra.mxu0 0.0
    %2460 = vmatprep.subr.mxu0 0.0
    %2461 = vmatpush1.msra.mxu0 0.0
    %2462 = vmatprep.subr.mxu0 0.0
    %2463 = vmatpush1.msra.mxu0 0.0
    %2464 = vmatprep.subr.mxu0 0.0
    %2465 = vmatpush1.msra.mxu0 0.0
    %2466 = vmatprep.subr.mxu0 0.0
    %2467 = vmatpush1.msra.mxu0 0.0
    %2468 = vmatprep.subr.mxu0 0.0
    %2469 = vmatpush1.msra.mxu0 0.0
    %2470 = vmatprep.subr.mxu0 0.0
    %2471 = vmatpush1.msra.mxu0 0.0
    %2472 = vmatprep.subr.mxu0 0.0
    %2473 = vmatpush1.msra.mxu0 0.0
    %2474 = vmatprep.subr.mxu0 0.0
    %2475 = vmatpush1.msra.mxu0 0.0
    %2476 = vmatprep.subr.mxu0 0.0
    %2477 = vmatpush1.msra.mxu0 0.0
    %2478 = vmatprep.subr.mxu0 0.0
    %2479 = vmatpush1.msra.mxu0 0.0
    %2480 = vmatprep.subr.mxu0 0.0
    %2481 = vmatpush1.msra.mxu0 0.0
    %2482 = vmatprep.subr.mxu0 0.0
    %2483 = vmatpush1.msra.mxu0 0.0
    %2484 = vmatprep.subr.mxu0 0.0
    %2485 = vmatpush1.msra.mxu0 0.0
    %2486 = vmatprep.subr.mxu0 0.0
    %2487 = vmatpush1.msra.mxu0 0.0
    %2488 = vmatprep.subr.mxu0 0.0
    %2489 = vmatpush1.msra.mxu0 0.0
    %2490 = vmatprep.subr.mxu0 0.0
    %2491 = vmatpush1.msra.mxu0 0.0
    %2492 = vmatprep.subr.mxu0 0.0
    %2493 = vmatpush1.msra.mxu0 0.0
    %2494 = vmatprep.subr.mxu0 0.0
    %2495 = vmatpush1.msra.mxu0 0.0
    %2496 = vmatprep.subr.mxu0 0.0
    %2497 = vmatpush1.msra.mxu0 0.0
    %2498 = vmatprep.subr.mxu0 0.0
    %2499 = vmatpush1.msra.mxu0 0.0
    %2500 = vmatprep.mubr.f32.mxu0 0.0
    %2501 = vmatmul.mubr.f32.gmra.mrb[0].mxu0 %v2431
    %v2502 = vpop.f32.mrb[0].mxu0
    %v2503 = vadd.f32 %v2428, %v2502
    %v2504 = vpop.f32.mrb[0].mxu0
    %2505 = vmatprep.mubr.f32.mxu0 0.0
    %2506 = vmatmul.mubr.f32.gmra.mrb[0].mxu0 %v2434
    %v2507 = vpop.f32.mrb[0].mxu0
    %v2508 = vadd.f32 %v2428, %v2507
    %v2509 = vpop.f32.mrb[0].mxu0
    %2510 = vdwg.mxu0
    %v2511 = vadd.f32 %v1477, %v2503
    %v2512 = vadd.f32 %v1478, %v2508
    %s2513 = scalar_lea.vmem %s8, 1
    %v2514 = vld [vmem:[%s2513] sm:$0x1]
    %s2515 = scalar_lea.vmem %s9, 1
    %v2516 = vld [vmem:[%s2515] sm:$0x1]
    %v2517 = vsel %vm103, %v2511, 0.0
    %2518 = vadd.xlane.f32.xlu0 %v2517
    %v2519 = vpop.xlane.xlu0 %2518
    %v2520 = vsel %vm103, %v2512, 0.0
    %2521 = vadd.xlane.f32.xlu0 %v2520
    %v2522 = vpop.xlane.xlu0 %2521
    %v2523 = vmul.f32 %v2519, %v110
    %v2524 = vmul.f32 %v2522, %v110
    %v2525 = vsub.f32 %v2511, %v2523
    %v2526 = vsub.f32 %v2512, %v2524
    %v2527 = vmul.f32 %v2525, %v2525
    %v2528 = vmul.f32 %v2526, %v2526
    %v2529 = vsel %vm103, %v2527, 0.0
    %2530 = vadd.xlane.f32.xlu0 %v2529
    %v2531 = vpop.xlane.xlu0 %2530
    %v2532 = vsel %vm103, %v2528, 0.0
    %2533 = vadd.xlane.f32.xlu0 %v2532
    %v2534 = vpop.xlane.xlu0 %2533
    %v2535 = vmul.f32 %v2531, %v110
    %v2536 = vmul.f32 %v2534, %v110
    %v2537 = vadd.f32 %v2535, 1e-12
    %v2538 = vadd.f32 %v2536, 1e-12
    %v2539 = vrsqrt.pop %v2537
    %v2540 = vrsqrt.pop %v2538
    %v2541 = vmul.f32 %v2525, %v2539
    %v2542 = vmul.f32 %v2526, %v2540
    %v2544 = vlaneseq
    %v2545 = vshrl.u32 %v2544, 7
    %v2546 = vsub.s32 0, %v2545
    %v2547 = vrot.slane %v2514, %v2546
    %v2549 = vmul.f32 %v2541, %v2547
    %v2550 = vmul.f32 %v2542, %v2547
    %v2552 = vlaneseq
    %v2553 = vshrl.u32 %v2552, 7
    %v2554 = vsub.s32 0, %v2553
    %v2555 = vrot.slane %v2516, %v2554
    %v2557 = vadd.f32 %v2549, %v2555
    %v2558 = vadd.f32 %v2550, %v2555
    %s2559 = scalar_lea.vmem %s10, 32
    %v2560 = vld [vmem:[%s2559] sm:$0xff]
    %v2561 = vld [vmem:[%s2559 + $0x8] sm:$0xff]
    %v2562 = vld [vmem:[%s2559 + $0x10] sm:$0xff]
    %v2563 = vld [vmem:[%s2559 + $0x18] sm:$0xff]
    %s2564 = scalar_lea.vmem %s11, 1
    %v2565 = vld [vmem:[%s2564] sm:$0x1]
    %v2567 = vlaneseq
    %v2568 = vshrl.u32 %v2567, 7
    %v2569 = vsub.s32 0, %v2568
    %v2570 = vrot.slane %v2565, %v2569
    %v2573 = vsel %vm103, %v2557, 0
    %v2576 = vsel %vm103, %v2558, 0
    %2578 = vmatprep.subr.mxu0 0.0
    %2579 = vmatpush1.msra.mxu0 %v2560
    %2580 = vmatprep.subr.mxu0 0.0
    %2581 = vmatpush1.msra.mxu0 %v2561
    %2582 = vmatprep.subr.mxu0 0.0
    %2583 = vmatpush1.msra.mxu0 %v2562
    %2584 = vmatprep.subr.mxu0 0.0
    %2585 = vmatpush1.msra.mxu0 %v2563
    %2586 = vmatprep.subr.mxu0 0.0
    %2587 = vmatpush1.msra.mxu0 0.0
    %2588 = vmatprep.subr.mxu0 0.0
    %2589 = vmatpush1.msra.mxu0 0.0
    %2590 = vmatprep.subr.mxu0 0.0
    %2591 = vmatpush1.msra.mxu0 0.0
    %2592 = vmatprep.subr.mxu0 0.0
    %2593 = vmatpush1.msra.mxu0 0.0
    %2594 = vmatprep.subr.mxu0 0.0
    %2595 = vmatpush1.msra.mxu0 0.0
    %2596 = vmatprep.subr.mxu0 0.0
    %2597 = vmatpush1.msra.mxu0 0.0
    %2598 = vmatprep.subr.mxu0 0.0
    %2599 = vmatpush1.msra.mxu0 0.0
    %2600 = vmatprep.subr.mxu0 0.0
    %2601 = vmatpush1.msra.mxu0 0.0
    %2602 = vmatprep.subr.mxu0 0.0
    %2603 = vmatpush1.msra.mxu0 0.0
    %2604 = vmatprep.subr.mxu0 0.0
    %2605 = vmatpush1.msra.mxu0 0.0
    %2606 = vmatprep.subr.mxu0 0.0
    %2607 = vmatpush1.msra.mxu0 0.0
    %2608 = vmatprep.subr.mxu0 0.0
    %2609 = vmatpush1.msra.mxu0 0.0
    %2610 = vmatprep.subr.mxu0 0.0
    %2611 = vmatpush1.msra.mxu0 0.0
    %2612 = vmatprep.subr.mxu0 0.0
    %2613 = vmatpush1.msra.mxu0 0.0
    %2614 = vmatprep.subr.mxu0 0.0
    %2615 = vmatpush1.msra.mxu0 0.0
    %2616 = vmatprep.subr.mxu0 0.0
    %2617 = vmatpush1.msra.mxu0 0.0
    %2618 = vmatprep.subr.mxu0 0.0
    %2619 = vmatpush1.msra.mxu0 0.0
    %2620 = vmatprep.subr.mxu0 0.0
    %2621 = vmatpush1.msra.mxu0 0.0
    %2622 = vmatprep.subr.mxu0 0.0
    %2623 = vmatpush1.msra.mxu0 0.0
    %2624 = vmatprep.subr.mxu0 0.0
    %2625 = vmatpush1.msra.mxu0 0.0
    %2626 = vmatprep.subr.mxu0 0.0
    %2627 = vmatpush1.msra.mxu0 0.0
    %2628 = vmatprep.subr.mxu0 0.0
    %2629 = vmatpush1.msra.mxu0 0.0
    %2630 = vmatprep.subr.mxu0 0.0
    %2631 = vmatpush1.msra.mxu0 0.0
    %2632 = vmatprep.subr.mxu0 0.0
    %2633 = vmatpush1.msra.mxu0 0.0
    %2634 = vmatprep.subr.mxu0 0.0
    %2635 = vmatpush1.msra.mxu0 0.0
    %2636 = vmatprep.subr.mxu0 0.0
    %2637 = vmatpush1.msra.mxu0 0.0
    %2638 = vmatprep.subr.mxu0 0.0
    %2639 = vmatpush1.msra.mxu0 0.0
    %2640 = vmatprep.subr.mxu0 0.0
    %2641 = vmatpush1.msra.mxu0 0.0
    %2642 = vmatprep.mubr.f32.mxu0 0.0
    %2643 = vmatmul.mubr.f32.gmra.mrb[0].mxu0 %v2573
    %v2644 = vpop.f32.mrb[0].mxu0
    %v2645 = vadd.f32 %v2570, %v2644
    %v2646 = vpop.f32.mrb[0].mxu0
    %2647 = vmatprep.mubr.f32.mxu0 0.0
    %2648 = vmatmul.mubr.f32.gmra.mrb[0].mxu0 %v2576
    %v2649 = vpop.f32.mrb[0].mxu0
    %v2650 = vadd.f32 %v2570, %v2649
    %v2651 = vpop.f32.mrb[0].mxu0
    %2652 = vdwg.mxu0
    %v2653 = vmul.f32 %v2645, %v2645
    %v2654 = vmul.f32 %v2650, %v2650
    %v2655 = vmul.f32 %v2645, %v2653
    %v2656 = vmul.f32 %v2650, %v2654
    %v2657 = vmul.f32 %v2655, 0.044715
    %v2658 = vmul.f32 %v2656, 0.044715
    %v2659 = vadd.f32 %v2645, %v2657
    %v2660 = vadd.f32 %v2650, %v2658
    %v2661 = vmul.f32 %v2659, 0.7978846
    %v2662 = vmul.f32 %v2660, 0.7978846
    %v2663 = vtanh.pop %v2661
    %v2664 = vtanh.pop %v2662
    %v2665 = vadd.f32 %v2663, 1.0
    %v2666 = vadd.f32 %v2664, 1.0
    %v2667 = vmul.f32 %v2665, 0.5
    %v2668 = vmul.f32 %v2666, 0.5
    %v2669 = vmul.f32 %v2645, %v2667
    %v2670 = vmul.f32 %v2650, %v2668
    %s2671 = scalar_lea.vmem %s12, 64
    %v2672 = vld [vmem:[%s2671] sm:$0xff]
    %v2673 = vld [vmem:[%s2671 + $0x8] sm:$0xff]
    %v2674 = vld [vmem:[%s2671 + $0x10] sm:$0xff]
    %v2675 = vld [vmem:[%s2671 + $0x18] sm:$0xff]
    %v2676 = vld [vmem:[%s2671 + $0x20] sm:$0xff]
    %v2677 = vld [vmem:[%s2671 + $0x28] sm:$0xff]
    %v2678 = vld [vmem:[%s2671 + $0x30] sm:$0xff]
    %v2679 = vld [vmem:[%s2671 + $0x38] sm:$0xff]
    %s2680 = scalar_lea.vmem %s13, 1
    %v2681 = vld [vmem:[%s2680] sm:$0x1]
    %v2683 = vlaneseq
    %v2684 = vshrl.u32 %v2683, 7
    %v2685 = vsub.s32 0, %v2684
    %v2686 = vrot.slane %v2681, %v2685
    %v2689 = vsel %vm1351, %v2669, 0
    %v2692 = vsel %vm1351, %v2670, 0
    %2694 = vmatprep.subr.mxu0 0.0
    %2695 = vmatpush1.msra.mxu0 %v2672
    %2696 = vmatprep.subr.mxu0 0.0
    %2697 = vmatpush1.msra.mxu0 %v2673
    %2698 = vmatprep.subr.mxu0 0.0
    %2699 = vmatpush1.msra.mxu0 %v2674
    %2700 = vmatprep.subr.mxu0 0.0
    %2701 = vmatpush1.msra.mxu0 %v2675
    %2702 = vmatprep.subr.mxu0 0.0
    %2703 = vmatpush1.msra.mxu0 %v2676
    %2704 = vmatprep.subr.mxu0 0.0
    %2705 = vmatpush1.msra.mxu0 %v2677
    %2706 = vmatprep.subr.mxu0 0.0
    %2707 = vmatpush1.msra.mxu0 %v2678
    %2708 = vmatprep.subr.mxu0 0.0
    %2709 = vmatpush1.msra.mxu0 %v2679
    %2710 = vmatprep.subr.mxu0 0.0
    %2711 = vmatpush1.msra.mxu0 0.0
    %2712 = vmatprep.subr.mxu0 0.0
    %2713 = vmatpush1.msra.mxu0 0.0
    %2714 = vmatprep.subr.mxu0 0.0
    %2715 = vmatpush1.msra.mxu0 0.0
    %2716 = vmatprep.subr.mxu0 0.0
    %2717 = vmatpush1.msra.mxu0 0.0
    %2718 = vmatprep.subr.mxu0 0.0
    %2719 = vmatpush1.msra.mxu0 0.0
    %2720 = vmatprep.subr.mxu0 0.0
    %2721 = vmatpush1.msra.mxu0 0.0
    %2722 = vmatprep.subr.mxu0 0.0
    %2723 = vmatpush1.msra.mxu0 0.0
    %2724 = vmatprep.subr.mxu0 0.0
    %2725 = vmatpush1.msra.mxu0 0.0
    %2726 = vmatprep.subr.mxu0 0.0
    %2727 = vmatpush1.msra.mxu0 0.0
    %2728 = vmatprep.subr.mxu0 0.0
    %2729 = vmatpush1.msra.mxu0 0.0
    %2730 = vmatprep.subr.mxu0 0.0
    %2731 = vmatpush1.msra.mxu0 0.0
    %2732 = vmatprep.subr.mxu0 0.0
    %2733 = vmatpush1.msra.mxu0 0.0
    %2734 = vmatprep.subr.mxu0 0.0
    %2735 = vmatpush1.msra.mxu0 0.0
    %2736 = vmatprep.subr.mxu0 0.0
    %2737 = vmatpush1.msra.mxu0 0.0
    %2738 = vmatprep.subr.mxu0 0.0
    %2739 = vmatpush1.msra.mxu0 0.0
    %2740 = vmatprep.subr.mxu0 0.0
    %2741 = vmatpush1.msra.mxu0 0.0
    %2742 = vmatprep.subr.mxu0 0.0
    %2743 = vmatpush1.msra.mxu0 0.0
    %2744 = vmatprep.subr.mxu0 0.0
    %2745 = vmatpush1.msra.mxu0 0.0
    %2746 = vmatprep.subr.mxu0 0.0
    %2747 = vmatpush1.msra.mxu0 0.0
    %2748 = vmatprep.subr.mxu0 0.0
    %2749 = vmatpush1.msra.mxu0 0.0
    %2750 = vmatprep.subr.mxu0 0.0
    %2751 = vmatpush1.msra.mxu0 0.0
    %2752 = vmatprep.subr.mxu0 0.0
    %2753 = vmatpush1.msra.mxu0 0.0
    %2754 = vmatprep.subr.mxu0 0.0
    %2755 = vmatpush1.msra.mxu0 0.0
    %2756 = vmatprep.subr.mxu0 0.0
    %2757 = vmatpush1.msra.mxu0 0.0
    %2758 = vmatprep.mubr.f32.mxu0 0.0
    %2759 = vmatmul.mubr.f32.gmra.mrb[0].mxu0 %v2689
    %v2760 = vpop.f32.mrb[0].mxu0
    %v2761 = vadd.f32 %v2686, %v2760
    %v2762 = vpop.f32.mrb[0].mxu0
    %2763 = vmatprep.mubr.f32.mxu0 0.0
    %2764 = vmatmul.mubr.f32.gmra.mrb[0].mxu0 %v2692
    %v2765 = vpop.f32.mrb[0].mxu0
    %v2766 = vadd.f32 %v2686, %v2765
    %v2767 = vpop.f32.mrb[0].mxu0
    %2768 = vdwg.mxu0
    %v2769 = vadd.f32 %v2557, %v2761
    %v2770 = vadd.f32 %v2558, %v2766
    %s2771 = scalar_lea.vmem %s14, 1
    %v2772 = vld [vmem:[%s2771] sm:$0x1]
    %s2773 = scalar_lea.vmem %s15, 1
    %v2774 = vld [vmem:[%s2773] sm:$0x1]
    %v2775 = vsel %vm103, %v2769, 0.0
    %2776 = vadd.xlane.f32.xlu0 %v2775
    %v2777 = vpop.xlane.xlu0 %2776
    %v2778 = vsel %vm103, %v2770, 0.0
    %2779 = vadd.xlane.f32.xlu0 %v2778
    %v2780 = vpop.xlane.xlu0 %2779
    %v2781 = vmul.f32 %v2777, %v110
    %v2782 = vmul.f32 %v2780, %v110
    %v2783 = vsub.f32 %v2769, %v2781
    %v2784 = vsub.f32 %v2770, %v2782
    %v2785 = vmul.f32 %v2783, %v2783
    %v2786 = vmul.f32 %v2784, %v2784
    %v2787 = vsel %vm103, %v2785, 0.0
    %2788 = vadd.xlane.f32.xlu0 %v2787
    %v2789 = vpop.xlane.xlu0 %2788
    %v2790 = vsel %vm103, %v2786, 0.0
    %2791 = vadd.xlane.f32.xlu0 %v2790
    %v2792 = vpop.xlane.xlu0 %2791
    %v2793 = vmul.f32 %v2789, %v110
    %v2794 = vmul.f32 %v2792, %v110
    %v2795 = vadd.f32 %v2793, 1e-12
    %v2796 = vadd.f32 %v2794, 1e-12
    %v2797 = vrsqrt.pop %v2795
    %v2798 = vrsqrt.pop %v2796
    %v2799 = vmul.f32 %v2783, %v2797
    %v2800 = vmul.f32 %v2784, %v2798
    %v2802 = vlaneseq
    %v2803 = vshrl.u32 %v2802, 7
    %v2804 = vsub.s32 0, %v2803
    %v2805 = vrot.slane %v2772, %v2804
    %v2807 = vmul.f32 %v2799, %v2805
    %v2808 = vmul.f32 %v2800, %v2805
    %v2810 = vlaneseq
    %v2811 = vshrl.u32 %v2810, 7
    %v2812 = vsub.s32 0, %v2811
    %v2813 = vrot.slane %v2774, %v2812
    %v2815 = vadd.f32 %v2807, %v2813
    %v2816 = vadd.f32 %v2808, %v2813
    %v2818 = vrot.slane %v2816, 7
    %vm2820 = vcmask 1040384
    %v2821 = vsel %vm2820, %v2815, %v2818
    %v2822 = vld [vmem:[%s16] sm:$0xff]
    %v2823 = vld [vmem:[%s16 + $0x8] sm:$0xff]
    %v2824 = vld [vmem:[%s16 + $0x10] sm:$0xff]
    %v2825 = vld [vmem:[%s16 + $0x18] sm:$0xff]
    %v2826 = vld [vmem:[%s17] sm:$0x1]
    %v2828 = vlaneseq
    %v2829 = vshrl.u32 %v2828, 7
    %v2830 = vsub.s32 0, %v2829
    %v2831 = vrot.slane %v2826, %v2830
    %v2834 = vsel %vm103, %v2821, 0
    %2836 = vmatprep.subr.mxu0 0.0
    %2837 = vmatpush1.msra.mxu0 %v2822
    %2838 = vmatprep.subr.mxu0 0.0
    %2839 = vmatpush1.msra.mxu0 %v2823
    %2840 = vmatprep.subr.mxu0 0.0
    %2841 = vmatpush1.msra.mxu0 %v2824
    %2842 = vmatprep.subr.mxu0 0.0
    %2843 = vmatpush1.msra.mxu0 %v2825
    %2844 = vmatprep.subr.mxu0 0.0
    %2845 = vmatpush1.msra.mxu0 0.0
    %2846 = vmatprep.subr.mxu0 0.0
    %2847 = vmatpush1.msra.mxu0 0.0
    %2848 = vmatprep.subr.mxu0 0.0
    %2849 = vmatpush1.msra.mxu0 0.0
    %2850 = vmatprep.subr.mxu0 0.0
    %2851 = vmatpush1.msra.mxu0 0.0
    %2852 = vmatprep.subr.mxu0 0.0
    %2853 = vmatpush1.msra.mxu0 0.0
    %2854 = vmatprep.subr.mxu0 0.0
    %2855 = vmatpush1.msra.mxu0 0.0
    %2856 = vmatprep.subr.mxu0 0.0
    %2857 = vmatpush1.msra.mxu0 0.0
    %2858 = vmatprep.subr.mxu0 0.0
    %2859 = vmatpush1.msra.mxu0 0.0
    %2860 = vmatprep.subr.mxu0 0.0
    %2861 = vmatpush1.msra.mxu0 0.0
    %2862 = vmatprep.subr.mxu0 0.0
    %2863 = vmatpush1.msra.mxu0 0.0
    %2864 = vmatprep.subr.mxu0 0.0
    %2865 = vmatpush1.msra.mxu0 0.0
    %2866 = vmatprep.subr.mxu0 0.0
    %2867 = vmatpush1.msra.mxu0 0.0
    %2868 = vmatprep.subr.mxu0 0.0
    %2869 = vmatpush1.msra.mxu0 0.0
    %2870 = vmatprep.subr.mxu0 0.0
    %2871 = vmatpush1.msra.mxu0 0.0
    %2872 = vmatprep.subr.mxu0 0.0
    %2873 = vmatpush1.msra.mxu0 0.0
    %2874 = vmatprep.subr.mxu0 0.0
    %2875 = vmatpush1.msra.mxu0 0.0
    %2876 = vmatprep.subr.mxu0 0.0
    %2877 = vmatpush1.msra.mxu0 0.0
    %2878 = vmatprep.subr.mxu0 0.0
    %2879 = vmatpush1.msra.mxu0 0.0
    %2880 = vmatprep.subr.mxu0 0.0
    %2881 = vmatpush1.msra.mxu0 0.0
    %2882 = vmatprep.subr.mxu0 0.0
    %2883 = vmatpush1.msra.mxu0 0.0
    %2884 = vmatprep.subr.mxu0 0.0
    %2885 = vmatpush1.msra.mxu0 0.0
    %2886 = vmatprep.subr.mxu0 0.0
    %2887 = vmatpush1.msra.mxu0 0.0
    %2888 = vmatprep.subr.mxu0 0.0
    %2889 = vmatpush1.msra.mxu0 0.0
    %2890 = vmatprep.subr.mxu0 0.0
    %2891 = vmatpush1.msra.mxu0 0.0
    %2892 = vmatprep.subr.mxu0 0.0
    %2893 = vmatpush1.msra.mxu0 0.0
    %2894 = vmatprep.subr.mxu0 0.0
    %2895 = vmatpush1.msra.mxu0 0.0
    %2896 = vmatprep.subr.mxu0 0.0
    %2897 = vmatpush1.msra.mxu0 0.0
    %2898 = vmatprep.subr.mxu0 0.0
    %2899 = vmatpush1.msra.mxu0 0.0
    %2900 = vmatprep.mubr.f32.mxu0 0.0
    %2901 = vmatmul.mubr.f32.gmra.mrb[0].mxu0 %v2834
    %v2902 = vpop.f32.mrb[0].mxu0
    %v2903 = vadd.f32 %v2831, %v2902
    %v2904 = vpop.f32.mrb[0].mxu0
    %2905 = vdwg.mxu0
    %vm2906 = vcmask 9216
    %2907 = vst.msk [vmem:[#allocation8] sm:$0x3] %vm2906, %v2903
    // Predicated region
    $region86: #{tpu_custom_call.1} parent=1 // pred_check
      _
    $region87: #{tpu_custom_call.1} parent=1 // pred_check_branch
      %2909 = sbr.rel (0) target = $region89
    $region88: #{tpu_custom_call.1} parent=1 // pred_region
      %s2911 = ssub.s32 32, 32
      %2912 = vsyncadd [#allocation4], %s2911
      %s2914 = sshll.u32 [#allocation8], 4
      %s2915 = int_to_ptr.vmem [resolvable:$true] %s2914
      %2917 = dma.vmem_to_hbm [thread:$0]  %s2915, 32, %s18, [#allocation4]
    $region89: #{tpu_custom_call.1} parent=1 // pred_fallthru
      _
    // Predicated region
    $region90: #{tpu_custom_call.1} parent=1 // pred_check
      _
    $region91: #{tpu_custom_call.1} parent=1 // pred_check_branch
      %2919 = sbr.rel (0) target = $region93
    $region92: #{tpu_custom_call.1} parent=1 // pred_region
      %2920 = dma.done [#allocation4], 32
    $region93: #{tpu_custom_call.1} parent=1 // pred_fallthru
      _
    %2921 = vsyncpa [#allocation3], 1
    %2922 = vsyncpa [#allocation6], 1
    %2923 = vsyncpa [#allocation4], 1

</llo_original>
